<compile_context>
chip_gen: v6e
topology: v6e:2x2x1
jax: 0.10.0
libtpu: 0.0.40
codegen_flags: <defaults>
</compile_context>

<pallas_src>
import functools

import jax
import jax.numpy as jnp
from jax.experimental import pallas as pl
from jax.experimental.pallas import tpu as pltpu

BN_EPS = 1e-5
_VMEM_LIMIT = 48 * 1024 * 1024        # safe on v7x (64 MiB physical) and v5e/v6e (128 MiB)
_FUSE_VMEM_BUDGET = 36 * 1024 * 1024  # estimated usage above this -> recompute fallback


def _round_up(x, m):
    return ((x + m - 1) // m) * m


# --------------------------------------------------------------------------------------
# Fused kernel: grid = (2, n_tiles)
#   phase 0: FC1 + BN statistics           phase 1: BN affine + ReLU + FC2
# --------------------------------------------------------------------------------------
def _head_kernel(x_ref, w1_ref, b1_ref, gamma_ref, beta_ref, w2_ref, b2_ref,
                 out_ref, s1_ref, s2_ref, *maybe_h_ref,
                 n_valid, pad_rows, keep_h):
    h_ref = maybe_h_ref[0] if keep_h else None

    # program_id must be read at top level (NOT inside pl.when bodies) so that both the
    # Mosaic and the interpret paths can substitute it; the values are closed over below.
    phase = pl.program_id(0)   # 0: FC1 + stats, 1: BN/ReLU/FC2
    tile = pl.program_id(1)    # row-tile index

    def _fc1():
        # MXU matmul: bf16 operands, f32 accumulation; bias folded in directly.
        return (jnp.dot(x_ref[...].astype(jnp.bfloat16), w1_ref[...],
                        preferred_element_type=jnp.float32)
                + b1_ref[...])

    @pl.when((phase == 0) & (tile == 0))
    def _init_stats():
        s1_ref[...] = jnp.zeros_like(s1_ref)
        s2_ref[...] = jnp.zeros_like(s2_ref)

    @pl.when(phase == 0)
    def _fc1_and_stats():
        h = _fc1()
        if keep_h:
            h_ref[tile] = h                                   # persistent VMEM scratch
        s1_ref[...] += jnp.sum(h, axis=0, keepdims=True)      # sum(h)
        s2_ref[...] += jnp.sum(h * h, axis=0, keepdims=True)  # sum(h^2)

    @pl.when(phase == 1)
    def _bn_relu_fc2():
        h = h_ref[tile] if keep_h else _fc1()

        s1 = s1_ref[...]
        s2 = s2_ref[...]
        if pad_rows:
            # Padded x rows are exactly zero, so their h rows equal b1 exactly; remove
            # their contribution from the batch statistics in closed form (no masking).
            b1 = b1_ref[...]
            s1 = s1 - float(pad_rows) * b1
            s2 = s2 - float(pad_rows) * (b1 * b1)

        inv_n = 1.0 / float(n_valid)
        mean = s1 * inv_n
        # TODO(synk): single-pass variance (E[h^2]-mean^2) can cancel if |mean| >> std.
        var = jnp.maximum(s2 * inv_n - mean * mean, 0.0)      # biased batch variance
        inv_std = jax.lax.rsqrt(var + BN_EPS)
        scale = gamma_ref[...] * inv_std
        shift = beta_ref[...] - mean * scale

        a = jnp.maximum(h * scale + shift, 0.0)
        out_ref[...] = (jnp.dot(a.astype(jnp.bfloat16), w2_ref[...],
                                preferred_element_type=jnp.float32)
                        + b2_ref[...])


# --------------------------------------------------------------------------------------
# Parameter preparation (one-time layout conversion, NOT in the per-call hot path)
# --------------------------------------------------------------------------------------
def prepare_params(w1, b1, gamma, beta, w2, b2):
    """PyTorch-layout params -> kernel layout: pre-transposed (in, out) bf16 weights,
    lane-padded final Linear, (1, H)-shaped vectors."""
    H, F = w1.shape
    C = w2.shape[0]
    assert w2.shape[1] == H
    assert H % 128 == 0, "hidden dim must be lane-aligned (module uses 512)"
    C_pad = max(128, _round_up(C, 128))

    w1_t = jnp.asarray(w1, jnp.float32).T.astype(jnp.bfloat16)              # (F, H)
    b1_r = jnp.asarray(b1, jnp.float32).reshape(1, H)
    gamma_r = jnp.asarray(gamma, jnp.float32).reshape(1, H)
    beta_r = jnp.asarray(beta, jnp.float32).reshape(1, H)
    w2_t = jnp.zeros((H, C_pad), jnp.bfloat16).at[:, :C].set(
        jnp.asarray(w2, jnp.float32).T.astype(jnp.bfloat16))                # (H, C_pad)
    b2_r = jnp.zeros((1, C_pad), jnp.float32).at[:, :C].set(
        jnp.asarray(b2, jnp.float32).reshape(1, C))

    return dict(w1_t=w1_t, b1=b1_r, gamma=gamma_r, beta=beta_r,
                w2_t=w2_t, b2=b2_r, num_classes=C)


# --------------------------------------------------------------------------------------
# Forward
# --------------------------------------------------------------------------------------
def instance_classifier_head_simple(x, params, *, max_block_m=512, fuse_h_in_vmem=None):
    """Forward pass of Instance_Classifier_Head_simple (training-mode BatchNorm).

    x: (N, input_feat_dim)        params: output of prepare_params()
    max_block_m: upper bound on the row-tile size (512 suits v5e/v6e/v7x).
    fuse_h_in_vmem: force (True) / disable (False) keeping h in VMEM across the two
                    phases; None = decide automatically from a VMEM estimate.
    Returns (N, num_classes) float32.
    """
    w1_t, b1 = params["w1_t"], params["b1"]
    gamma, beta = params["gamma"], params["beta"]
    w2_t, b2 = params["w2_t"], params["b2"]
    C = params["num_classes"]

    N, F = x.shape
    H = w1_t.shape[1]
    C_pad = w2_t.shape[1]
    assert w1_t.shape[0] == F

    # Row tiling: as few tiles as possible (<= max_block_m rows each), minimal padding.
    max_block_m = max(8, _round_up(max_block_m, 8))
    n_tiles = pl.cdiv(N, max_block_m)
    block_m = _round_up(pl.cdiv(N, n_tiles), 8)
    N_pad = n_tiles * block_m
    pad_rows = N_pad - N
    if pad_rows:
        x = jnp.pad(x, ((0, pad_rows), (0, 0)))   # zero rows -> exact stats correction

    itemsize = jnp.dtype(x.dtype).itemsize
    # VMEM estimate: double-buffered pipeline blocks + resident weights + scratches.
    est = (2 * block_m * F * itemsize            # x blocks
           + 2 * F * H * 2 + 2 * H * C_pad * 2   # resident bf16 weights
           + 2 * block_m * C_pad * 4             # out blocks
           + 8 * H * 4)                          # bias / gamma / beta / stats
    h_bytes = n_tiles * block_m * H * 4
    if fuse_h_in_vmem is None:
        keep_h = est + h_bytes <= _FUSE_VMEM_BUDGET
    else:
        keep_h = bool(fuse_h_in_vmem)

    # x index map: phase 0 streams the row tiles; phase 1 either pins the last tile
    # (keep_h: no re-fetch) or streams them again (recompute fallback).
    if keep_h:
        x_index_map = lambda p, i: (i * (1 - p) + (n_tiles - 1) * p, 0)
    else:
        x_index_map = lambda p, i: (i, 0)

    scratch = [pltpu.VMEM((1, H), jnp.float32),   # sum(h)
               pltpu.VMEM((1, H), jnp.float32)]   # sum(h^2)
    if keep_h:
        scratch.append(pltpu.VMEM((n_tiles, block_m, H), jnp.float32))   # persistent h

    fc1_passes = 1 if keep_h else 2
    cost = pl.CostEstimate(
        flops=2 * N_pad * F * H * fc1_passes + 2 * N_pad * H * C_pad,
        transcendentals=n_tiles * H,
        bytes_accessed=(N_pad * F * itemsize * fc1_passes
                        + F * H * 2 + H * C_pad * 2 + N_pad * C_pad * 4),
    )

    kernel = functools.partial(_head_kernel, n_valid=N, pad_rows=pad_rows, keep_h=keep_h)

    out = pl.pallas_call(
        kernel,
        out_shape=jax.ShapeDtypeStruct((N_pad, C_pad), jnp.float32),
        grid=(2, n_tiles),
        in_specs=[
            pl.BlockSpec((block_m, F), x_index_map),           # x row tile
            pl.BlockSpec((F, H), lambda p, i: (0, 0)),         # W1 (resident)
            pl.BlockSpec((1, H), lambda p, i: (0, 0)),         # b1
            pl.BlockSpec((1, H), lambda p, i: (0, 0)),         # gamma
            pl.BlockSpec((1, H), lambda p, i: (0, 0)),         # beta
            pl.BlockSpec((H, C_pad), lambda p, i: (0, 0)),     # W2 (resident)
            pl.BlockSpec((1, C_pad), lambda p, i: (0, 0)),     # b2
        ],
        # Phase 0 never writes the output; pinning its block index to 0 means the only
        # write-backs are the (correct) phase-1 tiles.
        out_specs=pl.BlockSpec((block_m, C_pad), lambda p, i: (i * p, 0)),
        scratch_shapes=scratch,
        compiler_params=pltpu.CompilerParams(
            # BN couples all rows -> the row-tile axis must stay sequential.
            dimension_semantics=("arbitrary", "arbitrary"),
            vmem_limit_bytes=_VMEM_LIMIT,
        ),
        cost_estimate=cost,
    )(x, w1_t, b1, gamma, beta, w2_t, b2)

    return out[:N, :C]


# --------------------------------------------------------------------------------------
# Init matching _initialize_weights: Linear ~ N(0, 0.01), bias 0; BN weight=1, bias=0.
# --------------------------------------------------------------------------------------
def init_params(key, num_classes, input_feat_dim=512):
    k1, k2 = jax.random.split(key, 2)
    w1 = 0.01 * jax.random.normal(k1, (512, input_feat_dim), jnp.float32)
    b1 = jnp.zeros((512,), jnp.float32)
    gamma = jnp.ones((512,), jnp.float32)
    beta = jnp.zeros((512,), jnp.float32)
    w2 = 0.01 * jax.random.normal(k2, (num_classes, 512), jnp.float32)
    b2 = jnp.zeros((num_classes,), jnp.float32)
    return w1, b1, gamma, beta, w2, b2


def _reference(x, w1, b1, gamma, beta, w2, b2):
    # Mirrors the kernel's bf16 MXU operands / f32 accumulation so the comparison
    # isolates structural correctness from dtype rounding.
    h = jnp.dot(x.astype(jnp.bfloat16), w1.T.astype(jnp.bfloat16),
                preferred_element_type=jnp.float32) + b1
    mean = jnp.mean(h, axis=0, keepdims=True)
    var = jnp.mean((h - mean) ** 2, axis=0, keepdims=True)
    hn = (h - mean) * jax.lax.rsqrt(var + BN_EPS) * gamma + beta
    a = jnp.maximum(hn, 0.0)
    return jnp.dot(a.astype(jnp.bfloat16), w2.T.astype(jnp.bfloat16),
                   preferred_element_type=jnp.float32) + b2


if __name__ == "__main__":
    key = jax.random.PRNGKey(0)
    kx, kp = jax.random.split(key)

    N = 300               # not a multiple of the tile size -> exercises padding + exact
    input_feat_dim = 512  # stats correction
    num_classes = 3

    x = jax.random.normal(kx, (N, input_feat_dim), jnp.float32)
    raw = init_params(kp, num_classes, input_feat_dim)
    params = prepare_params(*raw)   # one-time layout conversion

    ref = _reference(x, *raw)

    # 1) default fused path (single row tile, h in VMEM scratch)
    out = jax.block_until_ready(instance_classifier_head_simple(x, params))
    assert out.shape == (N, num_classes)
    err = float(jnp.max(jnp.abs(out - ref)))
    assert jnp.allclose(out, ref, atol=2e-3, rtol=1e-2), ("fused", err)

    # 2) fused path with multiple row tiles (exercises cross-tile stats accumulation)
    out2 = jax.block_until_ready(
        instance_classifier_head_simple(x, params, max_block_m=128))
    err2 = float(jnp.max(jnp.abs(out2 - ref)))
    assert jnp.allclose(out2, ref, atol=2e-3, rtol=1e-2), ("fused multi-tile", err2)

    # 3) large-N fallback: h recomputed in phase 1 instead of kept in VMEM
    out3 = jax.block_until_ready(
        instance_classifier_head_simple(x, params, max_block_m=128, fuse_h_in_vmem=False))
    err3 = float(jnp.max(jnp.abs(out3 - ref)))
    assert jnp.allclose(out3, ref, atol=2e-3, rtol=1e-2), ("recompute fallback", err3)

    print("KERNEL_OK")
</pallas_src>

<mosaic_0001>
module attributes {stable_mosaic.version = 11 : i64} {
  func.func @_head_kernel(%arg0: i32, %arg1: i32, %arg2: memref<304x512xf32, #tpu.memory_space<vmem>>, %arg3: memref<512x512xbf16, #tpu.memory_space<vmem>>, %arg4: memref<1x512xf32, #tpu.memory_space<vmem>>, %arg5: memref<1x512xf32, #tpu.memory_space<vmem>>, %arg6: memref<1x512xf32, #tpu.memory_space<vmem>>, %arg7: memref<512x128xbf16, #tpu.memory_space<vmem>>, %arg8: memref<1x128xf32, #tpu.memory_space<vmem>>, %arg9: memref<304x128xf32, #tpu.memory_space<vmem>>, %arg10: memref<1x512xf32, #tpu.memory_space<vmem>>, %arg11: memref<1x512xf32, #tpu.memory_space<vmem>>, %arg12: memref<1x304x512xf32, #tpu.memory_space<vmem>>) attributes {dimension_semantics = [#tpu.dimension_semantics<arbitrary>, #tpu.dimension_semantics<arbitrary>], iteration_bounds = array<i64: 2, 1>, scalar_prefetch = 0 : i64, scratch_operands = 3 : i64, tpu.core_type = #tpu.core_type<tc>, window_params = [{transform_indices = @transform_0, window_bounds = array<i64: 304, 512>}, {pipeline_mode = #tpu.pipeline_mode<synchronous>, transform_indices = @transform_1, window_bounds = array<i64: 512, 512>}, {pipeline_mode = #tpu.pipeline_mode<synchronous>, transform_indices = @transform_2, window_bounds = array<i64: 1, 512>}, {pipeline_mode = #tpu.pipeline_mode<synchronous>, transform_indices = @transform_3, window_bounds = array<i64: 1, 512>}, {pipeline_mode = #tpu.pipeline_mode<synchronous>, transform_indices = @transform_4, window_bounds = array<i64: 1, 512>}, {pipeline_mode = #tpu.pipeline_mode<synchronous>, transform_indices = @transform_5, window_bounds = array<i64: 512, 128>}, {pipeline_mode = #tpu.pipeline_mode<synchronous>, transform_indices = @transform_6, window_bounds = array<i64: 1, 128>}, {transform_indices = @transform_7, window_bounds = array<i64: 304, 128>}]} {
    %c0_i32 = arith.constant 0 : i32
    %0 = arith.cmpi eq, %arg0, %c0_i32 : i32
    %c0_i32_0 = arith.constant 0 : i32
    %1 = arith.cmpi eq, %arg1, %c0_i32_0 : i32
    %2 = arith.andi %0, %1 : i1
    %3 = arith.extui %2 : i1 to i32
    %c0_i32_1 = arith.constant 0 : i32
    %4 = arith.cmpi ne, %3, %c0_i32_1 : i32
    scf.if %4 {
      %cst = arith.constant 0.000000e+00 : f32
      %11 = vector.broadcast %cst : f32 to vector<1x512xf32>
      %c0 = arith.constant 0 : index
      %c0_5 = arith.constant 0 : index
      %12 = vector.load %arg10[%c0, %c0_5] : memref<1x512xf32, #tpu.memory_space<vmem>>, vector<1x512xf32>
      tpu.vector_store %arg10[%c0, %c0_5], %11 {strides = array<i32>} : memref<1x512xf32, #tpu.memory_space<vmem>>, vector<1x512xf32>,
      %cst_6 = arith.constant 0.000000e+00 : f32
      %13 = vector.broadcast %cst_6 : f32 to vector<1x512xf32>
      %c0_7 = arith.constant 0 : index
      %c0_8 = arith.constant 0 : index
      %14 = vector.load %arg11[%c0_7, %c0_8] : memref<1x512xf32, #tpu.memory_space<vmem>>, vector<1x512xf32>
      tpu.vector_store %arg11[%c0_7, %c0_8], %13 {strides = array<i32>} : memref<1x512xf32, #tpu.memory_space<vmem>>, vector<1x512xf32>,
    } else {
    }
    %c0_i32_2 = arith.constant 0 : i32
    %5 = arith.cmpi eq, %arg0, %c0_i32_2 : i32
    %6 = arith.extui %5 : i1 to i32
    %c0_i32_3 = arith.constant 0 : i32
    %7 = arith.cmpi ne, %6, %c0_i32_3 : i32
    scf.if %7 {
      %c0 = arith.constant 0 : index
      %c0_5 = arith.constant 0 : index
      %11 = vector.load %arg2[%c0, %c0_5] : memref<304x512xf32, #tpu.memory_space<vmem>>, vector<304x512xf32>
      %12 = arith.truncf %11 : vector<304x512xf32> to vector<304x512xbf16>
      %c0_6 = arith.constant 0 : index
      %c0_7 = arith.constant 0 : index
      %13 = vector.load %arg3[%c0_6, %c0_7] : memref<512x512xbf16, #tpu.memory_space<vmem>>, vector<512x512xbf16>
      %cst = arith.constant dense<0.000000e+00> : vector<304x512xf32>
      %14 = tpu.matmul %12, %13, %cst {dimension_numbers = #tpu.dot_dimension_numbers<[1], [0], [0], [1], [0, 0, 1, 1], [], []>} : vector<304x512xbf16>, vector<512x512xbf16>, vector<304x512xf32> -> vector<304x512xf32>
      %c0_8 = arith.constant 0 : index
      %c0_9 = arith.constant 0 : index
      %15 = vector.load %arg4[%c0_8, %c0_9] : memref<1x512xf32, #tpu.memory_space<vmem>>, vector<1x512xf32>
      %16 = vector.broadcast %15 : vector<1x512xf32> to vector<304x512xf32>
      %17 = arith.addf %14, %16 : vector<304x512xf32>
      %18 = arith.index_cast %arg1 : i32 to index
      %c0_10 = arith.constant 0 : index
      %c0_11 = arith.constant 0 : index
      %19 = vector.load %arg12[%18, %c0_10, %c0_11] : memref<1x304x512xf32, #tpu.memory_space<vmem>>, vector<1x304x512xf32>
      %20 = vector.shape_cast %19 : vector<1x304x512xf32> to vector<304x512xf32>
      %21 = vector.shape_cast %17 : vector<304x512xf32> to vector<1x304x512xf32>
      tpu.vector_store %arg12[%18, %c0_10, %c0_11], %21 {strides = array<i32>} : memref<1x304x512xf32, #tpu.memory_space<vmem>>, vector<1x304x512xf32>,
      %c0_12 = arith.constant 0 : index
      %c0_13 = arith.constant 0 : index
      %22 = vector.load %arg10[%c0_12, %c0_13] : memref<1x512xf32, #tpu.memory_space<vmem>>, vector<1x512xf32>
      %cst_14 = arith.constant dense<0.000000e+00> : vector<512xf32>
      %23 = vector.multi_reduction <add>, %17, %cst_14 [0] : vector<304x512xf32> to vector<512xf32>
      %24 = vector.shape_cast %23 : vector<512xf32> to vector<1x512xf32>
      %25 = arith.addf %22, %24 : vector<1x512xf32>
      %c0_15 = arith.constant 0 : index
      %c0_16 = arith.constant 0 : index
      %26 = vector.load %arg10[%c0_15, %c0_16] : memref<1x512xf32, #tpu.memory_space<vmem>>, vector<1x512xf32>
      tpu.vector_store %arg10[%c0_15, %c0_16], %25 {strides = array<i32>} : memref<1x512xf32, #tpu.memory_space<vmem>>, vector<1x512xf32>,
      %c0_17 = arith.constant 0 : index
      %c0_18 = arith.constant 0 : index
      %27 = vector.load %arg11[%c0_17, %c0_18] : memref<1x512xf32, #tpu.memory_space<vmem>>, vector<1x512xf32>
      %28 = arith.mulf %17, %17 : vector<304x512xf32>
      %cst_19 = arith.constant dense<0.000000e+00> : vector<512xf32>
      %29 = vector.multi_reduction <add>, %28, %cst_19 [0] : vector<304x512xf32> to vector<512xf32>
      %30 = vector.shape_cast %29 : vector<512xf32> to vector<1x512xf32>
      %31 = arith.addf %27, %30 : vector<1x512xf32>
      %c0_20 = arith.constant 0 : index
      %c0_21 = arith.constant 0 : index
      %32 = vector.load %arg11[%c0_20, %c0_21] : memref<1x512xf32, #tpu.memory_space<vmem>>, vector<1x512xf32>
      tpu.vector_store %arg11[%c0_20, %c0_21], %31 {strides = array<i32>} : memref<1x512xf32, #tpu.memory_space<vmem>>, vector<1x512xf32>,
    } else {
    }
    %c1_i32 = arith.constant 1 : i32
    %8 = arith.cmpi eq, %arg0, %c1_i32 : i32
    %9 = arith.extui %8 : i1 to i32
    %c0_i32_4 = arith.constant 0 : i32
    %10 = arith.cmpi ne, %9, %c0_i32_4 : i32
    scf.if %10 {
      %11 = arith.index_cast %arg1 : i32 to index
      %c0 = arith.constant 0 : index
      %c0_5 = arith.constant 0 : index
      %12 = vector.load %arg12[%11, %c0, %c0_5] : memref<1x304x512xf32, #tpu.memory_space<vmem>>, vector<1x304x512xf32>
      %13 = vector.shape_cast %12 : vector<1x304x512xf32> to vector<304x512xf32>
      %c0_6 = arith.constant 0 : index
      %c0_7 = arith.constant 0 : index
      %14 = vector.load %arg10[%c0_6, %c0_7] : memref<1x512xf32, #tpu.memory_space<vmem>>, vector<1x512xf32>
      %c0_8 = arith.constant 0 : index
      %c0_9 = arith.constant 0 : index
      %15 = vector.load %arg11[%c0_8, %c0_9] : memref<1x512xf32, #tpu.memory_space<vmem>>, vector<1x512xf32>
      %c0_10 = arith.constant 0 : index
      %c0_11 = arith.constant 0 : index
      %16 = vector.load %arg4[%c0_10, %c0_11] : memref<1x512xf32, #tpu.memory_space<vmem>>, vector<1x512xf32>
      %cst = arith.constant 4.000000e+00 : f32
      %17 = vector.broadcast %cst : f32 to vector<1x512xf32>
      %18 = arith.mulf %17, %16 : vector<1x512xf32>
      %19 = arith.subf %14, %18 : vector<1x512xf32>
      %20 = arith.mulf %16, %16 : vector<1x512xf32>
      %cst_12 = arith.constant 4.000000e+00 : f32
      %21 = vector.broadcast %cst_12 : f32 to vector<1x512xf32>
      %22 = arith.mulf %21, %20 : vector<1x512xf32>
      %23 = arith.subf %15, %22 : vector<1x512xf32>
      %cst_13 = arith.constant 0.00333333341 : f32
      %24 = vector.broadcast %cst_13 : f32 to vector<1x512xf32>
      %25 = arith.mulf %19, %24 : vector<1x512xf32>
      %cst_14 = arith.constant 0.00333333341 : f32
      %26 = vector.broadcast %cst_14 : f32 to vector<1x512xf32>
      %27 = arith.mulf %23, %26 : vector<1x512xf32>
      %28 = arith.mulf %25, %25 : vector<1x512xf32>
      %29 = arith.subf %27, %28 : vector<1x512xf32>
      %cst_15 = arith.constant 0.000000e+00 : f32
      %30 = vector.broadcast %cst_15 : f32 to vector<1x512xf32>
      %31 = arith.maximumf %29, %30 : vector<1x512xf32>
      %cst_16 = arith.constant 9.99999974E-6 : f32
      %32 = vector.broadcast %cst_16 : f32 to vector<1x512xf32>
      %33 = arith.addf %31, %32 : vector<1x512xf32>
      %34 = math.rsqrt %33 : vector<1x512xf32>
      %c0_17 = arith.constant 0 : index
      %c0_18 = arith.constant 0 : index
      %35 = vector.load %arg5[%c0_17, %c0_18] : memref<1x512xf32, #tpu.memory_space<vmem>>, vector<1x512xf32>
      %36 = arith.mulf %35, %34 : vector<1x512xf32>
      %c0_19 = arith.constant 0 : index
      %c0_20 = arith.constant 0 : index
      %37 = vector.load %arg6[%c0_19, %c0_20] : memref<1x512xf32, #tpu.memory_space<vmem>>, vector<1x512xf32>
      %38 = arith.mulf %25, %36 : vector<1x512xf32>
      %39 = arith.subf %37, %38 : vector<1x512xf32>
      %40 = vector.broadcast %36 : vector<1x512xf32> to vector<304x512xf32>
      %41 = arith.mulf %13, %40 : vector<304x512xf32>
      %42 = vector.broadcast %39 : vector<1x512xf32> to vector<304x512xf32>
      %43 = arith.addf %41, %42 : vector<304x512xf32>
      %cst_21 = arith.constant 0.000000e+00 : f32
      %44 = vector.broadcast %cst_21 : f32 to vector<304x512xf32>
      %45 = arith.maximumf %43, %44 : vector<304x512xf32>
      %46 = arith.truncf %45 : vector<304x512xf32> to vector<304x512xbf16>
      %c0_22 = arith.constant 0 : index
      %c0_23 = arith.constant 0 : index
      %47 = vector.load %arg7[%c0_22, %c0_23] : memref<512x128xbf16, #tpu.memory_space<vmem>>, vector<512x128xbf16>
      %cst_24 = arith.constant dense<0.000000e+00> : vector<304x128xf32>
      %48 = tpu.matmul %46, %47, %cst_24 {dimension_numbers = #tpu.dot_dimension_numbers<[1], [0], [0], [1], [0, 0, 1, 1], [], []>} : vector<304x512xbf16>, vector<512x128xbf16>, vector<304x128xf32> -> vector<304x128xf32>
      %c0_25 = arith.constant 0 : index
      %c0_26 = arith.constant 0 : index
      %49 = vector.load %arg8[%c0_25, %c0_26] : memref<1x128xf32, #tpu.memory_space<vmem>>, vector<1x128xf32>
      %50 = vector.broadcast %49 : vector<1x128xf32> to vector<304x128xf32>
      %51 = arith.addf %48, %50 : vector<304x128xf32>
      %c0_27 = arith.constant 0 : index
      %c0_28 = arith.constant 0 : index
      %52 = vector.load %arg9[%c0_27, %c0_28] : memref<304x128xf32, #tpu.memory_space<vmem>>, vector<304x128xf32>
      tpu.vector_store %arg9[%c0_27, %c0_28], %51 {strides = array<i32>} : memref<304x128xf32, #tpu.memory_space<vmem>>, vector<304x128xf32>,
    } else {
    }
    return
  }
  func.func @transform_0(%arg0: i32, %arg1: i32) -> (i32, i32) {
    %c1_i32 = arith.constant 1 : i32
    %0 = arith.subi %c1_i32, %arg0 : i32
    %1 = arith.muli %arg1, %0 : i32
    %c0_i32 = arith.constant 0 : i32
    %2 = arith.muli %c0_i32, %arg0 : i32
    %3 = arith.addi %1, %2 : i32
    %c0_i32_0 = arith.constant 0 : i32
    %c0_i32_1 = arith.constant 0 : i32
    return %3, %c0_i32_0 : i32, i32
  }
  func.func @transform_1(%arg0: i32, %arg1: i32) -> (i32, i32) {
    %c0_i32 = arith.constant 0 : i32
    %c0_i32_0 = arith.constant 0 : i32
    %c0_i32_1 = arith.constant 0 : i32
    return %c0_i32, %c0_i32_0 : i32, i32
  }
  func.func @transform_2(%arg0: i32, %arg1: i32) -> (i32, i32) {
    %c0_i32 = arith.constant 0 : i32
    %c0_i32_0 = arith.constant 0 : i32
    %c0_i32_1 = arith.constant 0 : i32
    return %c0_i32, %c0_i32_0 : i32, i32
  }
  func.func @transform_3(%arg0: i32, %arg1: i32) -> (i32, i32) {
    %c0_i32 = arith.constant 0 : i32
    %c0_i32_0 = arith.constant 0 : i32
    %c0_i32_1 = arith.constant 0 : i32
    return %c0_i32, %c0_i32_0 : i32, i32
  }
  func.func @transform_4(%arg0: i32, %arg1: i32) -> (i32, i32) {
    %c0_i32 = arith.constant 0 : i32
    %c0_i32_0 = arith.constant 0 : i32
    %c0_i32_1 = arith.constant 0 : i32
    return %c0_i32, %c0_i32_0 : i32, i32
  }
  func.func @transform_5(%arg0: i32, %arg1: i32) -> (i32, i32) {
    %c0_i32 = arith.constant 0 : i32
    %c0_i32_0 = arith.constant 0 : i32
    %c0_i32_1 = arith.constant 0 : i32
    return %c0_i32, %c0_i32_0 : i32, i32
  }
  func.func @transform_6(%arg0: i32, %arg1: i32) -> (i32, i32) {
    %c0_i32 = arith.constant 0 : i32
    %c0_i32_0 = arith.constant 0 : i32
    %c0_i32_1 = arith.constant 0 : i32
    return %c0_i32, %c0_i32_0 : i32, i32
  }
  func.func @transform_7(%arg0: i32, %arg1: i32) -> (i32, i32) {
    %0 = arith.muli %arg1, %arg0 : i32
    %c0_i32 = arith.constant 0 : i32
    %c0_i32_0 = arith.constant 0 : i32
    return %0, %c0_i32 : i32, i32
  }
}

</mosaic_0001>

<llo_original>
// kernel: tpu_custom_call.1
$region0: #{tpu_custom_call.1}
  #allocation0 [shape = 'u32[]', space=smem, size = 0x4, offset = 0x4, fixed_abs, tag = 'smem constant byte address 0x4 - core index']
  #allocation1 [shape = 'u32[144,128]{1,0:T(1,128)}', space=vmem, size = 0x12000, scoped, tag = 'internal scratch']
  #allocation2 [shape = 'f32[1,512]{1,0:T(1,128)}', space=vmem, size = 0x800, scoped, tag = 'scratch operand']
  #allocation3 [shape = 'f32[1,512]{1,0:T(1,128)}', space=vmem, size = 0x800, scoped, tag = 'scratch operand']
  #allocation4 [shape = 'f32[1,304,512]{2,1,0:T(8,128)}', space=vmem, size = 0x98000, scoped, tag = 'scratch operand']
  %s0 = inlined_call_operand.hbm [shape: f32[304,512], index: 0, kind: input, shape index: {}]
  %s1 = inlined_call_operand.hbm [shape: bf16[512,512], index: 1, kind: input, shape index: {}]
  %s2 = inlined_call_operand.hbm [shape: f32[1,512], index: 2, kind: input, shape index: {}]
  %s3 = inlined_call_operand.vmem [shape: f32[1,512], index: 3, kind: input, shape index: {}]
  %s4 = inlined_call_operand.hbm [shape: f32[1,512], index: 4, kind: input, shape index: {}]
  %s5 = inlined_call_operand.hbm [shape: bf16[512,128], index: 5, kind: input, shape index: {}]
  %s6 = inlined_call_operand.vmem [shape: f32[1,128], index: 6, kind: input, shape index: {}]
  %s7 = inlined_call_operand.hbm [shape: f32[304,128], index: 7, kind: output, shape index: {}]
  %s8 = sld [smem:[#allocation0]]
  $region93: #{tpu_custom_call.1} parent=0
    _
  %s10 = ssub.s32 1, %s8
  %s11 = scalar_select 0, %s10, %s8
  $region1: #{tpu_custom_call.1} parent=0
    #allocation5 [shape = 'u8[1245184]{0}', space=vmem, size = 0x130000, scoped, tag = 'input window, operand 0']
    #allocation6 [shape = 's32[2]{0}', space=sflag, size = 0x8, scoped, tag = 'scoped memory for tpu_custom_call.1']
    #allocation7 [shape = 's32[2]{0}', space=sflag, size = 0x8, scoped, tag = 'scoped memory for tpu_custom_call.1']
    #allocation8 [shape = 'u8[524288]{0}', space=vmem, size = 0x80000, scoped, tag = 'input window, operand 1, single buffered']
    #allocation9 [shape = 's32[1]{0}', space=sflag, size = 0x4, scoped, tag = 'scoped memory for tpu_custom_call.1']
    #allocation10 [shape = 'u8[2048]{0}', space=vmem, size = 0x800, scoped, tag = 'input window, operand 2, single buffered']
    #allocation11 [shape = 'u8[2048]{0}', space=vmem, size = 0x800, scoped, tag = 'input window, operand 4, single buffered']
    #allocation12 [shape = 's32[1]{0}', space=sflag, size = 0x4, scoped, tag = 'scoped memory for tpu_custom_call.1']
    #allocation13 [shape = 'u8[131072]{0}', space=vmem, size = 0x20000, scoped, tag = 'input window, operand 5, single buffered']
    #allocation14 [shape = 'u8[311296]{0}', space=vmem, size = 0x4c000, scoped, tag = 'output window, operand 0']
    %12 = vsyncpa [#allocation6], 0
    %s13 = scalar_lea.sflag [#allocation6], 1
    %14 = vsyncpa %s13, 0
    %15 = vsyncpa [#allocation9], 0
    %16 = vsyncpa [#allocation12], 0
    %17 = vsyncpa [#allocation7], 0
    %s18 = scalar_lea.sflag [#allocation7], 1
    %19 = vsyncpa %s18, 0
    loop: start=0, step=1, limit=4
    $region2: #{tpu_custom_call.1} parent=1 // loop_pre_header
      _
    $region3: #{tpu_custom_call.1} parent=1 // loop_header
      %s21 = sphi 0, %s25
      %p22 = scmp.ge.s32.totalorder %s21, 4
      %s28 = sphi 0, %s40
      %s29 = sphi 0, %s36
      %s30 = sphi 0, %s28
      %s31 = sphi 0, %s29
      %s32 = sphi 0, %s30
      %s33 = sphi 0, %s31
      %s47 = sphi 0, %s49
      %s50 = sphi 0, %s47
      %s51 = sphi 0, %s50
      %s67 = sphi 0, %s51
      %s71 = sphi 0, %s71
      %s73 = sphi 0, %s71
      %s74 = sphi 0, %s73
      %s88 = sphi 0, %s74
      %s92 = sphi 0, %s92
      %s94 = sphi 0, %s92
      %s95 = sphi 0, %s94
      %s109 = sphi 0, %s95
      %s113 = sphi 0, %s113
      %s115 = sphi 0, %s113
      %s116 = sphi 0, %s115
      %s130 = sphi 0, %s116
      %s134 = sphi 0, %s134
      %s136 = sphi 0, %s134
      %s137 = sphi 0, %s136
      %s151 = sphi 0, %s137
      %s155 = sphi 0, %s155
      %s157 = sphi 0, %s155
      %s158 = sphi 0, %s157
      %s172 = sphi 0, %s158
      %s176 = sphi 0, %s176
      %s178 = sphi 0, %s176
      %s179 = sphi 0, %s178
      %s193 = sphi 0, %s179
      %s201 = sphi 0, %s203
      %s204 = sphi 0, %s201
      %s205 = sphi 0, %s204
      %s221 = sphi 0, %s205
    $region4: #{tpu_custom_call.1} parent=1 // loop_header_branch
      %24 = sbr.rel (%p22) target = $region8
    $region5: #{tpu_custom_call.1} parent=1 // loop_body
      %s26 = ssub.s32 %s21, 1
      %s27 = ssub.s32 %s21, 2
      %s34 = sadd.s32 1, %s29
      %p35 = scmp.ge.s32.totalorder %s34, 1
      %s36 = scalar_select %p35, 0, %s34
      %s37 = sadd.s32 1, %s28
      %s38 = scalar_select %p35, %s37, %s28
      %p39 = scmp.ge.s32.totalorder %s38, 2
      %s40 = scalar_select %p39, 0, %s38
      %s41 = ssub.s32 1, %s28
      %s42 = smul.u32 %s29, %s41
      %s43 = ssub.s32 1, %s40
      %s44 = smul.u32 %s36, %s43
      %s45 = ssub.s32 %s42, %s44
      %p46 = scmp.eq.s32.totalorder %s45, 0
      %s48 = sadd.s32 %s47, 1
      %s49 = scalar_select %p46, %s47, %s48
      %p52 = pneg %p46
      %p53 = scmp.eq.s32.totalorder %s21, 1
      %p54 = por %p52, %p53
      %p55 = scmp.ne.s32.totalorder %s47, %s50
      %p56 = scmp.eq.s32.totalorder %s21, 0
      %p57 = por %p55, %p56
      %p58 = scmp.ne.s32.totalorder %s47, %s50
      %p59 = scmp.eq.s32.totalorder %s26, 1
      %p60 = por %p58, %p59
      %p61 = scmp.ne.s32.totalorder %s50, %s51
      %p62 = scmp.eq.s32.totalorder %s26, 0
      %p63 = por %p61, %p62
      %p64 = scmp.ne.s32.totalorder %s50, %s51
      %p65 = scmp.eq.s32.totalorder %s27, 1
      %p66 = por %p64, %p65
      %p68 = scmp.ne.s32.totalorder %s51, %s67
      %p69 = scmp.eq.s32.totalorder %s27, 0
      %p70 = por %p68, %p69
      %s72 = sadd.s32 %s71, 1
      %p75 = scmp.eq.s32.totalorder %s21, 1
      %p76 = scmp.ne.s32.totalorder %s71, %s73
      %p77 = scmp.eq.s32.totalorder %s21, 0
      %p78 = por %p76, %p77
      %p79 = scmp.ne.s32.totalorder %s71, %s73
      %p80 = scmp.eq.s32.totalorder %s26, 1
      %p81 = por %p79, %p80
      %p82 = scmp.ne.s32.totalorder %s73, %s74
      %p83 = scmp.eq.s32.totalorder %s26, 0
      %p84 = por %p82, %p83
      %p85 = scmp.ne.s32.totalorder %s73, %s74
      %p86 = scmp.eq.s32.totalorder %s27, 1
      %p87 = por %p85, %p86
      %p89 = scmp.ne.s32.totalorder %s74, %s88
      %p90 = scmp.eq.s32.totalorder %s27, 0
      %p91 = por %p89, %p90
      %s93 = sadd.s32 %s92, 1
      %p96 = scmp.eq.s32.totalorder %s21, 1
      %p97 = scmp.ne.s32.totalorder %s92, %s94
      %p98 = scmp.eq.s32.totalorder %s21, 0
      %p99 = por %p97, %p98
      %p100 = scmp.ne.s32.totalorder %s92, %s94
      %p101 = scmp.eq.s32.totalorder %s26, 1
      %p102 = por %p100, %p101
      %p103 = scmp.ne.s32.totalorder %s94, %s95
      %p104 = scmp.eq.s32.totalorder %s26, 0
      %p105 = por %p103, %p104
      %p106 = scmp.ne.s32.totalorder %s94, %s95
      %p107 = scmp.eq.s32.totalorder %s27, 1
      %p108 = por %p106, %p107
      %p110 = scmp.ne.s32.totalorder %s95, %s109
      %p111 = scmp.eq.s32.totalorder %s27, 0
      %p112 = por %p110, %p111
      %s114 = sadd.s32 %s113, 1
      %p117 = scmp.eq.s32.totalorder %s21, 1
      %p118 = scmp.ne.s32.totalorder %s113, %s115
      %p119 = scmp.eq.s32.totalorder %s21, 0
      %p120 = por %p118, %p119
      %p121 = scmp.ne.s32.totalorder %s113, %s115
      %p122 = scmp.eq.s32.totalorder %s26, 1
      %p123 = por %p121, %p122
      %p124 = scmp.ne.s32.totalorder %s115, %s116
      %p125 = scmp.eq.s32.totalorder %s26, 0
      %p126 = por %p124, %p125
      %p127 = scmp.ne.s32.totalorder %s115, %s116
      %p128 = scmp.eq.s32.totalorder %s27, 1
      %p129 = por %p127, %p128
      %p131 = scmp.ne.s32.totalorder %s116, %s130
      %p132 = scmp.eq.s32.totalorder %s27, 0
      %p133 = por %p131, %p132
      %s135 = sadd.s32 %s134, 1
      %p138 = scmp.eq.s32.totalorder %s21, 1
      %p139 = scmp.ne.s32.totalorder %s134, %s136
      %p140 = scmp.eq.s32.totalorder %s21, 0
      %p141 = por %p139, %p140
      %p142 = scmp.ne.s32.totalorder %s134, %s136
      %p143 = scmp.eq.s32.totalorder %s26, 1
      %p144 = por %p142, %p143
      %p145 = scmp.ne.s32.totalorder %s136, %s137
      %p146 = scmp.eq.s32.totalorder %s26, 0
      %p147 = por %p145, %p146
      %p148 = scmp.ne.s32.totalorder %s136, %s137
      %p149 = scmp.eq.s32.totalorder %s27, 1
      %p150 = por %p148, %p149
      %p152 = scmp.ne.s32.totalorder %s137, %s151
      %p153 = scmp.eq.s32.totalorder %s27, 0
      %p154 = por %p152, %p153
      %s156 = sadd.s32 %s155, 1
      %p159 = scmp.eq.s32.totalorder %s21, 1
      %p160 = scmp.ne.s32.totalorder %s155, %s157
      %p161 = scmp.eq.s32.totalorder %s21, 0
      %p162 = por %p160, %p161
      %p163 = scmp.ne.s32.totalorder %s155, %s157
      %p164 = scmp.eq.s32.totalorder %s26, 1
      %p165 = por %p163, %p164
      %p166 = scmp.ne.s32.totalorder %s157, %s158
      %p167 = scmp.eq.s32.totalorder %s26, 0
      %p168 = por %p166, %p167
      %p169 = scmp.ne.s32.totalorder %s157, %s158
      %p170 = scmp.eq.s32.totalorder %s27, 1
      %p171 = por %p169, %p170
      %p173 = scmp.ne.s32.totalorder %s158, %s172
      %p174 = scmp.eq.s32.totalorder %s27, 0
      %p175 = por %p173, %p174
      %s177 = sadd.s32 %s176, 1
      %p180 = scmp.eq.s32.totalorder %s21, 1
      %p181 = scmp.ne.s32.totalorder %s176, %s178
      %p182 = scmp.eq.s32.totalorder %s21, 0
      %p183 = por %p181, %p182
      %p184 = scmp.ne.s32.totalorder %s176, %s178
      %p185 = scmp.eq.s32.totalorder %s26, 1
      %p186 = por %p184, %p185
      %p187 = scmp.ne.s32.totalorder %s178, %s179
      %p188 = scmp.eq.s32.totalorder %s26, 0
      %p189 = por %p187, %p188
      %p190 = scmp.ne.s32.totalorder %s178, %s179
      %p191 = scmp.eq.s32.totalorder %s27, 1
      %p192 = por %p190, %p191
      %p194 = scmp.ne.s32.totalorder %s179, %s193
      %p195 = scmp.eq.s32.totalorder %s27, 0
      %p196 = por %p194, %p195
      %s197 = smul.u32 %s29, %s28
      %s198 = smul.u32 %s36, %s40
      %s199 = ssub.s32 %s197, %s198
      %p200 = scmp.eq.s32.totalorder %s199, 0
      %s202 = sadd.s32 %s201, 1
      %s203 = scalar_select %p200, %s201, %s202
      %p206 = pneg %p200
      %p207 = scmp.eq.s32.totalorder %s21, 1
      %p208 = por %p206, %p207
      %p209 = scmp.ne.s32.totalorder %s201, %s204
      %p210 = scmp.eq.s32.totalorder %s21, 0
      %p211 = por %p209, %p210
      %p212 = scmp.ne.s32.totalorder %s201, %s204
      %p213 = scmp.eq.s32.totalorder %s26, 1
      %p214 = por %p212, %p213
      %p215 = scmp.ne.s32.totalorder %s204, %s205
      %p216 = scmp.eq.s32.totalorder %s26, 0
      %p217 = por %p215, %p216
      %p218 = scmp.ne.s32.totalorder %s204, %s205
      %p219 = scmp.eq.s32.totalorder %s27, 1
      %p220 = por %p218, %p219
      %p222 = scmp.ne.s32.totalorder %s205, %s221
      %p223 = scmp.eq.s32.totalorder %s27, 0
      %p224 = por %p222, %p223
      %p225 = scmp.le.s32.totalorder 1, %s21
      %p226 = scmp.lt.s32.totalorder %s21, 3
      %p227 = pnand %p225, %p226
      %p228 = pneg %p227
      // Predicated region
      $region9: #{tpu_custom_call.1} parent=5 // pred_check
        _
      $region10: #{tpu_custom_call.1} parent=5 // pred_check_branch
        %230 = sbr.rel (%p227) target = $region12
      $region11: #{tpu_custom_call.1} parent=5 // pred_region
        %s231 = ssub.s32 %s21, 1
        // Predicated region
        $region13: #{tpu_custom_call.1} parent=11 // pred_check
          %p232 = pneg %p84
        $region14: #{tpu_custom_call.1} parent=11 // pred_check_branch
          %234 = sbr.rel (%p232) target = $region16
        $region15: #{tpu_custom_call.1} parent=11 // pred_region
          %s236 = ssub.s32 16384, 16384
          %237 = vsyncadd [#allocation9], %s236
          %s238 = sshll.u32 [#allocation8], 4
          %s239 = int_to_ptr.vmem [resolvable:$true] %s238
          %244 = dma.hbm_to_vmem [thread:$0]  %s1, 16384, %s239, [#allocation9], 256, 256, 16
        $region16: #{tpu_custom_call.1} parent=11 // pred_fallthru
          _
        // Predicated region
        $region17: #{tpu_custom_call.1} parent=11 // pred_check
          %p245 = pneg %p105
        $region18: #{tpu_custom_call.1} parent=11 // pred_check_branch
          %247 = sbr.rel (%p245) target = $region20
        $region19: #{tpu_custom_call.1} parent=11 // pred_region
          %s249 = ssub.s32 64, 64
          %250 = vsyncadd [#allocation9], %s249
          %s252 = sshll.u32 [#allocation10], 4
          %s253 = int_to_ptr.vmem [resolvable:$true] %s252
          %255 = dma.hbm_to_vmem [thread:$0]  %s2, 64, %s253, [#allocation9]
        $region20: #{tpu_custom_call.1} parent=11 // pred_fallthru
          _
        // Predicated region
        $region21: #{tpu_custom_call.1} parent=11 // pred_check
          %p256 = pneg %p126
        $region22: #{tpu_custom_call.1} parent=11 // pred_check_branch
          %258 = sbr.rel (%p256) target = $region24
        $region23: #{tpu_custom_call.1} parent=11 // pred_region
          _
        $region24: #{tpu_custom_call.1} parent=11 // pred_fallthru
          _
        // Predicated region
        $region25: #{tpu_custom_call.1} parent=11 // pred_check
          %p259 = pneg %p147
        $region26: #{tpu_custom_call.1} parent=11 // pred_check_branch
          %261 = sbr.rel (%p259) target = $region28
        $region27: #{tpu_custom_call.1} parent=11 // pred_region
          %s263 = ssub.s32 64, 64
          %264 = vsyncadd [#allocation12], %s263
          %s266 = sshll.u32 [#allocation11], 4
          %s267 = int_to_ptr.vmem [resolvable:$true] %s266
          %269 = dma.hbm_to_vmem [thread:$0]  %s4, 64, %s267, [#allocation12]
        $region28: #{tpu_custom_call.1} parent=11 // pred_fallthru
          _
        // Predicated region
        $region29: #{tpu_custom_call.1} parent=11 // pred_check
          %p270 = pneg %p168
        $region30: #{tpu_custom_call.1} parent=11 // pred_check_branch
          %272 = sbr.rel (%p270) target = $region32
        $region31: #{tpu_custom_call.1} parent=11 // pred_region
          %s274 = ssub.s32 4096, 4096
          %275 = vsyncadd [#allocation12], %s274
          %s276 = sshll.u32 [#allocation13], 4
          %s277 = int_to_ptr.vmem [resolvable:$true] %s276
          %282 = dma.hbm_to_vmem [thread:$0]  %s5, 4096, %s277, [#allocation12], 64, 64, 4
        $region32: #{tpu_custom_call.1} parent=11 // pred_fallthru
          _
        // Predicated region
        $region33: #{tpu_custom_call.1} parent=11 // pred_check
          %p283 = pneg %p189
        $region34: #{tpu_custom_call.1} parent=11 // pred_check_branch
          %285 = sbr.rel (%p283) target = $region36
        $region35: #{tpu_custom_call.1} parent=11 // pred_region
          _
        $region36: #{tpu_custom_call.1} parent=11 // pred_fallthru
          _
      $region12: #{tpu_custom_call.1} parent=5 // pred_fallthru
        _
      %p286 = scmp.lt.s32.totalorder %s21, 2
      // Predicated region
      $region37: #{tpu_custom_call.1} parent=5 // pred_check
        %p287 = pneg %p286
      $region38: #{tpu_custom_call.1} parent=5 // pred_check_branch
        %289 = sbr.rel (%p287) target = $region40
      $region39: #{tpu_custom_call.1} parent=5 // pred_region
        // Predicated region
        $region41: #{tpu_custom_call.1} parent=39 // pred_check
          %p290 = pneg %p57
        $region42: #{tpu_custom_call.1} parent=39 // pred_check_branch
          %292 = sbr.rel (%p290) target = $region44
        $region43: #{tpu_custom_call.1} parent=39 // pred_region
          %s293 = sand.u32 %s47, 1
          %s294 = scalar_lea.sflag [#allocation6], %s293
          %s295 = sand.u32 %s47, 1
          %s296 = smul.addr %s295, 1216
          %s297 = scalar_lea.vmem [#allocation5], %s296
          %s298 = ssub.s32 1, %s28
          %s299 = smul.u32 %s29, %s298
          %s300 = smul.u32 38, %s299
          %s302 = ssub.s32 19456, 19456
          %303 = vsyncadd %s294, %s302
          %s304 = smul.addr %s300, 4
          %s305 = smul.addr %s304, 128
          %s306 = scalar_lea.hbm %s0, %s305
          %s307 = sshll.u32 %s297, 4
          %s308 = int_to_ptr.vmem [resolvable:$true] %s307
          %313 = dma.hbm_to_vmem [thread:$0]  %s306, 19456, %s308, %s294, 512, 512, 32
        $region44: #{tpu_custom_call.1} parent=39 // pred_fallthru
          _
      $region40: #{tpu_custom_call.1} parent=5 // pred_fallthru
        _
      %p314 = scmp.le.s32.totalorder 1, %s21
      %p315 = scmp.lt.s32.totalorder %s21, 3
      %p316 = pnand %p314, %p315
      %p317 = pneg %p316
      // Predicated region
      $region45: #{tpu_custom_call.1} parent=5 // pred_check
        _
      $region46: #{tpu_custom_call.1} parent=5 // pred_check_branch
        %319 = sbr.rel (%p316) target = $region48
      $region47: #{tpu_custom_call.1} parent=5 // pred_region
        %s320 = ssub.s32 %s21, 1
        %s321 = sand.u32 %s50, 1
        %s322 = scalar_lea.sflag [#allocation6], %s321
        %s323 = sand.u32 %s50, 1
        %s324 = smul.addr %s323, 1216
        %s325 = scalar_lea.vmem [#allocation5], %s324
        // Predicated region
        $region49: #{tpu_custom_call.1} parent=47 // pred_check
          %p326 = pneg %p63
        $region50: #{tpu_custom_call.1} parent=47 // pred_check_branch
          %328 = sbr.rel (%p326) target = $region52
        $region51: #{tpu_custom_call.1} parent=47 // pred_region
          %329 = dma.done %s322, 19456
        $region52: #{tpu_custom_call.1} parent=47 // pred_fallthru
          _
        // Predicated region
        $region53: #{tpu_custom_call.1} parent=47 // pred_check
          %p330 = pneg %p84
        $region54: #{tpu_custom_call.1} parent=47 // pred_check_branch
          %332 = sbr.rel (%p330) target = $region56
        $region55: #{tpu_custom_call.1} parent=47 // pred_region
          %333 = dma.done [#allocation9], 16384
        $region56: #{tpu_custom_call.1} parent=47 // pred_fallthru
          _
        // Predicated region
        $region57: #{tpu_custom_call.1} parent=47 // pred_check
          %p334 = pneg %p105
        $region58: #{tpu_custom_call.1} parent=47 // pred_check_branch
          %336 = sbr.rel (%p334) target = $region60
        $region59: #{tpu_custom_call.1} parent=47 // pred_region
          %337 = dma.done [#allocation9], 64
        $region60: #{tpu_custom_call.1} parent=47 // pred_fallthru
          _
        // Predicated region
        $region61: #{tpu_custom_call.1} parent=47 // pred_check
          %p338 = pneg %p147
        $region62: #{tpu_custom_call.1} parent=47 // pred_check_branch
          %340 = sbr.rel (%p338) target = $region64
        $region63: #{tpu_custom_call.1} parent=47 // pred_region
          %341 = dma.done [#allocation12], 64
        $region64: #{tpu_custom_call.1} parent=47 // pred_fallthru
          _
        // Predicated region
        $region65: #{tpu_custom_call.1} parent=47 // pred_check
          %p342 = pneg %p168
        $region66: #{tpu_custom_call.1} parent=47 // pred_check_branch
          %344 = sbr.rel (%p342) target = $region68
        $region67: #{tpu_custom_call.1} parent=47 // pred_region
          %345 = dma.done [#allocation12], 4096
        $region68: #{tpu_custom_call.1} parent=47 // pred_fallthru
          _
        %s346 = sand.u32 %s50, 1
        %s347 = scalar_lea.sflag [#allocation6], %s346
        %s348 = sand.u32 %s50, 1
        %s349 = smul.addr %s348, 1216
        %s350 = scalar_lea.vmem [#allocation5], %s349
        %p351 = pneg %p63
        %p352 = pneg %p60
        %p353 = pneg %p84
        %p354 = pneg %p81
        %p355 = pneg %p105
        %p356 = pneg %p102
        %p357 = pneg %p126
        %p358 = pneg %p123
        %p359 = pneg %p147
        %p360 = pneg %p144
        %p361 = pneg %p168
        %p362 = pneg %p165
        %p363 = pneg %p189
        %p364 = pneg %p186
        %p365 = pneg %p217
        %p366 = pneg %p214
        %s367 = sand.u32 %s204, 1
        %s368 = scalar_lea.sflag [#allocation7], %s367
        %s369 = sand.u32 %s204, 1
        %s370 = smul.addr %s369, 304
        %s371 = scalar_lea.vmem [#allocation14], %s370
        %s372 = ssub.s32 1, %s30
        %s373 = smul.u32 %s31, %s372
        %s374 = smul.u32 38, %s373
        %s375 = smul.u32 %s31, %s30
        %s376 = smul.u32 38, %s375
        %p378 = scmp.eq.s32.totalorder %s30, 0
        %p379 = scmp.eq.s32.totalorder %s31, 0
        %p380 = pnand %p378, %p379
        %p381 = pneg %p380
        // Predicated region
        $region69: #{tpu_custom_call.1} parent=47 // pred_check
          _
        $region70: #{tpu_custom_call.1} parent=47 // pred_check_branch
          %383 = sbr.rel (%p380) target = $region72
        $region71: #{tpu_custom_call.1} parent=47 // pred_region
          %v384 = vlaneseq
          %vm385 = vcmp.ge.s32.totalorder %v384, 0
          %vm386 = vcmp.lt.s32.totalorder %v384, 512
          %vm387 = vmand %vm385, %vm386
          %388 = vst.msk [vmem:[#allocation2] sm:$0xf] %vm387, 0.0
          %389 = vst.msk [vmem:[#allocation3] sm:$0xf] %vm387, 0.0
        $region72: #{tpu_custom_call.1} parent=47 // pred_fallthru
          _
        // Predicated region
        $region73: #{tpu_custom_call.1} parent=47 // pred_check
          %p390 = pneg %p378
        $region74: #{tpu_custom_call.1} parent=47 // pred_check_branch
          %392 = sbr.rel (%p390) target = $region76
        $region75: #{tpu_custom_call.1} parent=47 // pred_region
          %v393 = vld [vmem:[%s325] sm:$0xff]
          %v394 = vld [vmem:[%s325 + $0x8] sm:$0xff]
          %v395 = vld [vmem:[%s325 + $0x10] sm:$0xff]
          %v396 = vld [vmem:[%s325 + $0x18] sm:$0xff]
          %v397 = vld [vmem:[%s325 + $0x20] sm:$0xff]
          %v398 = vld [vmem:[%s325 + $0x28] sm:$0xff]
          %v399 = vld [vmem:[%s325 + $0x30] sm:$0xff]
          %v400 = vld [vmem:[%s325 + $0x38] sm:$0xff]
          %v401 = vld [vmem:[%s325 + $0x40] sm:$0xff]
          %v402 = vld [vmem:[%s325 + $0x48] sm:$0xff]
          %v403 = vld [vmem:[%s325 + $0x50] sm:$0xff]
          %v404 = vld [vmem:[%s325 + $0x58] sm:$0xff]
          %v405 = vld [vmem:[%s325 + $0x60] sm:$0xff]
          %v406 = vld [vmem:[%s325 + $0x68] sm:$0xff]
          %v407 = vld [vmem:[%s325 + $0x70] sm:$0xff]
          %v408 = vld [vmem:[%s325 + $0x78] sm:$0xff]
          %v409 = vld [vmem:[%s325 + $0x80] sm:$0xff]
          %v410 = vld [vmem:[%s325 + $0x88] sm:$0xff]
          %v411 = vld [vmem:[%s325 + $0x90] sm:$0xff]
          %v412 = vld [vmem:[%s325 + $0x98] sm:$0xff]
          %v413 = vld [vmem:[%s325 + $0xa0] sm:$0xff]
          %v414 = vld [vmem:[%s325 + $0xa8] sm:$0xff]
          %v415 = vld [vmem:[%s325 + $0xb0] sm:$0xff]
          %v416 = vld [vmem:[%s325 + $0xb8] sm:$0xff]
          %v417 = vld [vmem:[%s325 + $0xc0] sm:$0xff]
          %v418 = vld [vmem:[%s325 + $0xc8] sm:$0xff]
          %v419 = vld [vmem:[%s325 + $0xd0] sm:$0xff]
          %v420 = vld [vmem:[%s325 + $0xd8] sm:$0xff]
          %v421 = vld [vmem:[%s325 + $0xe0] sm:$0xff]
          %v422 = vld [vmem:[%s325 + $0xe8] sm:$0xff]
          %v423 = vld [vmem:[%s325 + $0xf0] sm:$0xff]
          %v424 = vld [vmem:[%s325 + $0xf8] sm:$0xff]
          %v425 = vld [vmem:[%s325 + $0x100] sm:$0xff]
          %v426 = vld [vmem:[%s325 + $0x108] sm:$0xff]
          %v427 = vld [vmem:[%s325 + $0x110] sm:$0xff]
          %v428 = vld [vmem:[%s325 + $0x118] sm:$0xff]
          %v429 = vld [vmem:[%s325 + $0x120] sm:$0xff]
          %v430 = vld [vmem:[%s325 + $0x128] sm:$0xff]
          %v431 = vld [vmem:[%s325 + $0x130] sm:$0xff]
          %v432 = vld [vmem:[%s325 + $0x138] sm:$0xff]
          %v433 = vld [vmem:[%s325 + $0x140] sm:$0xff]
          %v434 = vld [vmem:[%s325 + $0x148] sm:$0xff]
          %v435 = vld [vmem:[%s325 + $0x150] sm:$0xff]
          %v436 = vld [vmem:[%s325 + $0x158] sm:$0xff]
          %v437 = vld [vmem:[%s325 + $0x160] sm:$0xff]
          %v438 = vld [vmem:[%s325 + $0x168] sm:$0xff]
          %v439 = vld [vmem:[%s325 + $0x170] sm:$0xff]
          %v440 = vld [vmem:[%s325 + $0x178] sm:$0xff]
          %v441 = vld [vmem:[%s325 + $0x180] sm:$0xff]
          %v442 = vld [vmem:[%s325 + $0x188] sm:$0xff]
          %v443 = vld [vmem:[%s325 + $0x190] sm:$0xff]
          %v444 = vld [vmem:[%s325 + $0x198] sm:$0xff]
          %v445 = vld [vmem:[%s325 + $0x1a0] sm:$0xff]
          %v446 = vld [vmem:[%s325 + $0x1a8] sm:$0xff]
          %v447 = vld [vmem:[%s325 + $0x1b0] sm:$0xff]
          %v448 = vld [vmem:[%s325 + $0x1b8] sm:$0xff]
          %v449 = vld [vmem:[%s325 + $0x1c0] sm:$0xff]
          %v450 = vld [vmem:[%s325 + $0x1c8] sm:$0xff]
          %v451 = vld [vmem:[%s325 + $0x1d0] sm:$0xff]
          %v452 = vld [vmem:[%s325 + $0x1d8] sm:$0xff]
          %v453 = vld [vmem:[%s325 + $0x1e0] sm:$0xff]
          %v454 = vld [vmem:[%s325 + $0x1e8] sm:$0xff]
          %v455 = vld [vmem:[%s325 + $0x1f0] sm:$0xff]
          %v456 = vld [vmem:[%s325 + $0x1f8] sm:$0xff]
          %v457 = vld [vmem:[%s325 + $0x200] sm:$0xff]
          %v458 = vld [vmem:[%s325 + $0x208] sm:$0xff]
          %v459 = vld [vmem:[%s325 + $0x210] sm:$0xff]
          %v460 = vld [vmem:[%s325 + $0x218] sm:$0xff]
          %v461 = vld [vmem:[%s325 + $0x220] sm:$0xff]
          %v462 = vld [vmem:[%s325 + $0x228] sm:$0xff]
          %v463 = vld [vmem:[%s325 + $0x230] sm:$0xff]
          %v464 = vld [vmem:[%s325 + $0x238] sm:$0xff]
          %v465 = vld [vmem:[%s325 + $0x240] sm:$0xff]
          %v466 = vld [vmem:[%s325 + $0x248] sm:$0xff]
          %v467 = vld [vmem:[%s325 + $0x250] sm:$0xff]
          %v468 = vld [vmem:[%s325 + $0x258] sm:$0xff]
          %v469 = vld [vmem:[%s325 + $0x260] sm:$0xff]
          %v470 = vld [vmem:[%s325 + $0x268] sm:$0xff]
          %v471 = vld [vmem:[%s325 + $0x270] sm:$0xff]
          %v472 = vld [vmem:[%s325 + $0x278] sm:$0xff]
          %v473 = vld [vmem:[%s325 + $0x280] sm:$0xff]
          %v474 = vld [vmem:[%s325 + $0x288] sm:$0xff]
          %v475 = vld [vmem:[%s325 + $0x290] sm:$0xff]
          %v476 = vld [vmem:[%s325 + $0x298] sm:$0xff]
          %v477 = vld [vmem:[%s325 + $0x2a0] sm:$0xff]
          %v478 = vld [vmem:[%s325 + $0x2a8] sm:$0xff]
          %v479 = vld [vmem:[%s325 + $0x2b0] sm:$0xff]
          %v480 = vld [vmem:[%s325 + $0x2b8] sm:$0xff]
          %v481 = vld [vmem:[%s325 + $0x2c0] sm:$0xff]
          %v482 = vld [vmem:[%s325 + $0x2c8] sm:$0xff]
          %v483 = vld [vmem:[%s325 + $0x2d0] sm:$0xff]
          %v484 = vld [vmem:[%s325 + $0x2d8] sm:$0xff]
          %v485 = vld [vmem:[%s325 + $0x2e0] sm:$0xff]
          %v486 = vld [vmem:[%s325 + $0x2e8] sm:$0xff]
          %v487 = vld [vmem:[%s325 + $0x2f0] sm:$0xff]
          %v488 = vld [vmem:[%s325 + $0x2f8] sm:$0xff]
          %v489 = vld [vmem:[%s325 + $0x300] sm:$0xff]
          %v490 = vld [vmem:[%s325 + $0x308] sm:$0xff]
          %v491 = vld [vmem:[%s325 + $0x310] sm:$0xff]
          %v492 = vld [vmem:[%s325 + $0x318] sm:$0xff]
          %v493 = vld [vmem:[%s325 + $0x320] sm:$0xff]
          %v494 = vld [vmem:[%s325 + $0x328] sm:$0xff]
          %v495 = vld [vmem:[%s325 + $0x330] sm:$0xff]
          %v496 = vld [vmem:[%s325 + $0x338] sm:$0xff]
          %v497 = vld [vmem:[%s325 + $0x340] sm:$0xff]
          %v498 = vld [vmem:[%s325 + $0x348] sm:$0xff]
          %v499 = vld [vmem:[%s325 + $0x350] sm:$0xff]
          %v500 = vld [vmem:[%s325 + $0x358] sm:$0xff]
          %v501 = vld [vmem:[%s325 + $0x360] sm:$0xff]
          %v502 = vld [vmem:[%s325 + $0x368] sm:$0xff]
          %v503 = vld [vmem:[%s325 + $0x370] sm:$0xff]
          %v504 = vld [vmem:[%s325 + $0x378] sm:$0xff]
          %v505 = vld [vmem:[%s325 + $0x380] sm:$0xff]
          %v506 = vld [vmem:[%s325 + $0x388] sm:$0xff]
          %v507 = vld [vmem:[%s325 + $0x390] sm:$0xff]
          %v508 = vld [vmem:[%s325 + $0x398] sm:$0xff]
          %v509 = vld [vmem:[%s325 + $0x3a0] sm:$0xff]
          %v510 = vld [vmem:[%s325 + $0x3a8] sm:$0xff]
          %v511 = vld [vmem:[%s325 + $0x3b0] sm:$0xff]
          %v512 = vld [vmem:[%s325 + $0x3b8] sm:$0xff]
          %v513 = vld [vmem:[%s325 + $0x3c0] sm:$0xff]
          %v514 = vld [vmem:[%s325 + $0x3c8] sm:$0xff]
          %v515 = vld [vmem:[%s325 + $0x3d0] sm:$0xff]
          %v516 = vld [vmem:[%s325 + $0x3d8] sm:$0xff]
          %v517 = vld [vmem:[%s325 + $0x3e0] sm:$0xff]
          %v518 = vld [vmem:[%s325 + $0x3e8] sm:$0xff]
          %v519 = vld [vmem:[%s325 + $0x3f0] sm:$0xff]
          %v520 = vld [vmem:[%s325 + $0x3f8] sm:$0xff]
          %v521 = vld [vmem:[%s325 + $0x400] sm:$0xff]
          %v522 = vld [vmem:[%s325 + $0x408] sm:$0xff]
          %v523 = vld [vmem:[%s325 + $0x410] sm:$0xff]
          %v524 = vld [vmem:[%s325 + $0x418] sm:$0xff]
          %v525 = vld [vmem:[%s325 + $0x420] sm:$0xff]
          %v526 = vld [vmem:[%s325 + $0x428] sm:$0xff]
          %v527 = vld [vmem:[%s325 + $0x430] sm:$0xff]
          %v528 = vld [vmem:[%s325 + $0x438] sm:$0xff]
          %v529 = vld [vmem:[%s325 + $0x440] sm:$0xff]
          %v530 = vld [vmem:[%s325 + $0x448] sm:$0xff]
          %v531 = vld [vmem:[%s325 + $0x450] sm:$0xff]
          %v532 = vld [vmem:[%s325 + $0x458] sm:$0xff]
          %v533 = vld [vmem:[%s325 + $0x460] sm:$0xff]
          %v534 = vld [vmem:[%s325 + $0x468] sm:$0xff]
          %v535 = vld [vmem:[%s325 + $0x470] sm:$0xff]
          %v536 = vld [vmem:[%s325 + $0x478] sm:$0xff]
          %v537 = vld [vmem:[%s325 + $0x480] sm:$0xff]
          %v538 = vld [vmem:[%s325 + $0x488] sm:$0xff]
          %v539 = vld [vmem:[%s325 + $0x490] sm:$0xff]
          %v540 = vld [vmem:[%s325 + $0x498] sm:$0xff]
          %v541 = vld [vmem:[%s325 + $0x4a0] sm:$0xff]
          %v542 = vld [vmem:[%s325 + $0x4a8] sm:$0xff]
          %v543 = vld [vmem:[%s325 + $0x4b0] sm:$0xff]
          %v544 = vld [vmem:[%s325 + $0x4b8] sm:$0xff]
          %v545 = vpack.c.bf16 %v397, %v393
          %v546 = vpack.c.bf16 %v398, %v394
          %v547 = vpack.c.bf16 %v399, %v395
          %v548 = vpack.c.bf16 %v400, %v396
          %v549 = vpack.c.bf16 %v405, %v401
          %v550 = vpack.c.bf16 %v406, %v402
          %v551 = vpack.c.bf16 %v407, %v403
          %v552 = vpack.c.bf16 %v408, %v404
          %v553 = vpack.c.bf16 %v413, %v409
          %v554 = vpack.c.bf16 %v414, %v410
          %v555 = vpack.c.bf16 %v415, %v411
          %v556 = vpack.c.bf16 %v416, %v412
          %v557 = vpack.c.bf16 %v421, %v417
          %v558 = vpack.c.bf16 %v422, %v418
          %v559 = vpack.c.bf16 %v423, %v419
          %v560 = vpack.c.bf16 %v424, %v420
          %v561 = vpack.c.bf16 %v429, %v425
          %v562 = vpack.c.bf16 %v430, %v426
          %v563 = vpack.c.bf16 %v431, %v427
          %v564 = vpack.c.bf16 %v432, %v428
          %v565 = vpack.c.bf16 %v437, %v433
          %v566 = vpack.c.bf16 %v438, %v434
          %v567 = vpack.c.bf16 %v439, %v435
          %v568 = vpack.c.bf16 %v440, %v436
          %v569 = vpack.c.bf16 %v445, %v441
          %v570 = vpack.c.bf16 %v446, %v442
          %v571 = vpack.c.bf16 %v447, %v443
          %v572 = vpack.c.bf16 %v448, %v444
          %v573 = vpack.c.bf16 %v453, %v449
          %v574 = vpack.c.bf16 %v454, %v450
          %v575 = vpack.c.bf16 %v455, %v451
          %v576 = vpack.c.bf16 %v456, %v452
          %v577 = vpack.c.bf16 %v461, %v457
          %v578 = vpack.c.bf16 %v462, %v458
          %v579 = vpack.c.bf16 %v463, %v459
          %v580 = vpack.c.bf16 %v464, %v460
          %v581 = vpack.c.bf16 %v469, %v465
          %v582 = vpack.c.bf16 %v470, %v466
          %v583 = vpack.c.bf16 %v471, %v467
          %v584 = vpack.c.bf16 %v472, %v468
          %v585 = vpack.c.bf16 %v477, %v473
          %v586 = vpack.c.bf16 %v478, %v474
          %v587 = vpack.c.bf16 %v479, %v475
          %v588 = vpack.c.bf16 %v480, %v476
          %v589 = vpack.c.bf16 %v485, %v481
          %v590 = vpack.c.bf16 %v486, %v482
          %v591 = vpack.c.bf16 %v487, %v483
          %v592 = vpack.c.bf16 %v488, %v484
          %v593 = vpack.c.bf16 %v493, %v489
          %v594 = vpack.c.bf16 %v494, %v490
          %v595 = vpack.c.bf16 %v495, %v491
          %v596 = vpack.c.bf16 %v496, %v492
          %v597 = vpack.c.bf16 %v501, %v497
          %v598 = vpack.c.bf16 %v502, %v498
          %v599 = vpack.c.bf16 %v503, %v499
          %v600 = vpack.c.bf16 %v504, %v500
          %v601 = vpack.c.bf16 %v509, %v505
          %v602 = vpack.c.bf16 %v510, %v506
          %v603 = vpack.c.bf16 %v511, %v507
          %v604 = vpack.c.bf16 %v512, %v508
          %v605 = vpack.c.bf16 %v517, %v513
          %v606 = vpack.c.bf16 %v518, %v514
          %v607 = vpack.c.bf16 %v519, %v515
          %v608 = vpack.c.bf16 %v520, %v516
          %v609 = vpack.c.bf16 %v525, %v521
          %v610 = vpack.c.bf16 %v526, %v522
          %v611 = vpack.c.bf16 %v527, %v523
          %v612 = vpack.c.bf16 %v528, %v524
          %v613 = vpack.c.bf16 %v533, %v529
          %v614 = vpack.c.bf16 %v534, %v530
          %v615 = vpack.c.bf16 %v535, %v531
          %v616 = vpack.c.bf16 %v536, %v532
          %v617 = vpack.c.bf16 %v541, %v537
          %v618 = vpack.c.bf16 %v542, %v538
          %v619 = vpack.c.bf16 %v543, %v539
          %v620 = vpack.c.bf16 %v544, %v540
          %v621 = vld [vmem:[#allocation8] sm:$0xff]
          %v622 = vld [vmem:[#allocation8 + $0x8] sm:$0xff]
          %v623 = vld [vmem:[#allocation8 + $0x10] sm:$0xff]
          %v624 = vld [vmem:[#allocation8 + $0x18] sm:$0xff]
          %v625 = vld [vmem:[#allocation8 + $0x20] sm:$0xff]
          %v626 = vld [vmem:[#allocation8 + $0x28] sm:$0xff]
          %v627 = vld [vmem:[#allocation8 + $0x30] sm:$0xff]
          %v628 = vld [vmem:[#allocation8 + $0x38] sm:$0xff]
          %v629 = vld [vmem:[#allocation8 + $0x40] sm:$0xff]
          %v630 = vld [vmem:[#allocation8 + $0x48] sm:$0xff]
          %v631 = vld [vmem:[#allocation8 + $0x50] sm:$0xff]
          %v632 = vld [vmem:[#allocation8 + $0x58] sm:$0xff]
          %v633 = vld [vmem:[#allocation8 + $0x60] sm:$0xff]
          %v634 = vld [vmem:[#allocation8 + $0x68] sm:$0xff]
          %v635 = vld [vmem:[#allocation8 + $0x70] sm:$0xff]
          %v636 = vld [vmem:[#allocation8 + $0x78] sm:$0xff]
          %v637 = vld [vmem:[#allocation8 + $0x80] sm:$0xff]
          %v638 = vld [vmem:[#allocation8 + $0x88] sm:$0xff]
          %v639 = vld [vmem:[#allocation8 + $0x90] sm:$0xff]
          %v640 = vld [vmem:[#allocation8 + $0x98] sm:$0xff]
          %v641 = vld [vmem:[#allocation8 + $0xa0] sm:$0xff]
          %v642 = vld [vmem:[#allocation8 + $0xa8] sm:$0xff]
          %v643 = vld [vmem:[#allocation8 + $0xb0] sm:$0xff]
          %v644 = vld [vmem:[#allocation8 + $0xb8] sm:$0xff]
          %v645 = vld [vmem:[#allocation8 + $0xc0] sm:$0xff]
          %v646 = vld [vmem:[#allocation8 + $0xc8] sm:$0xff]
          %v647 = vld [vmem:[#allocation8 + $0xd0] sm:$0xff]
          %v648 = vld [vmem:[#allocation8 + $0xd8] sm:$0xff]
          %v649 = vld [vmem:[#allocation8 + $0xe0] sm:$0xff]
          %v650 = vld [vmem:[#allocation8 + $0xe8] sm:$0xff]
          %v651 = vld [vmem:[#allocation8 + $0xf0] sm:$0xff]
          %v652 = vld [vmem:[#allocation8 + $0xf8] sm:$0xff]
          %v653 = vld [vmem:[#allocation8 + $0x100] sm:$0xff]
          %v654 = vld [vmem:[#allocation8 + $0x108] sm:$0xff]
          %v655 = vld [vmem:[#allocation8 + $0x110] sm:$0xff]
          %v656 = vld [vmem:[#allocation8 + $0x118] sm:$0xff]
          %v657 = vld [vmem:[#allocation8 + $0x120] sm:$0xff]
          %v658 = vld [vmem:[#allocation8 + $0x128] sm:$0xff]
          %v659 = vld [vmem:[#allocation8 + $0x130] sm:$0xff]
          %v660 = vld [vmem:[#allocation8 + $0x138] sm:$0xff]
          %v661 = vld [vmem:[#allocation8 + $0x140] sm:$0xff]
          %v662 = vld [vmem:[#allocation8 + $0x148] sm:$0xff]
          %v663 = vld [vmem:[#allocation8 + $0x150] sm:$0xff]
          %v664 = vld [vmem:[#allocation8 + $0x158] sm:$0xff]
          %v665 = vld [vmem:[#allocation8 + $0x160] sm:$0xff]
          %v666 = vld [vmem:[#allocation8 + $0x168] sm:$0xff]
          %v667 = vld [vmem:[#allocation8 + $0x170] sm:$0xff]
          %v668 = vld [vmem:[#allocation8 + $0x178] sm:$0xff]
          %v669 = vld [vmem:[#allocation8 + $0x180] sm:$0xff]
          %v670 = vld [vmem:[#allocation8 + $0x188] sm:$0xff]
          %v671 = vld [vmem:[#allocation8 + $0x190] sm:$0xff]
          %v672 = vld [vmem:[#allocation8 + $0x198] sm:$0xff]
          %v673 = vld [vmem:[#allocation8 + $0x1a0] sm:$0xff]
          %v674 = vld [vmem:[#allocation8 + $0x1a8] sm:$0xff]
          %v675 = vld [vmem:[#allocation8 + $0x1b0] sm:$0xff]
          %v676 = vld [vmem:[#allocation8 + $0x1b8] sm:$0xff]
          %v677 = vld [vmem:[#allocation8 + $0x1c0] sm:$0xff]
          %v678 = vld [vmem:[#allocation8 + $0x1c8] sm:$0xff]
          %v679 = vld [vmem:[#allocation8 + $0x1d0] sm:$0xff]
          %v680 = vld [vmem:[#allocation8 + $0x1d8] sm:$0xff]
          %v681 = vld [vmem:[#allocation8 + $0x1e0] sm:$0xff]
          %v682 = vld [vmem:[#allocation8 + $0x1e8] sm:$0xff]
          %v683 = vld [vmem:[#allocation8 + $0x1f0] sm:$0xff]
          %v684 = vld [vmem:[#allocation8 + $0x1f8] sm:$0xff]
          %v685 = vld [vmem:[#allocation8 + $0x200] sm:$0xff]
          %v686 = vld [vmem:[#allocation8 + $0x208] sm:$0xff]
          %v687 = vld [vmem:[#allocation8 + $0x210] sm:$0xff]
          %v688 = vld [vmem:[#allocation8 + $0x218] sm:$0xff]
          %v689 = vld [vmem:[#allocation8 + $0x220] sm:$0xff]
          %v690 = vld [vmem:[#allocation8 + $0x228] sm:$0xff]
          %v691 = vld [vmem:[#allocation8 + $0x230] sm:$0xff]
          %v692 = vld [vmem:[#allocation8 + $0x238] sm:$0xff]
          %v693 = vld [vmem:[#allocation8 + $0x240] sm:$0xff]
          %v694 = vld [vmem:[#allocation8 + $0x248] sm:$0xff]
          %v695 = vld [vmem:[#allocation8 + $0x250] sm:$0xff]
          %v696 = vld [vmem:[#allocation8 + $0x258] sm:$0xff]
          %v697 = vld [vmem:[#allocation8 + $0x260] sm:$0xff]
          %v698 = vld [vmem:[#allocation8 + $0x268] sm:$0xff]
          %v699 = vld [vmem:[#allocation8 + $0x270] sm:$0xff]
          %v700 = vld [vmem:[#allocation8 + $0x278] sm:$0xff]
          %v701 = vld [vmem:[#allocation8 + $0x280] sm:$0xff]
          %v702 = vld [vmem:[#allocation8 + $0x288] sm:$0xff]
          %v703 = vld [vmem:[#allocation8 + $0x290] sm:$0xff]
          %v704 = vld [vmem:[#allocation8 + $0x298] sm:$0xff]
          %v705 = vld [vmem:[#allocation8 + $0x2a0] sm:$0xff]
          %v706 = vld [vmem:[#allocation8 + $0x2a8] sm:$0xff]
          %v707 = vld [vmem:[#allocation8 + $0x2b0] sm:$0xff]
          %v708 = vld [vmem:[#allocation8 + $0x2b8] sm:$0xff]
          %v709 = vld [vmem:[#allocation8 + $0x2c0] sm:$0xff]
          %v710 = vld [vmem:[#allocation8 + $0x2c8] sm:$0xff]
          %v711 = vld [vmem:[#allocation8 + $0x2d0] sm:$0xff]
          %v712 = vld [vmem:[#allocation8 + $0x2d8] sm:$0xff]
          %v713 = vld [vmem:[#allocation8 + $0x2e0] sm:$0xff]
          %v714 = vld [vmem:[#allocation8 + $0x2e8] sm:$0xff]
          %v715 = vld [vmem:[#allocation8 + $0x2f0] sm:$0xff]
          %v716 = vld [vmem:[#allocation8 + $0x2f8] sm:$0xff]
          %v717 = vld [vmem:[#allocation8 + $0x300] sm:$0xff]
          %v718 = vld [vmem:[#allocation8 + $0x308] sm:$0xff]
          %v719 = vld [vmem:[#allocation8 + $0x310] sm:$0xff]
          %v720 = vld [vmem:[#allocation8 + $0x318] sm:$0xff]
          %v721 = vld [vmem:[#allocation8 + $0x320] sm:$0xff]
          %v722 = vld [vmem:[#allocation8 + $0x328] sm:$0xff]
          %v723 = vld [vmem:[#allocation8 + $0x330] sm:$0xff]
          %v724 = vld [vmem:[#allocation8 + $0x338] sm:$0xff]
          %v725 = vld [vmem:[#allocation8 + $0x340] sm:$0xff]
          %v726 = vld [vmem:[#allocation8 + $0x348] sm:$0xff]
          %v727 = vld [vmem:[#allocation8 + $0x350] sm:$0xff]
          %v728 = vld [vmem:[#allocation8 + $0x358] sm:$0xff]
          %v729 = vld [vmem:[#allocation8 + $0x360] sm:$0xff]
          %v730 = vld [vmem:[#allocation8 + $0x368] sm:$0xff]
          %v731 = vld [vmem:[#allocation8 + $0x370] sm:$0xff]
          %v732 = vld [vmem:[#allocation8 + $0x378] sm:$0xff]
          %v733 = vld [vmem:[#allocation8 + $0x380] sm:$0xff]
          %v734 = vld [vmem:[#allocation8 + $0x388] sm:$0xff]
          %v735 = vld [vmem:[#allocation8 + $0x390] sm:$0xff]
          %v736 = vld [vmem:[#allocation8 + $0x398] sm:$0xff]
          %v737 = vld [vmem:[#allocation8 + $0x3a0] sm:$0xff]
          %v738 = vld [vmem:[#allocation8 + $0x3a8] sm:$0xff]
          %v739 = vld [vmem:[#allocation8 + $0x3b0] sm:$0xff]
          %v740 = vld [vmem:[#allocation8 + $0x3b8] sm:$0xff]
          %v741 = vld [vmem:[#allocation8 + $0x3c0] sm:$0xff]
          %v742 = vld [vmem:[#allocation8 + $0x3c8] sm:$0xff]
          %v743 = vld [vmem:[#allocation8 + $0x3d0] sm:$0xff]
          %v744 = vld [vmem:[#allocation8 + $0x3d8] sm:$0xff]
          %v745 = vld [vmem:[#allocation8 + $0x3e0] sm:$0xff]
          %v746 = vld [vmem:[#allocation8 + $0x3e8] sm:$0xff]
          %v747 = vld [vmem:[#allocation8 + $0x3f0] sm:$0xff]
          %v748 = vld [vmem:[#allocation8 + $0x3f8] sm:$0xff]
          %v749 = vld [vmem:[#allocation10] sm:$0xf]
          %v751 = vlaneseq
          %v752 = vshrl.u32 %v751, 7
          %v753 = vsub.s32 0, %v752
          %v754 = vrot.slane %v749, %v753
          %v755 = vlaneseq
          %v756 = vshrl.u32 %v755, 7
          %v757 = vsub.s32 1, %v756
          %v758 = vrot.slane %v749, %v757
          %v759 = vlaneseq
          %v760 = vshrl.u32 %v759, 7
          %v761 = vsub.s32 2, %v760
          %v762 = vrot.slane %v749, %v761
          %v763 = vlaneseq
          %v764 = vshrl.u32 %v763, 7
          %v765 = vsub.s32 3, %v764
          %v766 = vrot.slane %v749, %v765
          %v899 = vunpack.c.l.b16 %v621
          %v900 = vunpack.c.h.b16 %v621
          %v901 = vunpack.c.l.b16 %v622
          %v902 = vunpack.c.h.b16 %v622
          %v903 = vunpack.c.l.b16 %v623
          %v904 = vunpack.c.h.b16 %v623
          %v905 = vunpack.c.l.b16 %v624
          %v906 = vunpack.c.h.b16 %v624
          %v907 = vunpack.c.l.b16 %v625
          %v908 = vunpack.c.h.b16 %v625
          %v909 = vunpack.c.l.b16 %v626
          %v910 = vunpack.c.h.b16 %v626
          %v911 = vunpack.c.l.b16 %v627
          %v912 = vunpack.c.h.b16 %v627
          %v913 = vunpack.c.l.b16 %v628
          %v914 = vunpack.c.h.b16 %v628
          %v915 = vunpack.c.l.b16 %v629
          %v916 = vunpack.c.h.b16 %v629
          %v917 = vunpack.c.l.b16 %v630
          %v918 = vunpack.c.h.b16 %v630
          %v919 = vunpack.c.l.b16 %v631
          %v920 = vunpack.c.h.b16 %v631
          %v921 = vunpack.c.l.b16 %v632
          %v922 = vunpack.c.h.b16 %v632
          %v923 = vunpack.c.l.b16 %v633
          %v924 = vunpack.c.h.b16 %v633
          %v925 = vunpack.c.l.b16 %v634
          %v926 = vunpack.c.h.b16 %v634
          %v927 = vunpack.c.l.b16 %v635
          %v928 = vunpack.c.h.b16 %v635
          %v929 = vunpack.c.l.b16 %v636
          %v930 = vunpack.c.h.b16 %v636
          %v931 = vunpack.c.l.b16 %v637
          %v932 = vunpack.c.h.b16 %v637
          %v933 = vunpack.c.l.b16 %v638
          %v934 = vunpack.c.h.b16 %v638
          %v935 = vunpack.c.l.b16 %v639
          %v936 = vunpack.c.h.b16 %v639
          %v937 = vunpack.c.l.b16 %v640
          %v938 = vunpack.c.h.b16 %v640
          %v939 = vunpack.c.l.b16 %v641
          %v940 = vunpack.c.h.b16 %v641
          %v941 = vunpack.c.l.b16 %v642
          %v942 = vunpack.c.h.b16 %v642
          %v943 = vunpack.c.l.b16 %v643
          %v944 = vunpack.c.h.b16 %v643
          %v945 = vunpack.c.l.b16 %v644
          %v946 = vunpack.c.h.b16 %v644
          %v947 = vunpack.c.l.b16 %v645
          %v948 = vunpack.c.h.b16 %v645
          %v949 = vunpack.c.l.b16 %v646
          %v950 = vunpack.c.h.b16 %v646
          %v951 = vunpack.c.l.b16 %v647
          %v952 = vunpack.c.h.b16 %v647
          %v953 = vunpack.c.l.b16 %v648
          %v954 = vunpack.c.h.b16 %v648
          %v955 = vunpack.c.l.b16 %v649
          %v956 = vunpack.c.h.b16 %v649
          %v957 = vunpack.c.l.b16 %v650
          %v958 = vunpack.c.h.b16 %v650
          %v959 = vunpack.c.l.b16 %v651
          %v960 = vunpack.c.h.b16 %v651
          %v961 = vunpack.c.l.b16 %v652
          %v962 = vunpack.c.h.b16 %v652
          %v963 = vunpack.c.l.b16 %v653
          %v964 = vunpack.c.h.b16 %v653
          %v965 = vunpack.c.l.b16 %v654
          %v966 = vunpack.c.h.b16 %v654
          %v967 = vunpack.c.l.b16 %v655
          %v968 = vunpack.c.h.b16 %v655
          %v969 = vunpack.c.l.b16 %v656
          %v970 = vunpack.c.h.b16 %v656
          %v971 = vunpack.c.l.b16 %v657
          %v972 = vunpack.c.h.b16 %v657
          %v973 = vunpack.c.l.b16 %v658
          %v974 = vunpack.c.h.b16 %v658
          %v975 = vunpack.c.l.b16 %v659
          %v976 = vunpack.c.h.b16 %v659
          %v977 = vunpack.c.l.b16 %v660
          %v978 = vunpack.c.h.b16 %v660
          %v979 = vunpack.c.l.b16 %v661
          %v980 = vunpack.c.h.b16 %v661
          %v981 = vunpack.c.l.b16 %v662
          %v982 = vunpack.c.h.b16 %v662
          %v983 = vunpack.c.l.b16 %v663
          %v984 = vunpack.c.h.b16 %v663
          %v985 = vunpack.c.l.b16 %v664
          %v986 = vunpack.c.h.b16 %v664
          %v987 = vunpack.c.l.b16 %v665
          %v988 = vunpack.c.h.b16 %v665
          %v989 = vunpack.c.l.b16 %v666
          %v990 = vunpack.c.h.b16 %v666
          %v991 = vunpack.c.l.b16 %v667
          %v992 = vunpack.c.h.b16 %v667
          %v993 = vunpack.c.l.b16 %v668
          %v994 = vunpack.c.h.b16 %v668
          %v995 = vunpack.c.l.b16 %v669
          %v996 = vunpack.c.h.b16 %v669
          %v997 = vunpack.c.l.b16 %v670
          %v998 = vunpack.c.h.b16 %v670
          %v999 = vunpack.c.l.b16 %v671
          %v1000 = vunpack.c.h.b16 %v671
          %v1001 = vunpack.c.l.b16 %v672
          %v1002 = vunpack.c.h.b16 %v672
          %v1003 = vunpack.c.l.b16 %v673
          %v1004 = vunpack.c.h.b16 %v673
          %v1005 = vunpack.c.l.b16 %v674
          %v1006 = vunpack.c.h.b16 %v674
          %v1007 = vunpack.c.l.b16 %v675
          %v1008 = vunpack.c.h.b16 %v675
          %v1009 = vunpack.c.l.b16 %v676
          %v1010 = vunpack.c.h.b16 %v676
          %v1011 = vunpack.c.l.b16 %v677
          %v1012 = vunpack.c.h.b16 %v677
          %v1013 = vunpack.c.l.b16 %v678
          %v1014 = vunpack.c.h.b16 %v678
          %v1015 = vunpack.c.l.b16 %v679
          %v1016 = vunpack.c.h.b16 %v679
          %v1017 = vunpack.c.l.b16 %v680
          %v1018 = vunpack.c.h.b16 %v680
          %v1019 = vunpack.c.l.b16 %v681
          %v1020 = vunpack.c.h.b16 %v681
          %v1021 = vunpack.c.l.b16 %v682
          %v1022 = vunpack.c.h.b16 %v682
          %v1023 = vunpack.c.l.b16 %v683
          %v1024 = vunpack.c.h.b16 %v683
          %v1025 = vunpack.c.l.b16 %v684
          %v1026 = vunpack.c.h.b16 %v684
          %v1027 = vunpack.c.l.b16 %v685
          %v1028 = vunpack.c.h.b16 %v685
          %v1029 = vunpack.c.l.b16 %v686
          %v1030 = vunpack.c.h.b16 %v686
          %v1031 = vunpack.c.l.b16 %v687
          %v1032 = vunpack.c.h.b16 %v687
          %v1033 = vunpack.c.l.b16 %v688
          %v1034 = vunpack.c.h.b16 %v688
          %v1035 = vunpack.c.l.b16 %v689
          %v1036 = vunpack.c.h.b16 %v689
          %v1037 = vunpack.c.l.b16 %v690
          %v1038 = vunpack.c.h.b16 %v690
          %v1039 = vunpack.c.l.b16 %v691
          %v1040 = vunpack.c.h.b16 %v691
          %v1041 = vunpack.c.l.b16 %v692
          %v1042 = vunpack.c.h.b16 %v692
          %v1043 = vunpack.c.l.b16 %v693
          %v1044 = vunpack.c.h.b16 %v693
          %v1045 = vunpack.c.l.b16 %v694
          %v1046 = vunpack.c.h.b16 %v694
          %v1047 = vunpack.c.l.b16 %v695
          %v1048 = vunpack.c.h.b16 %v695
          %v1049 = vunpack.c.l.b16 %v696
          %v1050 = vunpack.c.h.b16 %v696
          %v1051 = vunpack.c.l.b16 %v697
          %v1052 = vunpack.c.h.b16 %v697
          %v1053 = vunpack.c.l.b16 %v698
          %v1054 = vunpack.c.h.b16 %v698
          %v1055 = vunpack.c.l.b16 %v699
          %v1056 = vunpack.c.h.b16 %v699
          %v1057 = vunpack.c.l.b16 %v700
          %v1058 = vunpack.c.h.b16 %v700
          %v1059 = vunpack.c.l.b16 %v701
          %v1060 = vunpack.c.h.b16 %v701
          %v1061 = vunpack.c.l.b16 %v702
          %v1062 = vunpack.c.h.b16 %v702
          %v1063 = vunpack.c.l.b16 %v703
          %v1064 = vunpack.c.h.b16 %v703
          %v1065 = vunpack.c.l.b16 %v704
          %v1066 = vunpack.c.h.b16 %v704
          %v1067 = vunpack.c.l.b16 %v705
          %v1068 = vunpack.c.h.b16 %v705
          %v1069 = vunpack.c.l.b16 %v706
          %v1070 = vunpack.c.h.b16 %v706
          %v1071 = vunpack.c.l.b16 %v707
          %v1072 = vunpack.c.h.b16 %v707
          %v1073 = vunpack.c.l.b16 %v708
          %v1074 = vunpack.c.h.b16 %v708
          %v1075 = vunpack.c.l.b16 %v709
          %v1076 = vunpack.c.h.b16 %v709
          %v1077 = vunpack.c.l.b16 %v710
          %v1078 = vunpack.c.h.b16 %v710
          %v1079 = vunpack.c.l.b16 %v711
          %v1080 = vunpack.c.h.b16 %v711
          %v1081 = vunpack.c.l.b16 %v712
          %v1082 = vunpack.c.h.b16 %v712
          %v1083 = vunpack.c.l.b16 %v713
          %v1084 = vunpack.c.h.b16 %v713
          %v1085 = vunpack.c.l.b16 %v714
          %v1086 = vunpack.c.h.b16 %v714
          %v1087 = vunpack.c.l.b16 %v715
          %v1088 = vunpack.c.h.b16 %v715
          %v1089 = vunpack.c.l.b16 %v716
          %v1090 = vunpack.c.h.b16 %v716
          %v1091 = vunpack.c.l.b16 %v717
          %v1092 = vunpack.c.h.b16 %v717
          %v1093 = vunpack.c.l.b16 %v718
          %v1094 = vunpack.c.h.b16 %v718
          %v1095 = vunpack.c.l.b16 %v719
          %v1096 = vunpack.c.h.b16 %v719
          %v1097 = vunpack.c.l.b16 %v720
          %v1098 = vunpack.c.h.b16 %v720
          %v1099 = vunpack.c.l.b16 %v721
          %v1100 = vunpack.c.h.b16 %v721
          %v1101 = vunpack.c.l.b16 %v722
          %v1102 = vunpack.c.h.b16 %v722
          %v1103 = vunpack.c.l.b16 %v723
          %v1104 = vunpack.c.h.b16 %v723
          %v1105 = vunpack.c.l.b16 %v724
          %v1106 = vunpack.c.h.b16 %v724
          %v1107 = vunpack.c.l.b16 %v725
          %v1108 = vunpack.c.h.b16 %v725
          %v1109 = vunpack.c.l.b16 %v726
          %v1110 = vunpack.c.h.b16 %v726
          %v1111 = vunpack.c.l.b16 %v727
          %v1112 = vunpack.c.h.b16 %v727
          %v1113 = vunpack.c.l.b16 %v728
          %v1114 = vunpack.c.h.b16 %v728
          %v1115 = vunpack.c.l.b16 %v729
          %v1116 = vunpack.c.h.b16 %v729
          %v1117 = vunpack.c.l.b16 %v730
          %v1118 = vunpack.c.h.b16 %v730
          %v1119 = vunpack.c.l.b16 %v731
          %v1120 = vunpack.c.h.b16 %v731
          %v1121 = vunpack.c.l.b16 %v732
          %v1122 = vunpack.c.h.b16 %v732
          %v1123 = vunpack.c.l.b16 %v733
          %v1124 = vunpack.c.h.b16 %v733
          %v1125 = vunpack.c.l.b16 %v734
          %v1126 = vunpack.c.h.b16 %v734
          %v1127 = vunpack.c.l.b16 %v735
          %v1128 = vunpack.c.h.b16 %v735
          %v1129 = vunpack.c.l.b16 %v736
          %v1130 = vunpack.c.h.b16 %v736
          %v1131 = vunpack.c.l.b16 %v737
          %v1132 = vunpack.c.h.b16 %v737
          %v1133 = vunpack.c.l.b16 %v738
          %v1134 = vunpack.c.h.b16 %v738
          %v1135 = vunpack.c.l.b16 %v739
          %v1136 = vunpack.c.h.b16 %v739
          %v1137 = vunpack.c.l.b16 %v740
          %v1138 = vunpack.c.h.b16 %v740
          %v1139 = vunpack.c.l.b16 %v741
          %v1140 = vunpack.c.h.b16 %v741
          %v1141 = vunpack.c.l.b16 %v742
          %v1142 = vunpack.c.h.b16 %v742
          %v1143 = vunpack.c.l.b16 %v743
          %v1144 = vunpack.c.h.b16 %v743
          %v1145 = vunpack.c.l.b16 %v744
          %v1146 = vunpack.c.h.b16 %v744
          %v1147 = vunpack.c.l.b16 %v745
          %v1148 = vunpack.c.h.b16 %v745
          %v1149 = vunpack.c.l.b16 %v746
          %v1150 = vunpack.c.h.b16 %v746
          %v1151 = vunpack.c.l.b16 %v747
          %v1152 = vunpack.c.h.b16 %v747
          %v1153 = vunpack.c.l.b16 %v748
          %v1154 = vunpack.c.h.b16 %v748
          %v1155 = vpack.c.b16 %v903, %v899
          %v1156 = vpack.c.b16 %v904, %v900
          %v1157 = vpack.c.b16 %v905, %v901
          %v1158 = vpack.c.b16 %v906, %v902
          %v1159 = vpack.c.b16 %v911, %v907
          %v1160 = vpack.c.b16 %v912, %v908
          %v1161 = vpack.c.b16 %v913, %v909
          %v1162 = vpack.c.b16 %v914, %v910
          %v1163 = vpack.c.b16 %v919, %v915
          %v1164 = vpack.c.b16 %v920, %v916
          %v1165 = vpack.c.b16 %v921, %v917
          %v1166 = vpack.c.b16 %v922, %v918
          %v1167 = vpack.c.b16 %v927, %v923
          %v1168 = vpack.c.b16 %v928, %v924
          %v1169 = vpack.c.b16 %v929, %v925
          %v1170 = vpack.c.b16 %v930, %v926
          %v1171 = vpack.c.b16 %v935, %v931
          %v1172 = vpack.c.b16 %v936, %v932
          %v1173 = vpack.c.b16 %v937, %v933
          %v1174 = vpack.c.b16 %v938, %v934
          %v1175 = vpack.c.b16 %v943, %v939
          %v1176 = vpack.c.b16 %v944, %v940
          %v1177 = vpack.c.b16 %v945, %v941
          %v1178 = vpack.c.b16 %v946, %v942
          %v1179 = vpack.c.b16 %v951, %v947
          %v1180 = vpack.c.b16 %v952, %v948
          %v1181 = vpack.c.b16 %v953, %v949
          %v1182 = vpack.c.b16 %v954, %v950
          %v1183 = vpack.c.b16 %v959, %v955
          %v1184 = vpack.c.b16 %v960, %v956
          %v1185 = vpack.c.b16 %v961, %v957
          %v1186 = vpack.c.b16 %v962, %v958
          %v1187 = vpack.c.b16 %v967, %v963
          %v1188 = vpack.c.b16 %v968, %v964
          %v1189 = vpack.c.b16 %v969, %v965
          %v1190 = vpack.c.b16 %v970, %v966
          %v1191 = vpack.c.b16 %v975, %v971
          %v1192 = vpack.c.b16 %v976, %v972
          %v1193 = vpack.c.b16 %v977, %v973
          %v1194 = vpack.c.b16 %v978, %v974
          %v1195 = vpack.c.b16 %v983, %v979
          %v1196 = vpack.c.b16 %v984, %v980
          %v1197 = vpack.c.b16 %v985, %v981
          %v1198 = vpack.c.b16 %v986, %v982
          %v1199 = vpack.c.b16 %v991, %v987
          %v1200 = vpack.c.b16 %v992, %v988
          %v1201 = vpack.c.b16 %v993, %v989
          %v1202 = vpack.c.b16 %v994, %v990
          %v1203 = vpack.c.b16 %v999, %v995
          %v1204 = vpack.c.b16 %v1000, %v996
          %v1205 = vpack.c.b16 %v1001, %v997
          %v1206 = vpack.c.b16 %v1002, %v998
          %v1207 = vpack.c.b16 %v1007, %v1003
          %v1208 = vpack.c.b16 %v1008, %v1004
          %v1209 = vpack.c.b16 %v1009, %v1005
          %v1210 = vpack.c.b16 %v1010, %v1006
          %v1211 = vpack.c.b16 %v1015, %v1011
          %v1212 = vpack.c.b16 %v1016, %v1012
          %v1213 = vpack.c.b16 %v1017, %v1013
          %v1214 = vpack.c.b16 %v1018, %v1014
          %v1215 = vpack.c.b16 %v1023, %v1019
          %v1216 = vpack.c.b16 %v1024, %v1020
          %v1217 = vpack.c.b16 %v1025, %v1021
          %v1218 = vpack.c.b16 %v1026, %v1022
          %v1219 = vpack.c.b16 %v1031, %v1027
          %v1220 = vpack.c.b16 %v1032, %v1028
          %v1221 = vpack.c.b16 %v1033, %v1029
          %v1222 = vpack.c.b16 %v1034, %v1030
          %v1223 = vpack.c.b16 %v1039, %v1035
          %v1224 = vpack.c.b16 %v1040, %v1036
          %v1225 = vpack.c.b16 %v1041, %v1037
          %v1226 = vpack.c.b16 %v1042, %v1038
          %v1227 = vpack.c.b16 %v1047, %v1043
          %v1228 = vpack.c.b16 %v1048, %v1044
          %v1229 = vpack.c.b16 %v1049, %v1045
          %v1230 = vpack.c.b16 %v1050, %v1046
          %v1231 = vpack.c.b16 %v1055, %v1051
          %v1232 = vpack.c.b16 %v1056, %v1052
          %v1233 = vpack.c.b16 %v1057, %v1053
          %v1234 = vpack.c.b16 %v1058, %v1054
          %v1235 = vpack.c.b16 %v1063, %v1059
          %v1236 = vpack.c.b16 %v1064, %v1060
          %v1237 = vpack.c.b16 %v1065, %v1061
          %v1238 = vpack.c.b16 %v1066, %v1062
          %v1239 = vpack.c.b16 %v1071, %v1067
          %v1240 = vpack.c.b16 %v1072, %v1068
          %v1241 = vpack.c.b16 %v1073, %v1069
          %v1242 = vpack.c.b16 %v1074, %v1070
          %v1243 = vpack.c.b16 %v1079, %v1075
          %v1244 = vpack.c.b16 %v1080, %v1076
          %v1245 = vpack.c.b16 %v1081, %v1077
          %v1246 = vpack.c.b16 %v1082, %v1078
          %v1247 = vpack.c.b16 %v1087, %v1083
          %v1248 = vpack.c.b16 %v1088, %v1084
          %v1249 = vpack.c.b16 %v1089, %v1085
          %v1250 = vpack.c.b16 %v1090, %v1086
          %v1251 = vpack.c.b16 %v1095, %v1091
          %v1252 = vpack.c.b16 %v1096, %v1092
          %v1253 = vpack.c.b16 %v1097, %v1093
          %v1254 = vpack.c.b16 %v1098, %v1094
          %v1255 = vpack.c.b16 %v1103, %v1099
          %v1256 = vpack.c.b16 %v1104, %v1100
          %v1257 = vpack.c.b16 %v1105, %v1101
          %v1258 = vpack.c.b16 %v1106, %v1102
          %v1259 = vpack.c.b16 %v1111, %v1107
          %v1260 = vpack.c.b16 %v1112, %v1108
          %v1261 = vpack.c.b16 %v1113, %v1109
          %v1262 = vpack.c.b16 %v1114, %v1110
          %v1263 = vpack.c.b16 %v1119, %v1115
          %v1264 = vpack.c.b16 %v1120, %v1116
          %v1265 = vpack.c.b16 %v1121, %v1117
          %v1266 = vpack.c.b16 %v1122, %v1118
          %v1267 = vpack.c.b16 %v1127, %v1123
          %v1268 = vpack.c.b16 %v1128, %v1124
          %v1269 = vpack.c.b16 %v1129, %v1125
          %v1270 = vpack.c.b16 %v1130, %v1126
          %v1271 = vpack.c.b16 %v1135, %v1131
          %v1272 = vpack.c.b16 %v1136, %v1132
          %v1273 = vpack.c.b16 %v1137, %v1133
          %v1274 = vpack.c.b16 %v1138, %v1134
          %v1275 = vpack.c.b16 %v1143, %v1139
          %v1276 = vpack.c.b16 %v1144, %v1140
          %v1277 = vpack.c.b16 %v1145, %v1141
          %v1278 = vpack.c.b16 %v1146, %v1142
          %v1279 = vpack.c.b16 %v1151, %v1147
          %v1280 = vpack.c.b16 %v1152, %v1148
          %v1281 = vpack.c.b16 %v1153, %v1149
          %v1282 = vpack.c.b16 %v1154, %v1150
          %1411 = vmatprep.subr.bf16.mxu0 %v1184
          %1412 = vmatpush1.bf16.msra.mxu0 %v1183
          %1413 = vmatprep.subr.bf16.mxu0 %v1180
          %1414 = vmatpush1.bf16.msra.mxu0 %v1179
          %1415 = vmatprep.subr.bf16.mxu0 %v1176
          %1416 = vmatpush1.bf16.msra.mxu0 %v1175
          %1417 = vmatprep.subr.bf16.mxu0 %v1172
          %1418 = vmatpush1.bf16.msra.mxu0 %v1171
          %1419 = vmatprep.subr.bf16.mxu0 %v1168
          %1420 = vmatpush1.bf16.msra.mxu0 %v1167
          %1421 = vmatprep.subr.bf16.mxu0 %v1164
          %1422 = vmatpush1.bf16.msra.mxu0 %v1163
          %1423 = vmatprep.subr.bf16.mxu0 %v1160
          %1424 = vmatpush1.bf16.msra.mxu0 %v1159
          %1425 = vmatprep.subr.bf16.mxu0 %v1156
          %1426 = vmatpush1.bf16.msra.mxu0 %v1155
          %1427 = vmatprep.subr.bf16.mxu0 %v1216
          %1428 = vmatpush2.bf16.msra.mxu0 %v1215
          %1429 = vmatprep.subr.bf16.mxu0 %v1212
          %1430 = vmatpush2.bf16.msra.mxu0 %v1211
          %1431 = vmatprep.subr.bf16.mxu0 %v1208
          %1432 = vmatpush2.bf16.msra.mxu0 %v1207
          %1433 = vmatprep.subr.bf16.mxu0 %v1204
          %1434 = vmatpush2.bf16.msra.mxu0 %v1203
          %1435 = vmatprep.subr.bf16.mxu0 %v1200
          %1436 = vmatpush2.bf16.msra.mxu0 %v1199
          %1437 = vmatprep.subr.bf16.mxu0 %v1196
          %1438 = vmatpush2.bf16.msra.mxu0 %v1195
          %1439 = vmatprep.subr.bf16.mxu0 %v1192
          %1440 = vmatpush2.bf16.msra.mxu0 %v1191
          %1441 = vmatprep.subr.bf16.mxu0 %v1188
          %1442 = vmatpush2.bf16.msra.mxu0 %v1187
          %1443 = vmatprep.mubr.bf16.mxu0 %v546
          %1444 = vmatmul.mubr.bf16.gmra.mxu0 %v545
          %v1445 = vpop.f32.mrf.mxu0
          %v1446 = vadd.f32 %v754, %v1445
          %v1447 = vpop.f32.mrf.mxu0
          %v1448 = vadd.f32 %v758, %v1447
          %v1449 = vpop.f32.mrf.mxu0
          %v1450 = vadd.f32 %v754, %v1449
          %v1451 = vpop.f32.mrf.mxu0
          %v1452 = vadd.f32 %v758, %v1451
          %1453 = vmatprep.mubr.bf16.mxu0 %v550
          %1454 = vmatmul.mubr.bf16.gmra.mxu0 %v549
          %v1455 = vpop.f32.mrf.mxu0
          %v1456 = vadd.f32 %v754, %v1455
          %v1457 = vpop.f32.mrf.mxu0
          %v1458 = vadd.f32 %v758, %v1457
          %v1459 = vpop.f32.mrf.mxu0
          %v1460 = vadd.f32 %v754, %v1459
          %v1461 = vpop.f32.mrf.mxu0
          %v1462 = vadd.f32 %v758, %v1461
          %1463 = vmatprep.mubr.bf16.mxu0 %v554
          %1464 = vmatmul.mubr.bf16.gmra.mxu0 %v553
          %v1465 = vpop.f32.mrf.mxu0
          %v1466 = vadd.f32 %v754, %v1465
          %v1467 = vpop.f32.mrf.mxu0
          %v1468 = vadd.f32 %v758, %v1467
          %v1469 = vpop.f32.mrf.mxu0
          %v1470 = vadd.f32 %v754, %v1469
          %v1471 = vpop.f32.mrf.mxu0
          %v1472 = vadd.f32 %v758, %v1471
          %1473 = vmatprep.mubr.bf16.mxu0 %v558
          %1474 = vmatmul.mubr.bf16.gmra.mxu0 %v557
          %v1475 = vpop.f32.mrf.mxu0
          %v1476 = vadd.f32 %v754, %v1475
          %v1477 = vpop.f32.mrf.mxu0
          %v1478 = vadd.f32 %v758, %v1477
          %v1479 = vpop.f32.mrf.mxu0
          %v1480 = vadd.f32 %v754, %v1479
          %v1481 = vpop.f32.mrf.mxu0
          %v1482 = vadd.f32 %v758, %v1481
          %1483 = vmatprep.mubr.bf16.mxu0 %v562
          %1484 = vmatmul.mubr.bf16.gmra.mxu0 %v561
          %v1485 = vpop.f32.mrf.mxu0
          %v1486 = vadd.f32 %v754, %v1485
          %v1487 = vpop.f32.mrf.mxu0
          %v1488 = vadd.f32 %v758, %v1487
          %v1489 = vpop.f32.mrf.mxu0
          %v1490 = vadd.f32 %v754, %v1489
          %v1491 = vpop.f32.mrf.mxu0
          %v1492 = vadd.f32 %v758, %v1491
          %1493 = vmatprep.mubr.bf16.mxu0 %v566
          %1494 = vmatmul.mubr.bf16.gmra.mxu0 %v565
          %v1495 = vpop.f32.mrf.mxu0
          %v1496 = vadd.f32 %v754, %v1495
          %v1497 = vpop.f32.mrf.mxu0
          %v1498 = vadd.f32 %v758, %v1497
          %v1499 = vpop.f32.mrf.mxu0
          %v1500 = vadd.f32 %v754, %v1499
          %v1501 = vpop.f32.mrf.mxu0
          %v1502 = vadd.f32 %v758, %v1501
          %1503 = vmatprep.mubr.bf16.mxu0 %v570
          %1504 = vmatmul.mubr.bf16.gmra.mxu0 %v569
          %v1505 = vpop.f32.mrf.mxu0
          %v1506 = vadd.f32 %v754, %v1505
          %v1507 = vpop.f32.mrf.mxu0
          %v1508 = vadd.f32 %v758, %v1507
          %v1509 = vpop.f32.mrf.mxu0
          %v1510 = vadd.f32 %v754, %v1509
          %v1511 = vpop.f32.mrf.mxu0
          %v1512 = vadd.f32 %v758, %v1511
          %1513 = vmatprep.mubr.bf16.mxu0 %v574
          %1514 = vmatmul.mubr.bf16.gmra.mxu0 %v573
          %v1515 = vpop.f32.mrf.mxu0
          %v1516 = vadd.f32 %v754, %v1515
          %v1517 = vpop.f32.mrf.mxu0
          %v1518 = vadd.f32 %v758, %v1517
          %v1519 = vpop.f32.mrf.mxu0
          %v1520 = vadd.f32 %v754, %v1519
          %v1521 = vpop.f32.mrf.mxu0
          %v1522 = vadd.f32 %v758, %v1521
          %1523 = vmatprep.mubr.bf16.mxu0 %v578
          %1524 = vmatmul.mubr.bf16.gmra.mxu0 %v577
          %v1525 = vpop.f32.mrf.mxu0
          %v1526 = vadd.f32 %v754, %v1525
          %v1527 = vpop.f32.mrf.mxu0
          %v1528 = vadd.f32 %v758, %v1527
          %v1529 = vpop.f32.mrf.mxu0
          %v1530 = vadd.f32 %v754, %v1529
          %v1531 = vpop.f32.mrf.mxu0
          %v1532 = vadd.f32 %v758, %v1531
          %1533 = vmatprep.mubr.bf16.mxu0 %v582
          %1534 = vmatmul.mubr.bf16.gmra.mxu0 %v581
          %v1535 = vpop.f32.mrf.mxu0
          %v1536 = vadd.f32 %v754, %v1535
          %v1537 = vpop.f32.mrf.mxu0
          %v1538 = vadd.f32 %v758, %v1537
          %v1539 = vpop.f32.mrf.mxu0
          %v1540 = vadd.f32 %v754, %v1539
          %v1541 = vpop.f32.mrf.mxu0
          %v1542 = vadd.f32 %v758, %v1541
          %1543 = vmatprep.mubr.bf16.mxu0 %v586
          %1544 = vmatmul.mubr.bf16.gmra.mxu0 %v585
          %v1545 = vpop.f32.mrf.mxu0
          %v1546 = vadd.f32 %v754, %v1545
          %v1547 = vpop.f32.mrf.mxu0
          %v1548 = vadd.f32 %v758, %v1547
          %v1549 = vpop.f32.mrf.mxu0
          %v1550 = vadd.f32 %v754, %v1549
          %v1551 = vpop.f32.mrf.mxu0
          %v1552 = vadd.f32 %v758, %v1551
          %1553 = vmatprep.mubr.bf16.mxu0 %v590
          %1554 = vmatmul.mubr.bf16.gmra.mxu0 %v589
          %v1555 = vpop.f32.mrf.mxu0
          %v1556 = vadd.f32 %v754, %v1555
          %v1557 = vpop.f32.mrf.mxu0
          %v1558 = vadd.f32 %v758, %v1557
          %v1559 = vpop.f32.mrf.mxu0
          %v1560 = vadd.f32 %v754, %v1559
          %v1561 = vpop.f32.mrf.mxu0
          %v1562 = vadd.f32 %v758, %v1561
          %1563 = vmatprep.mubr.bf16.mxu0 %v594
          %1564 = vmatmul.mubr.bf16.gmra.mxu0 %v593
          %v1565 = vpop.f32.mrf.mxu0
          %v1566 = vadd.f32 %v754, %v1565
          %v1567 = vpop.f32.mrf.mxu0
          %v1568 = vadd.f32 %v758, %v1567
          %v1569 = vpop.f32.mrf.mxu0
          %v1570 = vadd.f32 %v754, %v1569
          %v1571 = vpop.f32.mrf.mxu0
          %v1572 = vadd.f32 %v758, %v1571
          %1573 = vmatprep.mubr.bf16.mxu0 %v598
          %1574 = vmatmul.mubr.bf16.gmra.mxu0 %v597
          %v1575 = vpop.f32.mrf.mxu0
          %v1576 = vadd.f32 %v754, %v1575
          %v1577 = vpop.f32.mrf.mxu0
          %v1578 = vadd.f32 %v758, %v1577
          %v1579 = vpop.f32.mrf.mxu0
          %v1580 = vadd.f32 %v754, %v1579
          %v1581 = vpop.f32.mrf.mxu0
          %v1582 = vadd.f32 %v758, %v1581
          %1583 = vmatprep.mubr.bf16.mxu0 %v602
          %1584 = vmatmul.mubr.bf16.gmra.mxu0 %v601
          %v1585 = vpop.f32.mrf.mxu0
          %v1586 = vadd.f32 %v754, %v1585
          %v1587 = vpop.f32.mrf.mxu0
          %v1588 = vadd.f32 %v758, %v1587
          %v1589 = vpop.f32.mrf.mxu0
          %v1590 = vadd.f32 %v754, %v1589
          %v1591 = vpop.f32.mrf.mxu0
          %v1592 = vadd.f32 %v758, %v1591
          %1593 = vmatprep.mubr.bf16.mxu0 %v606
          %1594 = vmatmul.mubr.bf16.gmra.mxu0 %v605
          %v1595 = vpop.f32.mrf.mxu0
          %v1596 = vadd.f32 %v754, %v1595
          %v1597 = vpop.f32.mrf.mxu0
          %v1598 = vadd.f32 %v758, %v1597
          %v1599 = vpop.f32.mrf.mxu0
          %v1600 = vadd.f32 %v754, %v1599
          %v1601 = vpop.f32.mrf.mxu0
          %v1602 = vadd.f32 %v758, %v1601
          %1603 = vmatprep.mubr.bf16.mxu0 %v610
          %1604 = vmatmul.mubr.bf16.gmra.mxu0 %v609
          %v1605 = vpop.f32.mrf.mxu0
          %v1606 = vadd.f32 %v754, %v1605
          %v1607 = vpop.f32.mrf.mxu0
          %v1608 = vadd.f32 %v758, %v1607
          %v1609 = vpop.f32.mrf.mxu0
          %v1610 = vadd.f32 %v754, %v1609
          %v1611 = vpop.f32.mrf.mxu0
          %v1612 = vadd.f32 %v758, %v1611
          %1613 = vmatprep.mubr.bf16.mxu0 %v614
          %1614 = vmatmul.mubr.bf16.gmra.mxu0 %v613
          %v1615 = vpop.f32.mrf.mxu0
          %v1616 = vadd.f32 %v754, %v1615
          %v1617 = vpop.f32.mrf.mxu0
          %v1618 = vadd.f32 %v758, %v1617
          %v1619 = vpop.f32.mrf.mxu0
          %v1620 = vadd.f32 %v754, %v1619
          %v1621 = vpop.f32.mrf.mxu0
          %v1622 = vadd.f32 %v758, %v1621
          %1623 = vmatprep.mubr.bf16.mxu0 %v618
          %1624 = vmatmul.mubr.bf16.gmra.mxu0 %v617
          %v1625 = vpop.f32.mrf.mxu0
          %v1626 = vadd.f32 %v754, %v1625
          %v1627 = vpop.f32.mrf.mxu0
          %v1628 = vadd.f32 %v758, %v1627
          %v1629 = vpop.f32.mrf.mxu0
          %v1630 = vadd.f32 %v754, %v1629
          %v1631 = vpop.f32.mrf.mxu0
          %v1632 = vadd.f32 %v758, %v1631
          %1633 = vdwg.mxu0
          %1634 = vmatprep.subr.bf16.mxu0 %v1248
          %1635 = vmatpush1.bf16.msra.mxu0 %v1247
          %1636 = vmatprep.subr.bf16.mxu0 %v1244
          %1637 = vmatpush1.bf16.msra.mxu0 %v1243
          %1638 = vmatprep.subr.bf16.mxu0 %v1240
          %1639 = vmatpush1.bf16.msra.mxu0 %v1239
          %1640 = vmatprep.subr.bf16.mxu0 %v1236
          %1641 = vmatpush1.bf16.msra.mxu0 %v1235
          %1642 = vmatprep.subr.bf16.mxu0 %v1232
          %1643 = vmatpush1.bf16.msra.mxu0 %v1231
          %1644 = vmatprep.subr.bf16.mxu0 %v1228
          %1645 = vmatpush1.bf16.msra.mxu0 %v1227
          %1646 = vmatprep.subr.bf16.mxu0 %v1224
          %1647 = vmatpush1.bf16.msra.mxu0 %v1223
          %1648 = vmatprep.subr.bf16.mxu0 %v1220
          %1649 = vmatpush1.bf16.msra.mxu0 %v1219
          %1650 = vmatprep.subr.bf16.mxu0 %v1280
          %1651 = vmatpush2.bf16.msra.mxu0 %v1279
          %1652 = vmatprep.subr.bf16.mxu0 %v1276
          %1653 = vmatpush2.bf16.msra.mxu0 %v1275
          %1654 = vmatprep.subr.bf16.mxu0 %v1272
          %1655 = vmatpush2.bf16.msra.mxu0 %v1271
          %1656 = vmatprep.subr.bf16.mxu0 %v1268
          %1657 = vmatpush2.bf16.msra.mxu0 %v1267
          %1658 = vmatprep.subr.bf16.mxu0 %v1264
          %1659 = vmatpush2.bf16.msra.mxu0 %v1263
          %1660 = vmatprep.subr.bf16.mxu0 %v1260
          %1661 = vmatpush2.bf16.msra.mxu0 %v1259
          %1662 = vmatprep.subr.bf16.mxu0 %v1256
          %1663 = vmatpush2.bf16.msra.mxu0 %v1255
          %1664 = vmatprep.subr.bf16.mxu0 %v1252
          %1665 = vmatpush2.bf16.msra.mxu0 %v1251
          %1666 = vmatprep.mubr.bf16.mxu0 %v548
          %1667 = vmatmul.mubr.bf16.gmra.mxu0 %v547
          %v1668 = vpop.f32.mrf.mxu0
          %v1669 = vadd.f32 %v1446, %v1668
          %v1670 = vpop.f32.mrf.mxu0
          %v1671 = vadd.f32 %v1448, %v1670
          %v1672 = vpop.f32.mrf.mxu0
          %v1673 = vadd.f32 %v1450, %v1672
          %v1674 = vpop.f32.mrf.mxu0
          %v1675 = vadd.f32 %v1452, %v1674
          %1676 = vmatprep.mubr.bf16.mxu0 %v552
          %1677 = vmatmul.mubr.bf16.gmra.mxu0 %v551
          %v1678 = vpop.f32.mrf.mxu0
          %v1679 = vadd.f32 %v1456, %v1678
          %v1680 = vpop.f32.mrf.mxu0
          %v1681 = vadd.f32 %v1458, %v1680
          %v1682 = vpop.f32.mrf.mxu0
          %v1683 = vadd.f32 %v1460, %v1682
          %v1684 = vpop.f32.mrf.mxu0
          %v1685 = vadd.f32 %v1462, %v1684
          %1686 = vmatprep.mubr.bf16.mxu0 %v556
          %1687 = vmatmul.mubr.bf16.gmra.mxu0 %v555
          %v1688 = vpop.f32.mrf.mxu0
          %v1689 = vadd.f32 %v1466, %v1688
          %v1690 = vpop.f32.mrf.mxu0
          %v1691 = vadd.f32 %v1468, %v1690
          %v1692 = vpop.f32.mrf.mxu0
          %v1693 = vadd.f32 %v1470, %v1692
          %v1694 = vpop.f32.mrf.mxu0
          %v1695 = vadd.f32 %v1472, %v1694
          %1696 = vmatprep.mubr.bf16.mxu0 %v560
          %1697 = vmatmul.mubr.bf16.gmra.mxu0 %v559
          %v1698 = vpop.f32.mrf.mxu0
          %v1699 = vadd.f32 %v1476, %v1698
          %v1700 = vpop.f32.mrf.mxu0
          %v1701 = vadd.f32 %v1478, %v1700
          %v1702 = vpop.f32.mrf.mxu0
          %v1703 = vadd.f32 %v1480, %v1702
          %v1704 = vpop.f32.mrf.mxu0
          %v1705 = vadd.f32 %v1482, %v1704
          %1706 = vmatprep.mubr.bf16.mxu0 %v564
          %1707 = vmatmul.mubr.bf16.gmra.mxu0 %v563
          %v1708 = vpop.f32.mrf.mxu0
          %v1709 = vadd.f32 %v1486, %v1708
          %v1710 = vpop.f32.mrf.mxu0
          %v1711 = vadd.f32 %v1488, %v1710
          %v1712 = vpop.f32.mrf.mxu0
          %v1713 = vadd.f32 %v1490, %v1712
          %v1714 = vpop.f32.mrf.mxu0
          %v1715 = vadd.f32 %v1492, %v1714
          %1716 = vmatprep.mubr.bf16.mxu0 %v568
          %1717 = vmatmul.mubr.bf16.gmra.mxu0 %v567
          %v1718 = vpop.f32.mrf.mxu0
          %v1719 = vadd.f32 %v1496, %v1718
          %v1720 = vpop.f32.mrf.mxu0
          %v1721 = vadd.f32 %v1498, %v1720
          %v1722 = vpop.f32.mrf.mxu0
          %v1723 = vadd.f32 %v1500, %v1722
          %v1724 = vpop.f32.mrf.mxu0
          %v1725 = vadd.f32 %v1502, %v1724
          %1726 = vmatprep.mubr.bf16.mxu0 %v572
          %1727 = vmatmul.mubr.bf16.gmra.mxu0 %v571
          %v1728 = vpop.f32.mrf.mxu0
          %v1729 = vadd.f32 %v1506, %v1728
          %v1730 = vpop.f32.mrf.mxu0
          %v1731 = vadd.f32 %v1508, %v1730
          %v1732 = vpop.f32.mrf.mxu0
          %v1733 = vadd.f32 %v1510, %v1732
          %v1734 = vpop.f32.mrf.mxu0
          %v1735 = vadd.f32 %v1512, %v1734
          %1736 = vmatprep.mubr.bf16.mxu0 %v576
          %1737 = vmatmul.mubr.bf16.gmra.mxu0 %v575
          %v1738 = vpop.f32.mrf.mxu0
          %v1739 = vadd.f32 %v1516, %v1738
          %v1740 = vpop.f32.mrf.mxu0
          %v1741 = vadd.f32 %v1518, %v1740
          %v1742 = vpop.f32.mrf.mxu0
          %v1743 = vadd.f32 %v1520, %v1742
          %v1744 = vpop.f32.mrf.mxu0
          %v1745 = vadd.f32 %v1522, %v1744
          %1746 = vmatprep.mubr.bf16.mxu0 %v580
          %1747 = vmatmul.mubr.bf16.gmra.mxu0 %v579
          %v1748 = vpop.f32.mrf.mxu0
          %v1749 = vadd.f32 %v1526, %v1748
          %v1750 = vpop.f32.mrf.mxu0
          %v1751 = vadd.f32 %v1528, %v1750
          %v1752 = vpop.f32.mrf.mxu0
          %v1753 = vadd.f32 %v1530, %v1752
          %v1754 = vpop.f32.mrf.mxu0
          %v1755 = vadd.f32 %v1532, %v1754
          %1756 = vmatprep.mubr.bf16.mxu0 %v584
          %1757 = vmatmul.mubr.bf16.gmra.mxu0 %v583
          %v1758 = vpop.f32.mrf.mxu0
          %v1759 = vadd.f32 %v1536, %v1758
          %v1760 = vpop.f32.mrf.mxu0
          %v1761 = vadd.f32 %v1538, %v1760
          %v1762 = vpop.f32.mrf.mxu0
          %v1763 = vadd.f32 %v1540, %v1762
          %v1764 = vpop.f32.mrf.mxu0
          %v1765 = vadd.f32 %v1542, %v1764
          %1766 = vmatprep.mubr.bf16.mxu0 %v588
          %1767 = vmatmul.mubr.bf16.gmra.mxu0 %v587
          %v1768 = vpop.f32.mrf.mxu0
          %v1769 = vadd.f32 %v1546, %v1768
          %v1770 = vpop.f32.mrf.mxu0
          %v1771 = vadd.f32 %v1548, %v1770
          %v1772 = vpop.f32.mrf.mxu0
          %v1773 = vadd.f32 %v1550, %v1772
          %v1774 = vpop.f32.mrf.mxu0
          %v1775 = vadd.f32 %v1552, %v1774
          %1776 = vmatprep.mubr.bf16.mxu0 %v592
          %1777 = vmatmul.mubr.bf16.gmra.mxu0 %v591
          %v1778 = vpop.f32.mrf.mxu0
          %v1779 = vadd.f32 %v1556, %v1778
          %v1780 = vpop.f32.mrf.mxu0
          %v1781 = vadd.f32 %v1558, %v1780
          %v1782 = vpop.f32.mrf.mxu0
          %v1783 = vadd.f32 %v1560, %v1782
          %v1784 = vpop.f32.mrf.mxu0
          %v1785 = vadd.f32 %v1562, %v1784
          %1786 = vmatprep.mubr.bf16.mxu0 %v596
          %1787 = vmatmul.mubr.bf16.gmra.mxu0 %v595
          %v1788 = vpop.f32.mrf.mxu0
          %v1789 = vadd.f32 %v1566, %v1788
          %v1790 = vpop.f32.mrf.mxu0
          %v1791 = vadd.f32 %v1568, %v1790
          %v1792 = vpop.f32.mrf.mxu0
          %v1793 = vadd.f32 %v1570, %v1792
          %v1794 = vpop.f32.mrf.mxu0
          %v1795 = vadd.f32 %v1572, %v1794
          %1796 = vmatprep.mubr.bf16.mxu0 %v600
          %1797 = vmatmul.mubr.bf16.gmra.mxu0 %v599
          %v1798 = vpop.f32.mrf.mxu0
          %v1799 = vadd.f32 %v1576, %v1798
          %v1800 = vpop.f32.mrf.mxu0
          %v1801 = vadd.f32 %v1578, %v1800
          %v1802 = vpop.f32.mrf.mxu0
          %v1803 = vadd.f32 %v1580, %v1802
          %v1804 = vpop.f32.mrf.mxu0
          %v1805 = vadd.f32 %v1582, %v1804
          %1806 = vmatprep.mubr.bf16.mxu0 %v604
          %1807 = vmatmul.mubr.bf16.gmra.mxu0 %v603
          %v1808 = vpop.f32.mrf.mxu0
          %v1809 = vadd.f32 %v1586, %v1808
          %v1810 = vpop.f32.mrf.mxu0
          %v1811 = vadd.f32 %v1588, %v1810
          %v1812 = vpop.f32.mrf.mxu0
          %v1813 = vadd.f32 %v1590, %v1812
          %v1814 = vpop.f32.mrf.mxu0
          %v1815 = vadd.f32 %v1592, %v1814
          %1816 = vmatprep.mubr.bf16.mxu0 %v608
          %1817 = vmatmul.mubr.bf16.gmra.mxu0 %v607
          %v1818 = vpop.f32.mrf.mxu0
          %v1819 = vadd.f32 %v1596, %v1818
          %v1820 = vpop.f32.mrf.mxu0
          %v1821 = vadd.f32 %v1598, %v1820
          %v1822 = vpop.f32.mrf.mxu0
          %v1823 = vadd.f32 %v1600, %v1822
          %v1824 = vpop.f32.mrf.mxu0
          %v1825 = vadd.f32 %v1602, %v1824
          %1826 = vmatprep.mubr.bf16.mxu0 %v612
          %1827 = vmatmul.mubr.bf16.gmra.mxu0 %v611
          %v1828 = vpop.f32.mrf.mxu0
          %v1829 = vadd.f32 %v1606, %v1828
          %v1830 = vpop.f32.mrf.mxu0
          %v1831 = vadd.f32 %v1608, %v1830
          %v1832 = vpop.f32.mrf.mxu0
          %v1833 = vadd.f32 %v1610, %v1832
          %v1834 = vpop.f32.mrf.mxu0
          %v1835 = vadd.f32 %v1612, %v1834
          %1836 = vmatprep.mubr.bf16.mxu0 %v616
          %1837 = vmatmul.mubr.bf16.gmra.mxu0 %v615
          %v1838 = vpop.f32.mrf.mxu0
          %v1839 = vadd.f32 %v1616, %v1838
          %v1840 = vpop.f32.mrf.mxu0
          %v1841 = vadd.f32 %v1618, %v1840
          %v1842 = vpop.f32.mrf.mxu0
          %v1843 = vadd.f32 %v1620, %v1842
          %v1844 = vpop.f32.mrf.mxu0
          %v1845 = vadd.f32 %v1622, %v1844
          %1846 = vmatprep.mubr.bf16.mxu0 %v620
          %1847 = vmatmul.mubr.bf16.gmra.mxu0 %v619
          %v1848 = vpop.f32.mrf.mxu0
          %v1849 = vadd.f32 %v1626, %v1848
          %v1850 = vpop.f32.mrf.mxu0
          %v1851 = vadd.f32 %v1628, %v1850
          %v1852 = vpop.f32.mrf.mxu0
          %v1853 = vadd.f32 %v1630, %v1852
          %v1854 = vpop.f32.mrf.mxu0
          %v1855 = vadd.f32 %v1632, %v1854
          %1856 = vdwg.mxu0
          %1857 = vmatprep.subr.bf16.mxu0 %v1186
          %1858 = vmatpush1.bf16.msra.mxu0 %v1185
          %1859 = vmatprep.subr.bf16.mxu0 %v1182
          %1860 = vmatpush1.bf16.msra.mxu0 %v1181
          %1861 = vmatprep.subr.bf16.mxu0 %v1178
          %1862 = vmatpush1.bf16.msra.mxu0 %v1177
          %1863 = vmatprep.subr.bf16.mxu0 %v1174
          %1864 = vmatpush1.bf16.msra.mxu0 %v1173
          %1865 = vmatprep.subr.bf16.mxu0 %v1170
          %1866 = vmatpush1.bf16.msra.mxu0 %v1169
          %1867 = vmatprep.subr.bf16.mxu0 %v1166
          %1868 = vmatpush1.bf16.msra.mxu0 %v1165
          %1869 = vmatprep.subr.bf16.mxu0 %v1162
          %1870 = vmatpush1.bf16.msra.mxu0 %v1161
          %1871 = vmatprep.subr.bf16.mxu0 %v1158
          %1872 = vmatpush1.bf16.msra.mxu0 %v1157
          %1873 = vmatprep.subr.bf16.mxu0 %v1218
          %1874 = vmatpush2.bf16.msra.mxu0 %v1217
          %1875 = vmatprep.subr.bf16.mxu0 %v1214
          %1876 = vmatpush2.bf16.msra.mxu0 %v1213
          %1877 = vmatprep.subr.bf16.mxu0 %v1210
          %1878 = vmatpush2.bf16.msra.mxu0 %v1209
          %1879 = vmatprep.subr.bf16.mxu0 %v1206
          %1880 = vmatpush2.bf16.msra.mxu0 %v1205
          %1881 = vmatprep.subr.bf16.mxu0 %v1202
          %1882 = vmatpush2.bf16.msra.mxu0 %v1201
          %1883 = vmatprep.subr.bf16.mxu0 %v1198
          %1884 = vmatpush2.bf16.msra.mxu0 %v1197
          %1885 = vmatprep.subr.bf16.mxu0 %v1194
          %1886 = vmatpush2.bf16.msra.mxu0 %v1193
          %1887 = vmatprep.subr.bf16.mxu0 %v1190
          %1888 = vmatpush2.bf16.msra.mxu0 %v1189
          %1889 = vmatprep.mubr.bf16.mxu0 %v546
          %1890 = vmatmul.mubr.bf16.gmra.mxu0 %v545
          %v1891 = vpop.f32.mrf.mxu0
          %v1892 = vadd.f32 %v762, %v1891
          %v1893 = vpop.f32.mrf.mxu0
          %v1894 = vadd.f32 %v766, %v1893
          %v1895 = vpop.f32.mrf.mxu0
          %v1896 = vadd.f32 %v762, %v1895
          %v1897 = vpop.f32.mrf.mxu0
          %v1898 = vadd.f32 %v766, %v1897
          %1899 = vmatprep.mubr.bf16.mxu0 %v550
          %1900 = vmatmul.mubr.bf16.gmra.mxu0 %v549
          %v1901 = vpop.f32.mrf.mxu0
          %v1902 = vadd.f32 %v762, %v1901
          %v1903 = vpop.f32.mrf.mxu0
          %v1904 = vadd.f32 %v766, %v1903
          %v1905 = vpop.f32.mrf.mxu0
          %v1906 = vadd.f32 %v762, %v1905
          %v1907 = vpop.f32.mrf.mxu0
          %v1908 = vadd.f32 %v766, %v1907
          %1909 = vmatprep.mubr.bf16.mxu0 %v554
          %1910 = vmatmul.mubr.bf16.gmra.mxu0 %v553
          %v1911 = vpop.f32.mrf.mxu0
          %v1912 = vadd.f32 %v762, %v1911
          %v1913 = vpop.f32.mrf.mxu0
          %v1914 = vadd.f32 %v766, %v1913
          %v1915 = vpop.f32.mrf.mxu0
          %v1916 = vadd.f32 %v762, %v1915
          %v1917 = vpop.f32.mrf.mxu0
          %v1918 = vadd.f32 %v766, %v1917
          %1919 = vmatprep.mubr.bf16.mxu0 %v558
          %1920 = vmatmul.mubr.bf16.gmra.mxu0 %v557
          %v1921 = vpop.f32.mrf.mxu0
          %v1922 = vadd.f32 %v762, %v1921
          %v1923 = vpop.f32.mrf.mxu0
          %v1924 = vadd.f32 %v766, %v1923
          %v1925 = vpop.f32.mrf.mxu0
          %v1926 = vadd.f32 %v762, %v1925
          %v1927 = vpop.f32.mrf.mxu0
          %v1928 = vadd.f32 %v766, %v1927
          %1929 = vmatprep.mubr.bf16.mxu0 %v562
          %1930 = vmatmul.mubr.bf16.gmra.mxu0 %v561
          %v1931 = vpop.f32.mrf.mxu0
          %v1932 = vadd.f32 %v762, %v1931
          %v1933 = vpop.f32.mrf.mxu0
          %v1934 = vadd.f32 %v766, %v1933
          %v1935 = vpop.f32.mrf.mxu0
          %v1936 = vadd.f32 %v762, %v1935
          %v1937 = vpop.f32.mrf.mxu0
          %v1938 = vadd.f32 %v766, %v1937
          %1939 = vmatprep.mubr.bf16.mxu0 %v566
          %1940 = vmatmul.mubr.bf16.gmra.mxu0 %v565
          %v1941 = vpop.f32.mrf.mxu0
          %v1942 = vadd.f32 %v762, %v1941
          %v1943 = vpop.f32.mrf.mxu0
          %v1944 = vadd.f32 %v766, %v1943
          %v1945 = vpop.f32.mrf.mxu0
          %v1946 = vadd.f32 %v762, %v1945
          %v1947 = vpop.f32.mrf.mxu0
          %v1948 = vadd.f32 %v766, %v1947
          %1949 = vmatprep.mubr.bf16.mxu0 %v570
          %1950 = vmatmul.mubr.bf16.gmra.mxu0 %v569
          %v1951 = vpop.f32.mrf.mxu0
          %v1952 = vadd.f32 %v762, %v1951
          %v1953 = vpop.f32.mrf.mxu0
          %v1954 = vadd.f32 %v766, %v1953
          %v1955 = vpop.f32.mrf.mxu0
          %v1956 = vadd.f32 %v762, %v1955
          %v1957 = vpop.f32.mrf.mxu0
          %v1958 = vadd.f32 %v766, %v1957
          %1959 = vmatprep.mubr.bf16.mxu0 %v574
          %1960 = vmatmul.mubr.bf16.gmra.mxu0 %v573
          %v1961 = vpop.f32.mrf.mxu0
          %v1962 = vadd.f32 %v762, %v1961
          %v1963 = vpop.f32.mrf.mxu0
          %v1964 = vadd.f32 %v766, %v1963
          %v1965 = vpop.f32.mrf.mxu0
          %v1966 = vadd.f32 %v762, %v1965
          %v1967 = vpop.f32.mrf.mxu0
          %v1968 = vadd.f32 %v766, %v1967
          %1969 = vmatprep.mubr.bf16.mxu0 %v578
          %1970 = vmatmul.mubr.bf16.gmra.mxu0 %v577
          %v1971 = vpop.f32.mrf.mxu0
          %v1972 = vadd.f32 %v762, %v1971
          %v1973 = vpop.f32.mrf.mxu0
          %v1974 = vadd.f32 %v766, %v1973
          %v1975 = vpop.f32.mrf.mxu0
          %v1976 = vadd.f32 %v762, %v1975
          %v1977 = vpop.f32.mrf.mxu0
          %v1978 = vadd.f32 %v766, %v1977
          %1979 = vmatprep.mubr.bf16.mxu0 %v582
          %1980 = vmatmul.mubr.bf16.gmra.mxu0 %v581
          %v1981 = vpop.f32.mrf.mxu0
          %v1982 = vadd.f32 %v762, %v1981
          %v1983 = vpop.f32.mrf.mxu0
          %v1984 = vadd.f32 %v766, %v1983
          %v1985 = vpop.f32.mrf.mxu0
          %v1986 = vadd.f32 %v762, %v1985
          %v1987 = vpop.f32.mrf.mxu0
          %v1988 = vadd.f32 %v766, %v1987
          %1989 = vmatprep.mubr.bf16.mxu0 %v586
          %1990 = vmatmul.mubr.bf16.gmra.mxu0 %v585
          %v1991 = vpop.f32.mrf.mxu0
          %v1992 = vadd.f32 %v762, %v1991
          %v1993 = vpop.f32.mrf.mxu0
          %v1994 = vadd.f32 %v766, %v1993
          %v1995 = vpop.f32.mrf.mxu0
          %v1996 = vadd.f32 %v762, %v1995
          %v1997 = vpop.f32.mrf.mxu0
          %v1998 = vadd.f32 %v766, %v1997
          %1999 = vmatprep.mubr.bf16.mxu0 %v590
          %2000 = vmatmul.mubr.bf16.gmra.mxu0 %v589
          %v2001 = vpop.f32.mrf.mxu0
          %v2002 = vadd.f32 %v762, %v2001
          %v2003 = vpop.f32.mrf.mxu0
          %v2004 = vadd.f32 %v766, %v2003
          %v2005 = vpop.f32.mrf.mxu0
          %v2006 = vadd.f32 %v762, %v2005
          %v2007 = vpop.f32.mrf.mxu0
          %v2008 = vadd.f32 %v766, %v2007
          %2009 = vmatprep.mubr.bf16.mxu0 %v594
          %2010 = vmatmul.mubr.bf16.gmra.mxu0 %v593
          %v2011 = vpop.f32.mrf.mxu0
          %v2012 = vadd.f32 %v762, %v2011
          %v2013 = vpop.f32.mrf.mxu0
          %v2014 = vadd.f32 %v766, %v2013
          %v2015 = vpop.f32.mrf.mxu0
          %v2016 = vadd.f32 %v762, %v2015
          %v2017 = vpop.f32.mrf.mxu0
          %v2018 = vadd.f32 %v766, %v2017
          %2019 = vmatprep.mubr.bf16.mxu0 %v598
          %2020 = vmatmul.mubr.bf16.gmra.mxu0 %v597
          %v2021 = vpop.f32.mrf.mxu0
          %v2022 = vadd.f32 %v762, %v2021
          %v2023 = vpop.f32.mrf.mxu0
          %v2024 = vadd.f32 %v766, %v2023
          %v2025 = vpop.f32.mrf.mxu0
          %v2026 = vadd.f32 %v762, %v2025
          %v2027 = vpop.f32.mrf.mxu0
          %v2028 = vadd.f32 %v766, %v2027
          %2029 = vmatprep.mubr.bf16.mxu0 %v602
          %2030 = vmatmul.mubr.bf16.gmra.mxu0 %v601
          %v2031 = vpop.f32.mrf.mxu0
          %v2032 = vadd.f32 %v762, %v2031
          %v2033 = vpop.f32.mrf.mxu0
          %v2034 = vadd.f32 %v766, %v2033
          %v2035 = vpop.f32.mrf.mxu0
          %v2036 = vadd.f32 %v762, %v2035
          %v2037 = vpop.f32.mrf.mxu0
          %v2038 = vadd.f32 %v766, %v2037
          %2039 = vmatprep.mubr.bf16.mxu0 %v606
          %2040 = vmatmul.mubr.bf16.gmra.mxu0 %v605
          %v2041 = vpop.f32.mrf.mxu0
          %v2042 = vadd.f32 %v762, %v2041
          %v2043 = vpop.f32.mrf.mxu0
          %v2044 = vadd.f32 %v766, %v2043
          %v2045 = vpop.f32.mrf.mxu0
          %v2046 = vadd.f32 %v762, %v2045
          %v2047 = vpop.f32.mrf.mxu0
          %v2048 = vadd.f32 %v766, %v2047
          %2049 = vmatprep.mubr.bf16.mxu0 %v610
          %2050 = vmatmul.mubr.bf16.gmra.mxu0 %v609
          %v2051 = vpop.f32.mrf.mxu0
          %v2052 = vadd.f32 %v762, %v2051
          %v2053 = vpop.f32.mrf.mxu0
          %v2054 = vadd.f32 %v766, %v2053
          %v2055 = vpop.f32.mrf.mxu0
          %v2056 = vadd.f32 %v762, %v2055
          %v2057 = vpop.f32.mrf.mxu0
          %v2058 = vadd.f32 %v766, %v2057
          %2059 = vmatprep.mubr.bf16.mxu0 %v614
          %2060 = vmatmul.mubr.bf16.gmra.mxu0 %v613
          %v2061 = vpop.f32.mrf.mxu0
          %v2062 = vadd.f32 %v762, %v2061
          %v2063 = vpop.f32.mrf.mxu0
          %v2064 = vadd.f32 %v766, %v2063
          %v2065 = vpop.f32.mrf.mxu0
          %v2066 = vadd.f32 %v762, %v2065
          %v2067 = vpop.f32.mrf.mxu0
          %v2068 = vadd.f32 %v766, %v2067
          %2069 = vmatprep.mubr.bf16.mxu0 %v618
          %2070 = vmatmul.mubr.bf16.gmra.mxu0 %v617
          %v2071 = vpop.f32.mrf.mxu0
          %v2072 = vadd.f32 %v762, %v2071
          %v2073 = vpop.f32.mrf.mxu0
          %v2074 = vadd.f32 %v766, %v2073
          %v2075 = vpop.f32.mrf.mxu0
          %v2076 = vadd.f32 %v762, %v2075
          %v2077 = vpop.f32.mrf.mxu0
          %v2078 = vadd.f32 %v766, %v2077
          %2079 = vdwg.mxu0
          %2080 = vmatprep.subr.bf16.mxu0 %v1250
          %2081 = vmatpush1.bf16.msra.mxu0 %v1249
          %2082 = vmatprep.subr.bf16.mxu0 %v1246
          %2083 = vmatpush1.bf16.msra.mxu0 %v1245
          %2084 = vmatprep.subr.bf16.mxu0 %v1242
          %2085 = vmatpush1.bf16.msra.mxu0 %v1241
          %2086 = vmatprep.subr.bf16.mxu0 %v1238
          %2087 = vmatpush1.bf16.msra.mxu0 %v1237
          %2088 = vmatprep.subr.bf16.mxu0 %v1234
          %2089 = vmatpush1.bf16.msra.mxu0 %v1233
          %2090 = vmatprep.subr.bf16.mxu0 %v1230
          %2091 = vmatpush1.bf16.msra.mxu0 %v1229
          %2092 = vmatprep.subr.bf16.mxu0 %v1226
          %2093 = vmatpush1.bf16.msra.mxu0 %v1225
          %2094 = vmatprep.subr.bf16.mxu0 %v1222
          %2095 = vmatpush1.bf16.msra.mxu0 %v1221
          %2096 = vmatprep.subr.bf16.mxu0 %v1282
          %2097 = vmatpush2.bf16.msra.mxu0 %v1281
          %2098 = vmatprep.subr.bf16.mxu0 %v1278
          %2099 = vmatpush2.bf16.msra.mxu0 %v1277
          %2100 = vmatprep.subr.bf16.mxu0 %v1274
          %2101 = vmatpush2.bf16.msra.mxu0 %v1273
          %2102 = vmatprep.subr.bf16.mxu0 %v1270
          %2103 = vmatpush2.bf16.msra.mxu0 %v1269
          %2104 = vmatprep.subr.bf16.mxu0 %v1266
          %2105 = vmatpush2.bf16.msra.mxu0 %v1265
          %2106 = vmatprep.subr.bf16.mxu0 %v1262
          %2107 = vmatpush2.bf16.msra.mxu0 %v1261
          %2108 = vmatprep.subr.bf16.mxu0 %v1258
          %2109 = vmatpush2.bf16.msra.mxu0 %v1257
          %2110 = vmatprep.subr.bf16.mxu0 %v1254
          %2111 = vmatpush2.bf16.msra.mxu0 %v1253
          %2112 = vmatprep.mubr.bf16.mxu0 %v548
          %2113 = vmatmul.mubr.bf16.gmra.mxu0 %v547
          %v2114 = vpop.f32.mrf.mxu0
          %v2115 = vadd.f32 %v1892, %v2114
          %v2116 = vpop.f32.mrf.mxu0
          %v2117 = vadd.f32 %v1894, %v2116
          %v2118 = vpop.f32.mrf.mxu0
          %v2119 = vadd.f32 %v1896, %v2118
          %v2120 = vpop.f32.mrf.mxu0
          %v2121 = vadd.f32 %v1898, %v2120
          %2122 = vmatprep.mubr.bf16.mxu0 %v552
          %2123 = vmatmul.mubr.bf16.gmra.mxu0 %v551
          %v2124 = vpop.f32.mrf.mxu0
          %v2125 = vadd.f32 %v1902, %v2124
          %v2126 = vpop.f32.mrf.mxu0
          %v2127 = vadd.f32 %v1904, %v2126
          %v2128 = vpop.f32.mrf.mxu0
          %v2129 = vadd.f32 %v1906, %v2128
          %v2130 = vpop.f32.mrf.mxu0
          %v2131 = vadd.f32 %v1908, %v2130
          %2132 = vmatprep.mubr.bf16.mxu0 %v556
          %2133 = vmatmul.mubr.bf16.gmra.mxu0 %v555
          %v2134 = vpop.f32.mrf.mxu0
          %v2135 = vadd.f32 %v1912, %v2134
          %v2136 = vpop.f32.mrf.mxu0
          %v2137 = vadd.f32 %v1914, %v2136
          %v2138 = vpop.f32.mrf.mxu0
          %v2139 = vadd.f32 %v1916, %v2138
          %v2140 = vpop.f32.mrf.mxu0
          %v2141 = vadd.f32 %v1918, %v2140
          %2142 = vmatprep.mubr.bf16.mxu0 %v560
          %2143 = vmatmul.mubr.bf16.gmra.mxu0 %v559
          %v2144 = vpop.f32.mrf.mxu0
          %v2145 = vadd.f32 %v1922, %v2144
          %v2146 = vpop.f32.mrf.mxu0
          %v2147 = vadd.f32 %v1924, %v2146
          %v2148 = vpop.f32.mrf.mxu0
          %v2149 = vadd.f32 %v1926, %v2148
          %v2150 = vpop.f32.mrf.mxu0
          %v2151 = vadd.f32 %v1928, %v2150
          %2152 = vmatprep.mubr.bf16.mxu0 %v564
          %2153 = vmatmul.mubr.bf16.gmra.mxu0 %v563
          %v2154 = vpop.f32.mrf.mxu0
          %v2155 = vadd.f32 %v1932, %v2154
          %v2156 = vpop.f32.mrf.mxu0
          %v2157 = vadd.f32 %v1934, %v2156
          %v2158 = vpop.f32.mrf.mxu0
          %v2159 = vadd.f32 %v1936, %v2158
          %v2160 = vpop.f32.mrf.mxu0
          %v2161 = vadd.f32 %v1938, %v2160
          %2162 = vmatprep.mubr.bf16.mxu0 %v568
          %2163 = vmatmul.mubr.bf16.gmra.mxu0 %v567
          %v2164 = vpop.f32.mrf.mxu0
          %v2165 = vadd.f32 %v1942, %v2164
          %v2166 = vpop.f32.mrf.mxu0
          %v2167 = vadd.f32 %v1944, %v2166
          %v2168 = vpop.f32.mrf.mxu0
          %v2169 = vadd.f32 %v1946, %v2168
          %v2170 = vpop.f32.mrf.mxu0
          %v2171 = vadd.f32 %v1948, %v2170
          %2172 = vmatprep.mubr.bf16.mxu0 %v572
          %2173 = vmatmul.mubr.bf16.gmra.mxu0 %v571
          %v2174 = vpop.f32.mrf.mxu0
          %v2175 = vadd.f32 %v1952, %v2174
          %v2176 = vpop.f32.mrf.mxu0
          %v2177 = vadd.f32 %v1954, %v2176
          %v2178 = vpop.f32.mrf.mxu0
          %v2179 = vadd.f32 %v1956, %v2178
          %v2180 = vpop.f32.mrf.mxu0
          %v2181 = vadd.f32 %v1958, %v2180
          %2182 = vmatprep.mubr.bf16.mxu0 %v576
          %2183 = vmatmul.mubr.bf16.gmra.mxu0 %v575
          %v2184 = vpop.f32.mrf.mxu0
          %v2185 = vadd.f32 %v1962, %v2184
          %v2186 = vpop.f32.mrf.mxu0
          %v2187 = vadd.f32 %v1964, %v2186
          %v2188 = vpop.f32.mrf.mxu0
          %v2189 = vadd.f32 %v1966, %v2188
          %v2190 = vpop.f32.mrf.mxu0
          %v2191 = vadd.f32 %v1968, %v2190
          %2192 = vmatprep.mubr.bf16.mxu0 %v580
          %2193 = vmatmul.mubr.bf16.gmra.mxu0 %v579
          %v2194 = vpop.f32.mrf.mxu0
          %v2195 = vadd.f32 %v1972, %v2194
          %v2196 = vpop.f32.mrf.mxu0
          %v2197 = vadd.f32 %v1974, %v2196
          %v2198 = vpop.f32.mrf.mxu0
          %v2199 = vadd.f32 %v1976, %v2198
          %v2200 = vpop.f32.mrf.mxu0
          %v2201 = vadd.f32 %v1978, %v2200
          %2202 = vmatprep.mubr.bf16.mxu0 %v584
          %2203 = vmatmul.mubr.bf16.gmra.mxu0 %v583
          %v2204 = vpop.f32.mrf.mxu0
          %v2205 = vadd.f32 %v1982, %v2204
          %v2206 = vpop.f32.mrf.mxu0
          %v2207 = vadd.f32 %v1984, %v2206
          %v2208 = vpop.f32.mrf.mxu0
          %v2209 = vadd.f32 %v1986, %v2208
          %v2210 = vpop.f32.mrf.mxu0
          %v2211 = vadd.f32 %v1988, %v2210
          %2212 = vmatprep.mubr.bf16.mxu0 %v588
          %2213 = vmatmul.mubr.bf16.gmra.mxu0 %v587
          %v2214 = vpop.f32.mrf.mxu0
          %v2215 = vadd.f32 %v1992, %v2214
          %v2216 = vpop.f32.mrf.mxu0
          %v2217 = vadd.f32 %v1994, %v2216
          %v2218 = vpop.f32.mrf.mxu0
          %v2219 = vadd.f32 %v1996, %v2218
          %v2220 = vpop.f32.mrf.mxu0
          %v2221 = vadd.f32 %v1998, %v2220
          %2222 = vmatprep.mubr.bf16.mxu0 %v592
          %2223 = vmatmul.mubr.bf16.gmra.mxu0 %v591
          %v2224 = vpop.f32.mrf.mxu0
          %v2225 = vadd.f32 %v2002, %v2224
          %v2226 = vpop.f32.mrf.mxu0
          %v2227 = vadd.f32 %v2004, %v2226
          %v2228 = vpop.f32.mrf.mxu0
          %v2229 = vadd.f32 %v2006, %v2228
          %v2230 = vpop.f32.mrf.mxu0
          %v2231 = vadd.f32 %v2008, %v2230
          %2232 = vmatprep.mubr.bf16.mxu0 %v596
          %2233 = vmatmul.mubr.bf16.gmra.mxu0 %v595
          %v2234 = vpop.f32.mrf.mxu0
          %v2235 = vadd.f32 %v2012, %v2234
          %v2236 = vpop.f32.mrf.mxu0
          %v2237 = vadd.f32 %v2014, %v2236
          %v2238 = vpop.f32.mrf.mxu0
          %v2239 = vadd.f32 %v2016, %v2238
          %v2240 = vpop.f32.mrf.mxu0
          %v2241 = vadd.f32 %v2018, %v2240
          %2242 = vmatprep.mubr.bf16.mxu0 %v600
          %2243 = vmatmul.mubr.bf16.gmra.mxu0 %v599
          %v2244 = vpop.f32.mrf.mxu0
          %v2245 = vadd.f32 %v2022, %v2244
          %v2246 = vpop.f32.mrf.mxu0
          %v2247 = vadd.f32 %v2024, %v2246
          %v2248 = vpop.f32.mrf.mxu0
          %v2249 = vadd.f32 %v2026, %v2248
          %v2250 = vpop.f32.mrf.mxu0
          %v2251 = vadd.f32 %v2028, %v2250
          %2252 = vmatprep.mubr.bf16.mxu0 %v604
          %2253 = vmatmul.mubr.bf16.gmra.mxu0 %v603
          %v2254 = vpop.f32.mrf.mxu0
          %v2255 = vadd.f32 %v2032, %v2254
          %v2256 = vpop.f32.mrf.mxu0
          %v2257 = vadd.f32 %v2034, %v2256
          %v2258 = vpop.f32.mrf.mxu0
          %v2259 = vadd.f32 %v2036, %v2258
          %v2260 = vpop.f32.mrf.mxu0
          %v2261 = vadd.f32 %v2038, %v2260
          %2262 = vmatprep.mubr.bf16.mxu0 %v608
          %2263 = vmatmul.mubr.bf16.gmra.mxu0 %v607
          %v2264 = vpop.f32.mrf.mxu0
          %v2265 = vadd.f32 %v2042, %v2264
          %v2266 = vpop.f32.mrf.mxu0
          %v2267 = vadd.f32 %v2044, %v2266
          %v2268 = vpop.f32.mrf.mxu0
          %v2269 = vadd.f32 %v2046, %v2268
          %v2270 = vpop.f32.mrf.mxu0
          %v2271 = vadd.f32 %v2048, %v2270
          %2272 = vmatprep.mubr.bf16.mxu0 %v612
          %2273 = vmatmul.mubr.bf16.gmra.mxu0 %v611
          %v2274 = vpop.f32.mrf.mxu0
          %v2275 = vadd.f32 %v2052, %v2274
          %v2276 = vpop.f32.mrf.mxu0
          %v2277 = vadd.f32 %v2054, %v2276
          %v2278 = vpop.f32.mrf.mxu0
          %v2279 = vadd.f32 %v2056, %v2278
          %v2280 = vpop.f32.mrf.mxu0
          %v2281 = vadd.f32 %v2058, %v2280
          %2282 = vmatprep.mubr.bf16.mxu0 %v616
          %2283 = vmatmul.mubr.bf16.gmra.mxu0 %v615
          %v2284 = vpop.f32.mrf.mxu0
          %v2285 = vadd.f32 %v2062, %v2284
          %v2286 = vpop.f32.mrf.mxu0
          %v2287 = vadd.f32 %v2064, %v2286
          %v2288 = vpop.f32.mrf.mxu0
          %v2289 = vadd.f32 %v2066, %v2288
          %v2290 = vpop.f32.mrf.mxu0
          %v2291 = vadd.f32 %v2068, %v2290
          %2292 = vmatprep.mubr.bf16.mxu0 %v620
          %2293 = vmatmul.mubr.bf16.gmra.mxu0 %v619
          %v2294 = vpop.f32.mrf.mxu0
          %v2295 = vadd.f32 %v2072, %v2294
          %v2296 = vpop.f32.mrf.mxu0
          %v2297 = vadd.f32 %v2074, %v2296
          %v2298 = vpop.f32.mrf.mxu0
          %v2299 = vadd.f32 %v2076, %v2298
          %v2300 = vpop.f32.mrf.mxu0
          %v2301 = vadd.f32 %v2078, %v2300
          %2302 = vdwg.mxu0
          %s2303 = smul.u32 %s31, 152
          %s2304 = smul.addr %s2303, 8
          %s2305 = scalar_lea.vmem [#allocation4], %s2304
          %2306 = vst [vmem:[%s2305] sm:$0xff] %v1669
          %2307 = vst [vmem:[%s2305 + $0x8] sm:$0xff] %v1671
          %2308 = vst [vmem:[%s2305 + $0x10] sm:$0xff] %v2115
          %2309 = vst [vmem:[%s2305 + $0x18] sm:$0xff] %v2117
          %2310 = vst [vmem:[%s2305 + $0x20] sm:$0xff] %v1673
          %2311 = vst [vmem:[%s2305 + $0x28] sm:$0xff] %v1675
          %2312 = vst [vmem:[%s2305 + $0x30] sm:$0xff] %v2119
          %2313 = vst [vmem:[%s2305 + $0x38] sm:$0xff] %v2121
          %2314 = vst [vmem:[%s2305 + $0x40] sm:$0xff] %v1679
          %2315 = vst [vmem:[%s2305 + $0x48] sm:$0xff] %v1681
          %2316 = vst [vmem:[%s2305 + $0x50] sm:$0xff] %v2125
          %2317 = vst [vmem:[%s2305 + $0x58] sm:$0xff] %v2127
          %2318 = vst [vmem:[%s2305 + $0x60] sm:$0xff] %v1683
          %2319 = vst [vmem:[%s2305 + $0x68] sm:$0xff] %v1685
          %2320 = vst [vmem:[%s2305 + $0x70] sm:$0xff] %v2129
          %2321 = vst [vmem:[%s2305 + $0x78] sm:$0xff] %v2131
          %2322 = vst [vmem:[%s2305 + $0x80] sm:$0xff] %v1689
          %2323 = vst [vmem:[%s2305 + $0x88] sm:$0xff] %v1691
          %2324 = vst [vmem:[%s2305 + $0x90] sm:$0xff] %v2135
          %2325 = vst [vmem:[%s2305 + $0x98] sm:$0xff] %v2137
          %2326 = vst [vmem:[%s2305 + $0xa0] sm:$0xff] %v1693
          %2327 = vst [vmem:[%s2305 + $0xa8] sm:$0xff] %v1695
          %2328 = vst [vmem:[%s2305 + $0xb0] sm:$0xff] %v2139
          %2329 = vst [vmem:[%s2305 + $0xb8] sm:$0xff] %v2141
          %2330 = vst [vmem:[%s2305 + $0xc0] sm:$0xff] %v1699
          %2331 = vst [vmem:[%s2305 + $0xc8] sm:$0xff] %v1701
          %2332 = vst [vmem:[%s2305 + $0xd0] sm:$0xff] %v2145
          %2333 = vst [vmem:[%s2305 + $0xd8] sm:$0xff] %v2147
          %2334 = vst [vmem:[%s2305 + $0xe0] sm:$0xff] %v1703
          %2335 = vst [vmem:[%s2305 + $0xe8] sm:$0xff] %v1705
          %2336 = vst [vmem:[%s2305 + $0xf0] sm:$0xff] %v2149
          %2337 = vst [vmem:[%s2305 + $0xf8] sm:$0xff] %v2151
          %2338 = vst [vmem:[%s2305 + $0x100] sm:$0xff] %v1709
          %2339 = vst [vmem:[%s2305 + $0x108] sm:$0xff] %v1711
          %2340 = vst [vmem:[%s2305 + $0x110] sm:$0xff] %v2155
          %2341 = vst [vmem:[%s2305 + $0x118] sm:$0xff] %v2157
          %2342 = vst [vmem:[%s2305 + $0x120] sm:$0xff] %v1713
          %2343 = vst [vmem:[%s2305 + $0x128] sm:$0xff] %v1715
          %2344 = vst [vmem:[%s2305 + $0x130] sm:$0xff] %v2159
          %2345 = vst [vmem:[%s2305 + $0x138] sm:$0xff] %v2161
          %2346 = vst [vmem:[%s2305 + $0x140] sm:$0xff] %v1719
          %2347 = vst [vmem:[%s2305 + $0x148] sm:$0xff] %v1721
          %2348 = vst [vmem:[%s2305 + $0x150] sm:$0xff] %v2165
          %2349 = vst [vmem:[%s2305 + $0x158] sm:$0xff] %v2167
          %2350 = vst [vmem:[%s2305 + $0x160] sm:$0xff] %v1723
          %2351 = vst [vmem:[%s2305 + $0x168] sm:$0xff] %v1725
          %2352 = vst [vmem:[%s2305 + $0x170] sm:$0xff] %v2169
          %2353 = vst [vmem:[%s2305 + $0x178] sm:$0xff] %v2171
          %2354 = vst [vmem:[%s2305 + $0x180] sm:$0xff] %v1729
          %2355 = vst [vmem:[%s2305 + $0x188] sm:$0xff] %v1731
          %2356 = vst [vmem:[%s2305 + $0x190] sm:$0xff] %v2175
          %2357 = vst [vmem:[%s2305 + $0x198] sm:$0xff] %v2177
          %2358 = vst [vmem:[%s2305 + $0x1a0] sm:$0xff] %v1733
          %2359 = vst [vmem:[%s2305 + $0x1a8] sm:$0xff] %v1735
          %2360 = vst [vmem:[%s2305 + $0x1b0] sm:$0xff] %v2179
          %2361 = vst [vmem:[%s2305 + $0x1b8] sm:$0xff] %v2181
          %2362 = vst [vmem:[%s2305 + $0x1c0] sm:$0xff] %v1739
          %2363 = vst [vmem:[%s2305 + $0x1c8] sm:$0xff] %v1741
          %2364 = vst [vmem:[%s2305 + $0x1d0] sm:$0xff] %v2185
          %2365 = vst [vmem:[%s2305 + $0x1d8] sm:$0xff] %v2187
          %2366 = vst [vmem:[%s2305 + $0x1e0] sm:$0xff] %v1743
          %2367 = vst [vmem:[%s2305 + $0x1e8] sm:$0xff] %v1745
          %2368 = vst [vmem:[%s2305 + $0x1f0] sm:$0xff] %v2189
          %2369 = vst [vmem:[%s2305 + $0x1f8] sm:$0xff] %v2191
          %2370 = vst [vmem:[%s2305 + $0x200] sm:$0xff] %v1749
          %2371 = vst [vmem:[%s2305 + $0x208] sm:$0xff] %v1751
          %2372 = vst [vmem:[%s2305 + $0x210] sm:$0xff] %v2195
          %2373 = vst [vmem:[%s2305 + $0x218] sm:$0xff] %v2197
          %2374 = vst [vmem:[%s2305 + $0x220] sm:$0xff] %v1753
          %2375 = vst [vmem:[%s2305 + $0x228] sm:$0xff] %v1755
          %2376 = vst [vmem:[%s2305 + $0x230] sm:$0xff] %v2199
          %2377 = vst [vmem:[%s2305 + $0x238] sm:$0xff] %v2201
          %2378 = vst [vmem:[%s2305 + $0x240] sm:$0xff] %v1759
          %2379 = vst [vmem:[%s2305 + $0x248] sm:$0xff] %v1761
          %2380 = vst [vmem:[%s2305 + $0x250] sm:$0xff] %v2205
          %2381 = vst [vmem:[%s2305 + $0x258] sm:$0xff] %v2207
          %2382 = vst [vmem:[%s2305 + $0x260] sm:$0xff] %v1763
          %2383 = vst [vmem:[%s2305 + $0x268] sm:$0xff] %v1765
          %2384 = vst [vmem:[%s2305 + $0x270] sm:$0xff] %v2209
          %2385 = vst [vmem:[%s2305 + $0x278] sm:$0xff] %v2211
          %2386 = vst [vmem:[%s2305 + $0x280] sm:$0xff] %v1769
          %2387 = vst [vmem:[%s2305 + $0x288] sm:$0xff] %v1771
          %2388 = vst [vmem:[%s2305 + $0x290] sm:$0xff] %v2215
          %2389 = vst [vmem:[%s2305 + $0x298] sm:$0xff] %v2217
          %2390 = vst [vmem:[%s2305 + $0x2a0] sm:$0xff] %v1773
          %2391 = vst [vmem:[%s2305 + $0x2a8] sm:$0xff] %v1775
          %2392 = vst [vmem:[%s2305 + $0x2b0] sm:$0xff] %v2219
          %2393 = vst [vmem:[%s2305 + $0x2b8] sm:$0xff] %v2221
          %2394 = vst [vmem:[%s2305 + $0x2c0] sm:$0xff] %v1779
          %2395 = vst [vmem:[%s2305 + $0x2c8] sm:$0xff] %v1781
          %2396 = vst [vmem:[%s2305 + $0x2d0] sm:$0xff] %v2225
          %2397 = vst [vmem:[%s2305 + $0x2d8] sm:$0xff] %v2227
          %2398 = vst [vmem:[%s2305 + $0x2e0] sm:$0xff] %v1783
          %2399 = vst [vmem:[%s2305 + $0x2e8] sm:$0xff] %v1785
          %2400 = vst [vmem:[%s2305 + $0x2f0] sm:$0xff] %v2229
          %2401 = vst [vmem:[%s2305 + $0x2f8] sm:$0xff] %v2231
          %2402 = vst [vmem:[%s2305 + $0x300] sm:$0xff] %v1789
          %2403 = vst [vmem:[%s2305 + $0x308] sm:$0xff] %v1791
          %2404 = vst [vmem:[%s2305 + $0x310] sm:$0xff] %v2235
          %2405 = vst [vmem:[%s2305 + $0x318] sm:$0xff] %v2237
          %2406 = vst [vmem:[%s2305 + $0x320] sm:$0xff] %v1793
          %2407 = vst [vmem:[%s2305 + $0x328] sm:$0xff] %v1795
          %2408 = vst [vmem:[%s2305 + $0x330] sm:$0xff] %v2239
          %2409 = vst [vmem:[%s2305 + $0x338] sm:$0xff] %v2241
          %2410 = vst [vmem:[%s2305 + $0x340] sm:$0xff] %v1799
          %2411 = vst [vmem:[%s2305 + $0x348] sm:$0xff] %v1801
          %2412 = vst [vmem:[%s2305 + $0x350] sm:$0xff] %v2245
          %2413 = vst [vmem:[%s2305 + $0x358] sm:$0xff] %v2247
          %2414 = vst [vmem:[%s2305 + $0x360] sm:$0xff] %v1803
          %2415 = vst [vmem:[%s2305 + $0x368] sm:$0xff] %v1805
          %2416 = vst [vmem:[%s2305 + $0x370] sm:$0xff] %v2249
          %2417 = vst [vmem:[%s2305 + $0x378] sm:$0xff] %v2251
          %2418 = vst [vmem:[%s2305 + $0x380] sm:$0xff] %v1809
          %2419 = vst [vmem:[%s2305 + $0x388] sm:$0xff] %v1811
          %2420 = vst [vmem:[%s2305 + $0x390] sm:$0xff] %v2255
          %2421 = vst [vmem:[%s2305 + $0x398] sm:$0xff] %v2257
          %2422 = vst [vmem:[%s2305 + $0x3a0] sm:$0xff] %v1813
          %2423 = vst [vmem:[%s2305 + $0x3a8] sm:$0xff] %v1815
          %2424 = vst [vmem:[%s2305 + $0x3b0] sm:$0xff] %v2259
          %2425 = vst [vmem:[%s2305 + $0x3b8] sm:$0xff] %v2261
          %2426 = vst [vmem:[%s2305 + $0x3c0] sm:$0xff] %v1819
          %2427 = vst [vmem:[%s2305 + $0x3c8] sm:$0xff] %v1821
          %2428 = vst [vmem:[%s2305 + $0x3d0] sm:$0xff] %v2265
          %2429 = vst [vmem:[%s2305 + $0x3d8] sm:$0xff] %v2267
          %2430 = vst [vmem:[%s2305 + $0x3e0] sm:$0xff] %v1823
          %2431 = vst [vmem:[%s2305 + $0x3e8] sm:$0xff] %v1825
          %2432 = vst [vmem:[%s2305 + $0x3f0] sm:$0xff] %v2269
          %2433 = vst [vmem:[%s2305 + $0x3f8] sm:$0xff] %v2271
          %2434 = vst [vmem:[%s2305 + $0x400] sm:$0xff] %v1829
          %2435 = vst [vmem:[%s2305 + $0x408] sm:$0xff] %v1831
          %2436 = vst [vmem:[%s2305 + $0x410] sm:$0xff] %v2275
          %2437 = vst [vmem:[%s2305 + $0x418] sm:$0xff] %v2277
          %2438 = vst [vmem:[%s2305 + $0x420] sm:$0xff] %v1833
          %2439 = vst [vmem:[%s2305 + $0x428] sm:$0xff] %v1835
          %2440 = vst [vmem:[%s2305 + $0x430] sm:$0xff] %v2279
          %2441 = vst [vmem:[%s2305 + $0x438] sm:$0xff] %v2281
          %2442 = vst [vmem:[%s2305 + $0x440] sm:$0xff] %v1839
          %2443 = vst [vmem:[%s2305 + $0x448] sm:$0xff] %v1841
          %2444 = vst [vmem:[%s2305 + $0x450] sm:$0xff] %v2285
          %2445 = vst [vmem:[%s2305 + $0x458] sm:$0xff] %v2287
          %2446 = vst [vmem:[%s2305 + $0x460] sm:$0xff] %v1843
          %2447 = vst [vmem:[%s2305 + $0x468] sm:$0xff] %v1845
          %2448 = vst [vmem:[%s2305 + $0x470] sm:$0xff] %v2289
          %2449 = vst [vmem:[%s2305 + $0x478] sm:$0xff] %v2291
          %2450 = vst [vmem:[%s2305 + $0x480] sm:$0xff] %v1849
          %2451 = vst [vmem:[%s2305 + $0x488] sm:$0xff] %v1851
          %2452 = vst [vmem:[%s2305 + $0x490] sm:$0xff] %v2295
          %2453 = vst [vmem:[%s2305 + $0x498] sm:$0xff] %v2297
          %2454 = vst [vmem:[%s2305 + $0x4a0] sm:$0xff] %v1853
          %2455 = vst [vmem:[%s2305 + $0x4a8] sm:$0xff] %v1855
          %2456 = vst [vmem:[%s2305 + $0x4b0] sm:$0xff] %v2299
          %2457 = vst [vmem:[%s2305 + $0x4b8] sm:$0xff] %v2301
          %v2458 = vld [vmem:[#allocation2] sm:$0xf]
          %v2459 = vadd.f32 %v1669, %v1673
          %v2460 = vadd.f32 %v2459, %v1679
          %v2461 = vadd.f32 %v2460, %v1683
          %v2462 = vadd.f32 %v2461, %v1689
          %v2463 = vadd.f32 %v2462, %v1693
          %v2464 = vadd.f32 %v2463, %v1699
          %v2465 = vadd.f32 %v2464, %v1703
          %v2466 = vadd.f32 %v2465, %v1709
          %v2467 = vadd.f32 %v2466, %v1713
          %v2468 = vadd.f32 %v2467, %v1719
          %v2469 = vadd.f32 %v2468, %v1723
          %v2470 = vadd.f32 %v2469, %v1729
          %v2471 = vadd.f32 %v2470, %v1733
          %v2472 = vadd.f32 %v2471, %v1739
          %v2473 = vadd.f32 %v2472, %v1743
          %v2474 = vadd.f32 %v2473, %v1749
          %v2475 = vadd.f32 %v2474, %v1753
          %v2476 = vadd.f32 %v2475, %v1759
          %v2477 = vadd.f32 %v2476, %v1763
          %v2478 = vadd.f32 %v2477, %v1769
          %v2479 = vadd.f32 %v2478, %v1773
          %v2480 = vadd.f32 %v2479, %v1779
          %v2481 = vadd.f32 %v2480, %v1783
          %v2482 = vadd.f32 %v2481, %v1789
          %v2483 = vadd.f32 %v2482, %v1793
          %v2484 = vadd.f32 %v2483, %v1799
          %v2485 = vadd.f32 %v2484, %v1803
          %v2486 = vadd.f32 %v2485, %v1809
          %v2487 = vadd.f32 %v2486, %v1813
          %v2488 = vadd.f32 %v2487, %v1819
          %v2489 = vadd.f32 %v2488, %v1823
          %v2490 = vadd.f32 %v2489, %v1829
          %v2491 = vadd.f32 %v2490, %v1833
          %v2492 = vadd.f32 %v2491, %v1839
          %v2493 = vadd.f32 %v2492, %v1843
          %v2494 = vadd.f32 %v2493, %v1849
          %v2495 = vadd.f32 %v2494, %v1853
          %v2496 = vrot.slane %v2495, 4
          %v2497 = vadd.f32 %v2495, %v2496
          %v2498 = vrot.slane %v2497, 2
          %v2499 = vadd.f32 %v2497, %v2498
          %v2500 = vrot.slane %v2499, 1
          %v2501 = vadd.f32 %v2499, %v2500
          %v2502 = vadd.f32 %v1671, %v1675
          %v2503 = vadd.f32 %v2502, %v1681
          %v2504 = vadd.f32 %v2503, %v1685
          %v2505 = vadd.f32 %v2504, %v1691
          %v2506 = vadd.f32 %v2505, %v1695
          %v2507 = vadd.f32 %v2506, %v1701
          %v2508 = vadd.f32 %v2507, %v1705
          %v2509 = vadd.f32 %v2508, %v1711
          %v2510 = vadd.f32 %v2509, %v1715
          %v2511 = vadd.f32 %v2510, %v1721
          %v2512 = vadd.f32 %v2511, %v1725
          %v2513 = vadd.f32 %v2512, %v1731
          %v2514 = vadd.f32 %v2513, %v1735
          %v2515 = vadd.f32 %v2514, %v1741
          %v2516 = vadd.f32 %v2515, %v1745
          %v2517 = vadd.f32 %v2516, %v1751
          %v2518 = vadd.f32 %v2517, %v1755
          %v2519 = vadd.f32 %v2518, %v1761
          %v2520 = vadd.f32 %v2519, %v1765
          %v2521 = vadd.f32 %v2520, %v1771
          %v2522 = vadd.f32 %v2521, %v1775
          %v2523 = vadd.f32 %v2522, %v1781
          %v2524 = vadd.f32 %v2523, %v1785
          %v2525 = vadd.f32 %v2524, %v1791
          %v2526 = vadd.f32 %v2525, %v1795
          %v2527 = vadd.f32 %v2526, %v1801
          %v2528 = vadd.f32 %v2527, %v1805
          %v2529 = vadd.f32 %v2528, %v1811
          %v2530 = vadd.f32 %v2529, %v1815
          %v2531 = vadd.f32 %v2530, %v1821
          %v2532 = vadd.f32 %v2531, %v1825
          %v2533 = vadd.f32 %v2532, %v1831
          %v2534 = vadd.f32 %v2533, %v1835
          %v2535 = vadd.f32 %v2534, %v1841
          %v2536 = vadd.f32 %v2535, %v1845
          %v2537 = vadd.f32 %v2536, %v1851
          %v2538 = vadd.f32 %v2537, %v1855
          %v2539 = vrot.slane %v2538, 4
          %v2540 = vadd.f32 %v2538, %v2539
          %v2541 = vrot.slane %v2540, 2
          %v2542 = vadd.f32 %v2540, %v2541
          %v2543 = vrot.slane %v2542, 1
          %v2544 = vadd.f32 %v2542, %v2543
          %v2545 = vadd.f32 %v2115, %v2119
          %v2546 = vadd.f32 %v2545, %v2125
          %v2547 = vadd.f32 %v2546, %v2129
          %v2548 = vadd.f32 %v2547, %v2135
          %v2549 = vadd.f32 %v2548, %v2139
          %v2550 = vadd.f32 %v2549, %v2145
          %v2551 = vadd.f32 %v2550, %v2149
          %v2552 = vadd.f32 %v2551, %v2155
          %v2553 = vadd.f32 %v2552, %v2159
          %v2554 = vadd.f32 %v2553, %v2165
          %v2555 = vadd.f32 %v2554, %v2169
          %v2556 = vadd.f32 %v2555, %v2175
          %v2557 = vadd.f32 %v2556, %v2179
          %v2558 = vadd.f32 %v2557, %v2185
          %v2559 = vadd.f32 %v2558, %v2189
          %v2560 = vadd.f32 %v2559, %v2195
          %v2561 = vadd.f32 %v2560, %v2199
          %v2562 = vadd.f32 %v2561, %v2205
          %v2563 = vadd.f32 %v2562, %v2209
          %v2564 = vadd.f32 %v2563, %v2215
          %v2565 = vadd.f32 %v2564, %v2219
          %v2566 = vadd.f32 %v2565, %v2225
          %v2567 = vadd.f32 %v2566, %v2229
          %v2568 = vadd.f32 %v2567, %v2235
          %v2569 = vadd.f32 %v2568, %v2239
          %v2570 = vadd.f32 %v2569, %v2245
          %v2571 = vadd.f32 %v2570, %v2249
          %v2572 = vadd.f32 %v2571, %v2255
          %v2573 = vadd.f32 %v2572, %v2259
          %v2574 = vadd.f32 %v2573, %v2265
          %v2575 = vadd.f32 %v2574, %v2269
          %v2576 = vadd.f32 %v2575, %v2275
          %v2577 = vadd.f32 %v2576, %v2279
          %v2578 = vadd.f32 %v2577, %v2285
          %v2579 = vadd.f32 %v2578, %v2289
          %v2580 = vadd.f32 %v2579, %v2295
          %v2581 = vadd.f32 %v2580, %v2299
          %v2582 = vrot.slane %v2581, 4
          %v2583 = vadd.f32 %v2581, %v2582
          %v2584 = vrot.slane %v2583, 2
          %v2585 = vadd.f32 %v2583, %v2584
          %v2586 = vrot.slane %v2585, 1
          %v2587 = vadd.f32 %v2585, %v2586
          %v2588 = vadd.f32 %v2117, %v2121
          %v2589 = vadd.f32 %v2588, %v2127
          %v2590 = vadd.f32 %v2589, %v2131
          %v2591 = vadd.f32 %v2590, %v2137
          %v2592 = vadd.f32 %v2591, %v2141
          %v2593 = vadd.f32 %v2592, %v2147
          %v2594 = vadd.f32 %v2593, %v2151
          %v2595 = vadd.f32 %v2594, %v2157
          %v2596 = vadd.f32 %v2595, %v2161
          %v2597 = vadd.f32 %v2596, %v2167
          %v2598 = vadd.f32 %v2597, %v2171
          %v2599 = vadd.f32 %v2598, %v2177
          %v2600 = vadd.f32 %v2599, %v2181
          %v2601 = vadd.f32 %v2600, %v2187
          %v2602 = vadd.f32 %v2601, %v2191
          %v2603 = vadd.f32 %v2602, %v2197
          %v2604 = vadd.f32 %v2603, %v2201
          %v2605 = vadd.f32 %v2604, %v2207
          %v2606 = vadd.f32 %v2605, %v2211
          %v2607 = vadd.f32 %v2606, %v2217
          %v2608 = vadd.f32 %v2607, %v2221
          %v2609 = vadd.f32 %v2608, %v2227
          %v2610 = vadd.f32 %v2609, %v2231
          %v2611 = vadd.f32 %v2610, %v2237
          %v2612 = vadd.f32 %v2611, %v2241
          %v2613 = vadd.f32 %v2612, %v2247
          %v2614 = vadd.f32 %v2613, %v2251
          %v2615 = vadd.f32 %v2614, %v2257
          %v2616 = vadd.f32 %v2615, %v2261
          %v2617 = vadd.f32 %v2616, %v2267
          %v2618 = vadd.f32 %v2617, %v2271
          %v2619 = vadd.f32 %v2618, %v2277
          %v2620 = vadd.f32 %v2619, %v2281
          %v2621 = vadd.f32 %v2620, %v2287
          %v2622 = vadd.f32 %v2621, %v2291
          %v2623 = vadd.f32 %v2622, %v2297
          %v2624 = vadd.f32 %v2623, %v2301
          %v2625 = vrot.slane %v2624, 4
          %v2626 = vadd.f32 %v2624, %v2625
          %v2627 = vrot.slane %v2626, 2
          %v2628 = vadd.f32 %v2626, %v2627
          %v2629 = vrot.slane %v2628, 1
          %v2630 = vadd.f32 %v2628, %v2629
          %v2635 = vcombine.low %v2501, %v2544
          %v2636 = vcombine.low %v2587, %v2630
          %v2638 = vunpack.c.l.s4 1966171168
          %v2639 = vunpack.c.0.s8 %v2638
          %v2640 = vlaneseq
          %v2641 = vshrl.u32 %v2640, 7
          %v2642 = vsub.s32 %v2639, %v2641
          %v2643 = vrot.slane %v2635, %v2642
          %v2645 = vunpack.c.l.s4 1966171168
          %v2646 = vunpack.c.0.s8 %v2645
          %v2647 = vlaneseq
          %v2648 = vshrl.u32 %v2647, 7
          %v2649 = vsub.s32 %v2646, %v2648
          %v2650 = vrot.slane %v2636, %v2649
          %v2651 = vcombine.low %v2643, %v2650
          %v2653 = vunpack.c.l.s4 1966171168
          %v2654 = vunpack.c.0.s8 %v2653
          %v2655 = vlaneseq
          %v2656 = vshrl.u32 %v2655, 7
          %v2657 = vsub.s32 %v2654, %v2656
          %v2658 = vrot.slane %v2651, %v2657
          %v2660 = vadd.f32 %v2458, %v2658
          %v2661 = vlaneseq
          %vm2662 = vcmp.ge.s32.totalorder %v2661, 0
          %vm2663 = vcmp.lt.s32.totalorder %v2661, 512
          %vm2664 = vmand %vm2662, %vm2663
          %2665 = vst.msk [vmem:[#allocation2] sm:$0xf] %vm2664, %v2660
          %v2666 = vld [vmem:[#allocation3] sm:$0xf]
          %v2667 = vmul.f32 %v1669, %v1669
          %v2668 = vmul.f32 %v1671, %v1671
          %v2669 = vmul.f32 %v2115, %v2115
          %v2670 = vmul.f32 %v2117, %v2117
          %v2671 = vmul.f32 %v1673, %v1673
          %v2672 = vmul.f32 %v1675, %v1675
          %v2673 = vmul.f32 %v2119, %v2119
          %v2674 = vmul.f32 %v2121, %v2121
          %v2675 = vmul.f32 %v1679, %v1679
          %v2676 = vmul.f32 %v1681, %v1681
          %v2677 = vmul.f32 %v2125, %v2125
          %v2678 = vmul.f32 %v2127, %v2127
          %v2679 = vmul.f32 %v1683, %v1683
          %v2680 = vmul.f32 %v1685, %v1685
          %v2681 = vmul.f32 %v2129, %v2129
          %v2682 = vmul.f32 %v2131, %v2131
          %v2683 = vmul.f32 %v1689, %v1689
          %v2684 = vmul.f32 %v1691, %v1691
          %v2685 = vmul.f32 %v2135, %v2135
          %v2686 = vmul.f32 %v2137, %v2137
          %v2687 = vmul.f32 %v1693, %v1693
          %v2688 = vmul.f32 %v1695, %v1695
          %v2689 = vmul.f32 %v2139, %v2139
          %v2690 = vmul.f32 %v2141, %v2141
          %v2691 = vmul.f32 %v1699, %v1699
          %v2692 = vmul.f32 %v1701, %v1701
          %v2693 = vmul.f32 %v2145, %v2145
          %v2694 = vmul.f32 %v2147, %v2147
          %v2695 = vmul.f32 %v1703, %v1703
          %v2696 = vmul.f32 %v1705, %v1705
          %v2697 = vmul.f32 %v2149, %v2149
          %v2698 = vmul.f32 %v2151, %v2151
          %v2699 = vmul.f32 %v1709, %v1709
          %v2700 = vmul.f32 %v1711, %v1711
          %v2701 = vmul.f32 %v2155, %v2155
          %v2702 = vmul.f32 %v2157, %v2157
          %v2703 = vmul.f32 %v1713, %v1713
          %v2704 = vmul.f32 %v1715, %v1715
          %v2705 = vmul.f32 %v2159, %v2159
          %v2706 = vmul.f32 %v2161, %v2161
          %v2707 = vmul.f32 %v1719, %v1719
          %v2708 = vmul.f32 %v1721, %v1721
          %v2709 = vmul.f32 %v2165, %v2165
          %v2710 = vmul.f32 %v2167, %v2167
          %v2711 = vmul.f32 %v1723, %v1723
          %v2712 = vmul.f32 %v1725, %v1725
          %v2713 = vmul.f32 %v2169, %v2169
          %v2714 = vmul.f32 %v2171, %v2171
          %v2715 = vmul.f32 %v1729, %v1729
          %v2716 = vmul.f32 %v1731, %v1731
          %v2717 = vmul.f32 %v2175, %v2175
          %v2718 = vmul.f32 %v2177, %v2177
          %v2719 = vmul.f32 %v1733, %v1733
          %v2720 = vmul.f32 %v1735, %v1735
          %v2721 = vmul.f32 %v2179, %v2179
          %v2722 = vmul.f32 %v2181, %v2181
          %v2723 = vmul.f32 %v1739, %v1739
          %v2724 = vmul.f32 %v1741, %v1741
          %v2725 = vmul.f32 %v2185, %v2185
          %v2726 = vmul.f32 %v2187, %v2187
          %v2727 = vmul.f32 %v1743, %v1743
          %v2728 = vmul.f32 %v1745, %v1745
          %v2729 = vmul.f32 %v2189, %v2189
          %v2730 = vmul.f32 %v2191, %v2191
          %v2731 = vmul.f32 %v1749, %v1749
          %v2732 = vmul.f32 %v1751, %v1751
          %v2733 = vmul.f32 %v2195, %v2195
          %v2734 = vmul.f32 %v2197, %v2197
          %v2735 = vmul.f32 %v1753, %v1753
          %v2736 = vmul.f32 %v1755, %v1755
          %v2737 = vmul.f32 %v2199, %v2199
          %v2738 = vmul.f32 %v2201, %v2201
          %v2739 = vmul.f32 %v1759, %v1759
          %v2740 = vmul.f32 %v1761, %v1761
          %v2741 = vmul.f32 %v2205, %v2205
          %v2742 = vmul.f32 %v2207, %v2207
          %v2743 = vmul.f32 %v1763, %v1763
          %v2744 = vmul.f32 %v1765, %v1765
          %v2745 = vmul.f32 %v2209, %v2209
          %v2746 = vmul.f32 %v2211, %v2211
          %v2747 = vmul.f32 %v1769, %v1769
          %v2748 = vmul.f32 %v1771, %v1771
          %v2749 = vmul.f32 %v2215, %v2215
          %v2750 = vmul.f32 %v2217, %v2217
          %v2751 = vmul.f32 %v1773, %v1773
          %v2752 = vmul.f32 %v1775, %v1775
          %v2753 = vmul.f32 %v2219, %v2219
          %v2754 = vmul.f32 %v2221, %v2221
          %v2755 = vmul.f32 %v1779, %v1779
          %v2756 = vmul.f32 %v1781, %v1781
          %v2757 = vmul.f32 %v2225, %v2225
          %v2758 = vmul.f32 %v2227, %v2227
          %v2759 = vmul.f32 %v1783, %v1783
          %v2760 = vmul.f32 %v1785, %v1785
          %v2761 = vmul.f32 %v2229, %v2229
          %v2762 = vmul.f32 %v2231, %v2231
          %v2763 = vmul.f32 %v1789, %v1789
          %v2764 = vmul.f32 %v1791, %v1791
          %v2765 = vmul.f32 %v2235, %v2235
          %v2766 = vmul.f32 %v2237, %v2237
          %v2767 = vmul.f32 %v1793, %v1793
          %v2768 = vmul.f32 %v1795, %v1795
          %v2769 = vmul.f32 %v2239, %v2239
          %v2770 = vmul.f32 %v2241, %v2241
          %v2771 = vmul.f32 %v1799, %v1799
          %v2772 = vmul.f32 %v1801, %v1801
          %v2773 = vmul.f32 %v2245, %v2245
          %v2774 = vmul.f32 %v2247, %v2247
          %v2775 = vmul.f32 %v1803, %v1803
          %v2776 = vmul.f32 %v1805, %v1805
          %v2777 = vmul.f32 %v2249, %v2249
          %v2778 = vmul.f32 %v2251, %v2251
          %v2779 = vmul.f32 %v1809, %v1809
          %v2780 = vmul.f32 %v1811, %v1811
          %v2781 = vmul.f32 %v2255, %v2255
          %v2782 = vmul.f32 %v2257, %v2257
          %v2783 = vmul.f32 %v1813, %v1813
          %v2784 = vmul.f32 %v1815, %v1815
          %v2785 = vmul.f32 %v2259, %v2259
          %v2786 = vmul.f32 %v2261, %v2261
          %v2787 = vmul.f32 %v1819, %v1819
          %v2788 = vmul.f32 %v1821, %v1821
          %v2789 = vmul.f32 %v2265, %v2265
          %v2790 = vmul.f32 %v2267, %v2267
          %v2791 = vmul.f32 %v1823, %v1823
          %v2792 = vmul.f32 %v1825, %v1825
          %v2793 = vmul.f32 %v2269, %v2269
          %v2794 = vmul.f32 %v2271, %v2271
          %v2795 = vmul.f32 %v1829, %v1829
          %v2796 = vmul.f32 %v1831, %v1831
          %v2797 = vmul.f32 %v2275, %v2275
          %v2798 = vmul.f32 %v2277, %v2277
          %v2799 = vmul.f32 %v1833, %v1833
          %v2800 = vmul.f32 %v1835, %v1835
          %v2801 = vmul.f32 %v2279, %v2279
          %v2802 = vmul.f32 %v2281, %v2281
          %v2803 = vmul.f32 %v1839, %v1839
          %v2804 = vmul.f32 %v1841, %v1841
          %v2805 = vmul.f32 %v2285, %v2285
          %v2806 = vmul.f32 %v2287, %v2287
          %v2807 = vmul.f32 %v1843, %v1843
          %v2808 = vmul.f32 %v1845, %v1845
          %v2809 = vmul.f32 %v2289, %v2289
          %v2810 = vmul.f32 %v2291, %v2291
          %v2811 = vmul.f32 %v1849, %v1849
          %v2812 = vmul.f32 %v1851, %v1851
          %v2813 = vmul.f32 %v2295, %v2295
          %v2814 = vmul.f32 %v2297, %v2297
          %v2815 = vmul.f32 %v1853, %v1853
          %v2816 = vmul.f32 %v1855, %v1855
          %v2817 = vmul.f32 %v2299, %v2299
          %v2818 = vmul.f32 %v2301, %v2301
          %v2819 = vadd.f32 %v2667, %v2671
          %v2820 = vadd.f32 %v2819, %v2675
          %v2821 = vadd.f32 %v2820, %v2679
          %v2822 = vadd.f32 %v2821, %v2683
          %v2823 = vadd.f32 %v2822, %v2687
          %v2824 = vadd.f32 %v2823, %v2691
          %v2825 = vadd.f32 %v2824, %v2695
          %v2826 = vadd.f32 %v2825, %v2699
          %v2827 = vadd.f32 %v2826, %v2703
          %v2828 = vadd.f32 %v2827, %v2707
          %v2829 = vadd.f32 %v2828, %v2711
          %v2830 = vadd.f32 %v2829, %v2715
          %v2831 = vadd.f32 %v2830, %v2719
          %v2832 = vadd.f32 %v2831, %v2723
          %v2833 = vadd.f32 %v2832, %v2727
          %v2834 = vadd.f32 %v2833, %v2731
          %v2835 = vadd.f32 %v2834, %v2735
          %v2836 = vadd.f32 %v2835, %v2739
          %v2837 = vadd.f32 %v2836, %v2743
          %v2838 = vadd.f32 %v2837, %v2747
          %v2839 = vadd.f32 %v2838, %v2751
          %v2840 = vadd.f32 %v2839, %v2755
          %v2841 = vadd.f32 %v2840, %v2759
          %v2842 = vadd.f32 %v2841, %v2763
          %v2843 = vadd.f32 %v2842, %v2767
          %v2844 = vadd.f32 %v2843, %v2771
          %v2845 = vadd.f32 %v2844, %v2775
          %v2846 = vadd.f32 %v2845, %v2779
          %v2847 = vadd.f32 %v2846, %v2783
          %v2848 = vadd.f32 %v2847, %v2787
          %v2849 = vadd.f32 %v2848, %v2791
          %v2850 = vadd.f32 %v2849, %v2795
          %v2851 = vadd.f32 %v2850, %v2799
          %v2852 = vadd.f32 %v2851, %v2803
          %v2853 = vadd.f32 %v2852, %v2807
          %v2854 = vadd.f32 %v2853, %v2811
          %v2855 = vadd.f32 %v2854, %v2815
          %v2856 = vrot.slane %v2855, 4
          %v2857 = vadd.f32 %v2855, %v2856
          %v2858 = vrot.slane %v2857, 2
          %v2859 = vadd.f32 %v2857, %v2858
          %v2860 = vrot.slane %v2859, 1
          %v2861 = vadd.f32 %v2859, %v2860
          %v2862 = vadd.f32 %v2668, %v2672
          %v2863 = vadd.f32 %v2862, %v2676
          %v2864 = vadd.f32 %v2863, %v2680
          %v2865 = vadd.f32 %v2864, %v2684
          %v2866 = vadd.f32 %v2865, %v2688
          %v2867 = vadd.f32 %v2866, %v2692
          %v2868 = vadd.f32 %v2867, %v2696
          %v2869 = vadd.f32 %v2868, %v2700
          %v2870 = vadd.f32 %v2869, %v2704
          %v2871 = vadd.f32 %v2870, %v2708
          %v2872 = vadd.f32 %v2871, %v2712
          %v2873 = vadd.f32 %v2872, %v2716
          %v2874 = vadd.f32 %v2873, %v2720
          %v2875 = vadd.f32 %v2874, %v2724
          %v2876 = vadd.f32 %v2875, %v2728
          %v2877 = vadd.f32 %v2876, %v2732
          %v2878 = vadd.f32 %v2877, %v2736
          %v2879 = vadd.f32 %v2878, %v2740
          %v2880 = vadd.f32 %v2879, %v2744
          %v2881 = vadd.f32 %v2880, %v2748
          %v2882 = vadd.f32 %v2881, %v2752
          %v2883 = vadd.f32 %v2882, %v2756
          %v2884 = vadd.f32 %v2883, %v2760
          %v2885 = vadd.f32 %v2884, %v2764
          %v2886 = vadd.f32 %v2885, %v2768
          %v2887 = vadd.f32 %v2886, %v2772
          %v2888 = vadd.f32 %v2887, %v2776
          %v2889 = vadd.f32 %v2888, %v2780
          %v2890 = vadd.f32 %v2889, %v2784
          %v2891 = vadd.f32 %v2890, %v2788
          %v2892 = vadd.f32 %v2891, %v2792
          %v2893 = vadd.f32 %v2892, %v2796
          %v2894 = vadd.f32 %v2893, %v2800
          %v2895 = vadd.f32 %v2894, %v2804
          %v2896 = vadd.f32 %v2895, %v2808
          %v2897 = vadd.f32 %v2896, %v2812
          %v2898 = vadd.f32 %v2897, %v2816
          %v2899 = vrot.slane %v2898, 4
          %v2900 = vadd.f32 %v2898, %v2899
          %v2901 = vrot.slane %v2900, 2
          %v2902 = vadd.f32 %v2900, %v2901
          %v2903 = vrot.slane %v2902, 1
          %v2904 = vadd.f32 %v2902, %v2903
          %v2905 = vadd.f32 %v2669, %v2673
          %v2906 = vadd.f32 %v2905, %v2677
          %v2907 = vadd.f32 %v2906, %v2681
          %v2908 = vadd.f32 %v2907, %v2685
          %v2909 = vadd.f32 %v2908, %v2689
          %v2910 = vadd.f32 %v2909, %v2693
          %v2911 = vadd.f32 %v2910, %v2697
          %v2912 = vadd.f32 %v2911, %v2701
          %v2913 = vadd.f32 %v2912, %v2705
          %v2914 = vadd.f32 %v2913, %v2709
          %v2915 = vadd.f32 %v2914, %v2713
          %v2916 = vadd.f32 %v2915, %v2717
          %v2917 = vadd.f32 %v2916, %v2721
          %v2918 = vadd.f32 %v2917, %v2725
          %v2919 = vadd.f32 %v2918, %v2729
          %v2920 = vadd.f32 %v2919, %v2733
          %v2921 = vadd.f32 %v2920, %v2737
          %v2922 = vadd.f32 %v2921, %v2741
          %v2923 = vadd.f32 %v2922, %v2745
          %v2924 = vadd.f32 %v2923, %v2749
          %v2925 = vadd.f32 %v2924, %v2753
          %v2926 = vadd.f32 %v2925, %v2757
          %v2927 = vadd.f32 %v2926, %v2761
          %v2928 = vadd.f32 %v2927, %v2765
          %v2929 = vadd.f32 %v2928, %v2769
          %v2930 = vadd.f32 %v2929, %v2773
          %v2931 = vadd.f32 %v2930, %v2777
          %v2932 = vadd.f32 %v2931, %v2781
          %v2933 = vadd.f32 %v2932, %v2785
          %v2934 = vadd.f32 %v2933, %v2789
          %v2935 = vadd.f32 %v2934, %v2793
          %v2936 = vadd.f32 %v2935, %v2797
          %v2937 = vadd.f32 %v2936, %v2801
          %v2938 = vadd.f32 %v2937, %v2805
          %v2939 = vadd.f32 %v2938, %v2809
          %v2940 = vadd.f32 %v2939, %v2813
          %v2941 = vadd.f32 %v2940, %v2817
          %v2942 = vrot.slane %v2941, 4
          %v2943 = vadd.f32 %v2941, %v2942
          %v2944 = vrot.slane %v2943, 2
          %v2945 = vadd.f32 %v2943, %v2944
          %v2946 = vrot.slane %v2945, 1
          %v2947 = vadd.f32 %v2945, %v2946
          %v2948 = vadd.f32 %v2670, %v2674
          %v2949 = vadd.f32 %v2948, %v2678
          %v2950 = vadd.f32 %v2949, %v2682
          %v2951 = vadd.f32 %v2950, %v2686
          %v2952 = vadd.f32 %v2951, %v2690
          %v2953 = vadd.f32 %v2952, %v2694
          %v2954 = vadd.f32 %v2953, %v2698
          %v2955 = vadd.f32 %v2954, %v2702
          %v2956 = vadd.f32 %v2955, %v2706
          %v2957 = vadd.f32 %v2956, %v2710
          %v2958 = vadd.f32 %v2957, %v2714
          %v2959 = vadd.f32 %v2958, %v2718
          %v2960 = vadd.f32 %v2959, %v2722
          %v2961 = vadd.f32 %v2960, %v2726
          %v2962 = vadd.f32 %v2961, %v2730
          %v2963 = vadd.f32 %v2962, %v2734
          %v2964 = vadd.f32 %v2963, %v2738
          %v2965 = vadd.f32 %v2964, %v2742
          %v2966 = vadd.f32 %v2965, %v2746
          %v2967 = vadd.f32 %v2966, %v2750
          %v2968 = vadd.f32 %v2967, %v2754
          %v2969 = vadd.f32 %v2968, %v2758
          %v2970 = vadd.f32 %v2969, %v2762
          %v2971 = vadd.f32 %v2970, %v2766
          %v2972 = vadd.f32 %v2971, %v2770
          %v2973 = vadd.f32 %v2972, %v2774
          %v2974 = vadd.f32 %v2973, %v2778
          %v2975 = vadd.f32 %v2974, %v2782
          %v2976 = vadd.f32 %v2975, %v2786
          %v2977 = vadd.f32 %v2976, %v2790
          %v2978 = vadd.f32 %v2977, %v2794
          %v2979 = vadd.f32 %v2978, %v2798
          %v2980 = vadd.f32 %v2979, %v2802
          %v2981 = vadd.f32 %v2980, %v2806
          %v2982 = vadd.f32 %v2981, %v2810
          %v2983 = vadd.f32 %v2982, %v2814
          %v2984 = vadd.f32 %v2983, %v2818
          %v2985 = vrot.slane %v2984, 4
          %v2986 = vadd.f32 %v2984, %v2985
          %v2987 = vrot.slane %v2986, 2
          %v2988 = vadd.f32 %v2986, %v2987
          %v2989 = vrot.slane %v2988, 1
          %v2990 = vadd.f32 %v2988, %v2989
          %v2995 = vcombine.low %v2861, %v2904
          %v2996 = vcombine.low %v2947, %v2990
          %v2998 = vunpack.c.l.s4 1966171168
          %v2999 = vunpack.c.0.s8 %v2998
          %v3000 = vlaneseq
          %v3001 = vshrl.u32 %v3000, 7
          %v3002 = vsub.s32 %v2999, %v3001
          %v3003 = vrot.slane %v2995, %v3002
          %v3005 = vunpack.c.l.s4 1966171168
          %v3006 = vunpack.c.0.s8 %v3005
          %v3007 = vlaneseq
          %v3008 = vshrl.u32 %v3007, 7
          %v3009 = vsub.s32 %v3006, %v3008
          %v3010 = vrot.slane %v2996, %v3009
          %v3011 = vcombine.low %v3003, %v3010
          %v3013 = vunpack.c.l.s4 1966171168
          %v3014 = vunpack.c.0.s8 %v3013
          %v3015 = vlaneseq
          %v3016 = vshrl.u32 %v3015, 7
          %v3017 = vsub.s32 %v3014, %v3016
          %v3018 = vrot.slane %v3011, %v3017
          %v3020 = vadd.f32 %v2666, %v3018
          %3021 = vst.msk [vmem:[#allocation3] sm:$0xf] %vm2664, %v3020
        $region76: #{tpu_custom_call.1} parent=47 // pred_fallthru
          _
        %p3022 = scmp.eq.s32.totalorder %s30, 1
        // Predicated region
        $region77: #{tpu_custom_call.1} parent=47 // pred_check
          %p3023 = pneg %p3022
        $region78: #{tpu_custom_call.1} parent=47 // pred_check_branch
          %3025 = sbr.rel (%p3023) target = $region80
        $region79: #{tpu_custom_call.1} parent=47 // pred_region
          %s3026 = smul.u32 %s31, 152
          %s3027 = smul.addr %s3026, 8
          %s3028 = scalar_lea.vmem [#allocation4], %s3027
          %v3029 = vld [vmem:[%s3028] sm:$0xff]
          %v3030 = vld [vmem:[%s3028 + $0x8] sm:$0xff]
          %v3031 = vld [vmem:[%s3028 + $0x10] sm:$0xff]
          %v3032 = vld [vmem:[%s3028 + $0x18] sm:$0xff]
          %v3033 = vld [vmem:[%s3028 + $0x20] sm:$0xff]
          %v3034 = vld [vmem:[%s3028 + $0x28] sm:$0xff]
          %v3035 = vld [vmem:[%s3028 + $0x30] sm:$0xff]
          %v3036 = vld [vmem:[%s3028 + $0x38] sm:$0xff]
          %v3037 = vld [vmem:[%s3028 + $0x40] sm:$0xff]
          %v3038 = vld [vmem:[%s3028 + $0x48] sm:$0xff]
          %v3039 = vld [vmem:[%s3028 + $0x50] sm:$0xff]
          %v3040 = vld [vmem:[%s3028 + $0x58] sm:$0xff]
          %v3041 = vld [vmem:[%s3028 + $0x60] sm:$0xff]
          %v3042 = vld [vmem:[%s3028 + $0x68] sm:$0xff]
          %v3043 = vld [vmem:[%s3028 + $0x70] sm:$0xff]
          %v3044 = vld [vmem:[%s3028 + $0x78] sm:$0xff]
          %v3045 = vld [vmem:[%s3028 + $0x80] sm:$0xff]
          %v3046 = vld [vmem:[%s3028 + $0x88] sm:$0xff]
          %v3047 = vld [vmem:[%s3028 + $0x90] sm:$0xff]
          %v3048 = vld [vmem:[%s3028 + $0x98] sm:$0xff]
          %v3049 = vld [vmem:[%s3028 + $0xa0] sm:$0xff]
          %v3050 = vld [vmem:[%s3028 + $0xa8] sm:$0xff]
          %v3051 = vld [vmem:[%s3028 + $0xb0] sm:$0xff]
          %v3052 = vld [vmem:[%s3028 + $0xb8] sm:$0xff]
          %v3053 = vld [vmem:[%s3028 + $0xc0] sm:$0xff]
          %v3054 = vld [vmem:[%s3028 + $0xc8] sm:$0xff]
          %v3055 = vld [vmem:[%s3028 + $0xd0] sm:$0xff]
          %v3056 = vld [vmem:[%s3028 + $0xd8] sm:$0xff]
          %v3057 = vld [vmem:[%s3028 + $0xe0] sm:$0xff]
          %v3058 = vld [vmem:[%s3028 + $0xe8] sm:$0xff]
          %v3059 = vld [vmem:[%s3028 + $0xf0] sm:$0xff]
          %v3060 = vld [vmem:[%s3028 + $0xf8] sm:$0xff]
          %v3061 = vld [vmem:[%s3028 + $0x100] sm:$0xff]
          %v3062 = vld [vmem:[%s3028 + $0x108] sm:$0xff]
          %v3063 = vld [vmem:[%s3028 + $0x110] sm:$0xff]
          %v3064 = vld [vmem:[%s3028 + $0x118] sm:$0xff]
          %v3065 = vld [vmem:[%s3028 + $0x120] sm:$0xff]
          %v3066 = vld [vmem:[%s3028 + $0x128] sm:$0xff]
          %v3067 = vld [vmem:[%s3028 + $0x130] sm:$0xff]
          %v3068 = vld [vmem:[%s3028 + $0x138] sm:$0xff]
          %v3069 = vld [vmem:[%s3028 + $0x140] sm:$0xff]
          %v3070 = vld [vmem:[%s3028 + $0x148] sm:$0xff]
          %v3071 = vld [vmem:[%s3028 + $0x150] sm:$0xff]
          %v3072 = vld [vmem:[%s3028 + $0x158] sm:$0xff]
          %v3073 = vld [vmem:[%s3028 + $0x160] sm:$0xff]
          %v3074 = vld [vmem:[%s3028 + $0x168] sm:$0xff]
          %v3075 = vld [vmem:[%s3028 + $0x170] sm:$0xff]
          %v3076 = vld [vmem:[%s3028 + $0x178] sm:$0xff]
          %v3077 = vld [vmem:[%s3028 + $0x180] sm:$0xff]
          %v3078 = vld [vmem:[%s3028 + $0x188] sm:$0xff]
          %v3079 = vld [vmem:[%s3028 + $0x190] sm:$0xff]
          %v3080 = vld [vmem:[%s3028 + $0x198] sm:$0xff]
          %v3081 = vld [vmem:[%s3028 + $0x1a0] sm:$0xff]
          %v3082 = vld [vmem:[%s3028 + $0x1a8] sm:$0xff]
          %v3083 = vld [vmem:[%s3028 + $0x1b0] sm:$0xff]
          %v3084 = vld [vmem:[%s3028 + $0x1b8] sm:$0xff]
          %v3085 = vld [vmem:[%s3028 + $0x1c0] sm:$0xff]
          %v3086 = vld [vmem:[%s3028 + $0x1c8] sm:$0xff]
          %v3087 = vld [vmem:[%s3028 + $0x1d0] sm:$0xff]
          %v3088 = vld [vmem:[%s3028 + $0x1d8] sm:$0xff]
          %v3089 = vld [vmem:[%s3028 + $0x1e0] sm:$0xff]
          %v3090 = vld [vmem:[%s3028 + $0x1e8] sm:$0xff]
          %v3091 = vld [vmem:[%s3028 + $0x1f0] sm:$0xff]
          %v3092 = vld [vmem:[%s3028 + $0x1f8] sm:$0xff]
          %v3093 = vld [vmem:[%s3028 + $0x200] sm:$0xff]
          %v3094 = vld [vmem:[%s3028 + $0x208] sm:$0xff]
          %v3095 = vld [vmem:[%s3028 + $0x210] sm:$0xff]
          %v3096 = vld [vmem:[%s3028 + $0x218] sm:$0xff]
          %v3097 = vld [vmem:[%s3028 + $0x220] sm:$0xff]
          %v3098 = vld [vmem:[%s3028 + $0x228] sm:$0xff]
          %v3099 = vld [vmem:[%s3028 + $0x230] sm:$0xff]
          %v3100 = vld [vmem:[%s3028 + $0x238] sm:$0xff]
          %v3101 = vld [vmem:[%s3028 + $0x240] sm:$0xff]
          %v3102 = vld [vmem:[%s3028 + $0x248] sm:$0xff]
          %v3103 = vld [vmem:[%s3028 + $0x250] sm:$0xff]
          %v3104 = vld [vmem:[%s3028 + $0x258] sm:$0xff]
          %v3105 = vld [vmem:[%s3028 + $0x260] sm:$0xff]
          %v3106 = vld [vmem:[%s3028 + $0x268] sm:$0xff]
          %v3107 = vld [vmem:[%s3028 + $0x270] sm:$0xff]
          %v3108 = vld [vmem:[%s3028 + $0x278] sm:$0xff]
          %v3109 = vld [vmem:[%s3028 + $0x280] sm:$0xff]
          %v3110 = vld [vmem:[%s3028 + $0x288] sm:$0xff]
          %v3111 = vld [vmem:[%s3028 + $0x290] sm:$0xff]
          %v3112 = vld [vmem:[%s3028 + $0x298] sm:$0xff]
          %v3113 = vld [vmem:[%s3028 + $0x2a0] sm:$0xff]
          %v3114 = vld [vmem:[%s3028 + $0x2a8] sm:$0xff]
          %v3115 = vld [vmem:[%s3028 + $0x2b0] sm:$0xff]
          %v3116 = vld [vmem:[%s3028 + $0x2b8] sm:$0xff]
          %v3117 = vld [vmem:[%s3028 + $0x2c0] sm:$0xff]
          %v3118 = vld [vmem:[%s3028 + $0x2c8] sm:$0xff]
          %v3119 = vld [vmem:[%s3028 + $0x2d0] sm:$0xff]
          %v3120 = vld [vmem:[%s3028 + $0x2d8] sm:$0xff]
          %v3121 = vld [vmem:[%s3028 + $0x2e0] sm:$0xff]
          %v3122 = vld [vmem:[%s3028 + $0x2e8] sm:$0xff]
          %v3123 = vld [vmem:[%s3028 + $0x2f0] sm:$0xff]
          %v3124 = vld [vmem:[%s3028 + $0x2f8] sm:$0xff]
          %v3125 = vld [vmem:[%s3028 + $0x300] sm:$0xff]
          %v3126 = vld [vmem:[%s3028 + $0x308] sm:$0xff]
          %v3127 = vld [vmem:[%s3028 + $0x310] sm:$0xff]
          %v3128 = vld [vmem:[%s3028 + $0x318] sm:$0xff]
          %v3129 = vld [vmem:[%s3028 + $0x320] sm:$0xff]
          %v3130 = vld [vmem:[%s3028 + $0x328] sm:$0xff]
          %v3131 = vld [vmem:[%s3028 + $0x330] sm:$0xff]
          %v3132 = vld [vmem:[%s3028 + $0x338] sm:$0xff]
          %v3133 = vld [vmem:[%s3028 + $0x340] sm:$0xff]
          %v3134 = vld [vmem:[%s3028 + $0x348] sm:$0xff]
          %v3135 = vld [vmem:[%s3028 + $0x350] sm:$0xff]
          %v3136 = vld [vmem:[%s3028 + $0x358] sm:$0xff]
          %v3137 = vld [vmem:[%s3028 + $0x360] sm:$0xff]
          %v3138 = vld [vmem:[%s3028 + $0x368] sm:$0xff]
          %v3139 = vld [vmem:[%s3028 + $0x370] sm:$0xff]
          %v3140 = vld [vmem:[%s3028 + $0x378] sm:$0xff]
          %v3141 = vld [vmem:[%s3028 + $0x380] sm:$0xff]
          %v3142 = vld [vmem:[%s3028 + $0x388] sm:$0xff]
          %v3143 = vld [vmem:[%s3028 + $0x390] sm:$0xff]
          %v3144 = vld [vmem:[%s3028 + $0x398] sm:$0xff]
          %v3145 = vld [vmem:[%s3028 + $0x3a0] sm:$0xff]
          %v3146 = vld [vmem:[%s3028 + $0x3a8] sm:$0xff]
          %v3147 = vld [vmem:[%s3028 + $0x3b0] sm:$0xff]
          %v3148 = vld [vmem:[%s3028 + $0x3b8] sm:$0xff]
          %v3149 = vld [vmem:[%s3028 + $0x3c0] sm:$0xff]
          %v3150 = vld [vmem:[%s3028 + $0x3c8] sm:$0xff]
          %v3151 = vld [vmem:[%s3028 + $0x3d0] sm:$0xff]
          %v3152 = vld [vmem:[%s3028 + $0x3d8] sm:$0xff]
          %v3153 = vld [vmem:[%s3028 + $0x3e0] sm:$0xff]
          %v3154 = vld [vmem:[%s3028 + $0x3e8] sm:$0xff]
          %v3155 = vld [vmem:[%s3028 + $0x3f0] sm:$0xff]
          %v3156 = vld [vmem:[%s3028 + $0x3f8] sm:$0xff]
          %v3157 = vld [vmem:[%s3028 + $0x400] sm:$0xff]
          %v3158 = vld [vmem:[%s3028 + $0x408] sm:$0xff]
          %v3159 = vld [vmem:[%s3028 + $0x410] sm:$0xff]
          %v3160 = vld [vmem:[%s3028 + $0x418] sm:$0xff]
          %v3161 = vld [vmem:[%s3028 + $0x420] sm:$0xff]
          %v3162 = vld [vmem:[%s3028 + $0x428] sm:$0xff]
          %v3163 = vld [vmem:[%s3028 + $0x430] sm:$0xff]
          %v3164 = vld [vmem:[%s3028 + $0x438] sm:$0xff]
          %v3165 = vld [vmem:[%s3028 + $0x440] sm:$0xff]
          %v3166 = vld [vmem:[%s3028 + $0x448] sm:$0xff]
          %v3167 = vld [vmem:[%s3028 + $0x450] sm:$0xff]
          %v3168 = vld [vmem:[%s3028 + $0x458] sm:$0xff]
          %v3169 = vld [vmem:[%s3028 + $0x460] sm:$0xff]
          %v3170 = vld [vmem:[%s3028 + $0x468] sm:$0xff]
          %v3171 = vld [vmem:[%s3028 + $0x470] sm:$0xff]
          %v3172 = vld [vmem:[%s3028 + $0x478] sm:$0xff]
          %v3173 = vld [vmem:[%s3028 + $0x480] sm:$0xff]
          %v3174 = vld [vmem:[%s3028 + $0x488] sm:$0xff]
          %v3175 = vld [vmem:[%s3028 + $0x490] sm:$0xff]
          %v3176 = vld [vmem:[%s3028 + $0x498] sm:$0xff]
          %v3177 = vld [vmem:[%s3028 + $0x4a0] sm:$0xff]
          %v3178 = vld [vmem:[%s3028 + $0x4a8] sm:$0xff]
          %v3179 = vld [vmem:[%s3028 + $0x4b0] sm:$0xff]
          %v3180 = vld [vmem:[%s3028 + $0x4b8] sm:$0xff]
          %v3181 = vld [vmem:[#allocation2] sm:$0xf]
          %v3182 = vld [vmem:[#allocation3] sm:$0xf]
          %v3183 = vld [vmem:[#allocation10] sm:$0xf]
          %v3184 = vmul.f32 %v3183, 4.0
          %v3185 = vsub.f32 %v3181, %v3184
          %v3186 = vmul.f32 %v3183, %v3183
          %v3187 = vmul.f32 %v3186, 4.0
          %v3188 = vsub.f32 %v3182, %v3187
          %v3189 = vmul.f32 %v3185, 0.0033333334
          %v3190 = vmul.f32 %v3188, 0.0033333334
          %v3191 = vmul.f32 %v3189, %v3189
          %v3192 = vsub.f32 %v3190, %v3191
          %v3193 = vmax.f32 %v3192, 0.0
          %v3194 = vadd.f32 %v3193, 1e-05
          %v3195 = vrsqrt.pop %v3194
          %v3196 = vld [vmem:[%s3] sm:$0xf]
          %v3197 = vmul.f32 %v3196, %v3195
          %v3198 = vld [vmem:[#allocation11] sm:$0xf]
          %v3199 = vmul.f32 %v3189, %v3197
          %v3200 = vsub.f32 %v3198, %v3199
          %v3202 = vlaneseq
          %v3203 = vshrl.u32 %v3202, 7
          %v3204 = vsub.s32 0, %v3203
          %v3205 = vrot.slane %v3197, %v3204
          %v3206 = vlaneseq
          %v3207 = vshrl.u32 %v3206, 7
          %v3208 = vsub.s32 1, %v3207
          %v3209 = vrot.slane %v3197, %v3208
          %v3210 = vlaneseq
          %v3211 = vshrl.u32 %v3210, 7
          %v3212 = vsub.s32 2, %v3211
          %v3213 = vrot.slane %v3197, %v3212
          %v3214 = vlaneseq
          %v3215 = vshrl.u32 %v3214, 7
          %v3216 = vsub.s32 3, %v3215
          %v3217 = vrot.slane %v3197, %v3216
          %v3222 = vmul.f32 %v3029, %v3205
          %v3223 = vmul.f32 %v3030, %v3209
          %v3224 = vmul.f32 %v3031, %v3213
          %v3225 = vmul.f32 %v3032, %v3217
          %v3226 = vmul.f32 %v3033, %v3205
          %v3227 = vmul.f32 %v3034, %v3209
          %v3228 = vmul.f32 %v3035, %v3213
          %v3229 = vmul.f32 %v3036, %v3217
          %v3230 = vmul.f32 %v3037, %v3205
          %v3231 = vmul.f32 %v3038, %v3209
          %v3232 = vmul.f32 %v3039, %v3213
          %v3233 = vmul.f32 %v3040, %v3217
          %v3234 = vmul.f32 %v3041, %v3205
          %v3235 = vmul.f32 %v3042, %v3209
          %v3236 = vmul.f32 %v3043, %v3213
          %v3237 = vmul.f32 %v3044, %v3217
          %v3238 = vmul.f32 %v3045, %v3205
          %v3239 = vmul.f32 %v3046, %v3209
          %v3240 = vmul.f32 %v3047, %v3213
          %v3241 = vmul.f32 %v3048, %v3217
          %v3242 = vmul.f32 %v3049, %v3205
          %v3243 = vmul.f32 %v3050, %v3209
          %v3244 = vmul.f32 %v3051, %v3213
          %v3245 = vmul.f32 %v3052, %v3217
          %v3246 = vmul.f32 %v3053, %v3205
          %v3247 = vmul.f32 %v3054, %v3209
          %v3248 = vmul.f32 %v3055, %v3213
          %v3249 = vmul.f32 %v3056, %v3217
          %v3250 = vmul.f32 %v3057, %v3205
          %v3251 = vmul.f32 %v3058, %v3209
          %v3252 = vmul.f32 %v3059, %v3213
          %v3253 = vmul.f32 %v3060, %v3217
          %v3254 = vmul.f32 %v3061, %v3205
          %v3255 = vmul.f32 %v3062, %v3209
          %v3256 = vmul.f32 %v3063, %v3213
          %v3257 = vmul.f32 %v3064, %v3217
          %v3258 = vmul.f32 %v3065, %v3205
          %v3259 = vmul.f32 %v3066, %v3209
          %v3260 = vmul.f32 %v3067, %v3213
          %v3261 = vmul.f32 %v3068, %v3217
          %v3262 = vmul.f32 %v3069, %v3205
          %v3263 = vmul.f32 %v3070, %v3209
          %v3264 = vmul.f32 %v3071, %v3213
          %v3265 = vmul.f32 %v3072, %v3217
          %v3266 = vmul.f32 %v3073, %v3205
          %v3267 = vmul.f32 %v3074, %v3209
          %v3268 = vmul.f32 %v3075, %v3213
          %v3269 = vmul.f32 %v3076, %v3217
          %v3270 = vmul.f32 %v3077, %v3205
          %v3271 = vmul.f32 %v3078, %v3209
          %v3272 = vmul.f32 %v3079, %v3213
          %v3273 = vmul.f32 %v3080, %v3217
          %v3274 = vmul.f32 %v3081, %v3205
          %v3275 = vmul.f32 %v3082, %v3209
          %v3276 = vmul.f32 %v3083, %v3213
          %v3277 = vmul.f32 %v3084, %v3217
          %v3278 = vmul.f32 %v3085, %v3205
          %v3279 = vmul.f32 %v3086, %v3209
          %v3280 = vmul.f32 %v3087, %v3213
          %v3281 = vmul.f32 %v3088, %v3217
          %v3282 = vmul.f32 %v3089, %v3205
          %v3283 = vmul.f32 %v3090, %v3209
          %v3284 = vmul.f32 %v3091, %v3213
          %v3285 = vmul.f32 %v3092, %v3217
          %v3286 = vmul.f32 %v3093, %v3205
          %v3287 = vmul.f32 %v3094, %v3209
          %v3288 = vmul.f32 %v3095, %v3213
          %v3289 = vmul.f32 %v3096, %v3217
          %v3290 = vmul.f32 %v3097, %v3205
          %v3291 = vmul.f32 %v3098, %v3209
          %v3292 = vmul.f32 %v3099, %v3213
          %v3293 = vmul.f32 %v3100, %v3217
          %v3294 = vmul.f32 %v3101, %v3205
          %v3295 = vmul.f32 %v3102, %v3209
          %v3296 = vmul.f32 %v3103, %v3213
          %v3297 = vmul.f32 %v3104, %v3217
          %v3298 = vmul.f32 %v3105, %v3205
          %v3299 = vmul.f32 %v3106, %v3209
          %v3300 = vmul.f32 %v3107, %v3213
          %v3301 = vmul.f32 %v3108, %v3217
          %v3302 = vmul.f32 %v3109, %v3205
          %v3303 = vmul.f32 %v3110, %v3209
          %v3304 = vmul.f32 %v3111, %v3213
          %v3305 = vmul.f32 %v3112, %v3217
          %v3306 = vmul.f32 %v3113, %v3205
          %v3307 = vmul.f32 %v3114, %v3209
          %v3308 = vmul.f32 %v3115, %v3213
          %v3309 = vmul.f32 %v3116, %v3217
          %v3310 = vmul.f32 %v3117, %v3205
          %v3311 = vmul.f32 %v3118, %v3209
          %v3312 = vmul.f32 %v3119, %v3213
          %v3313 = vmul.f32 %v3120, %v3217
          %v3314 = vmul.f32 %v3121, %v3205
          %v3315 = vmul.f32 %v3122, %v3209
          %v3316 = vmul.f32 %v3123, %v3213
          %v3317 = vmul.f32 %v3124, %v3217
          %v3318 = vmul.f32 %v3125, %v3205
          %v3319 = vmul.f32 %v3126, %v3209
          %v3320 = vmul.f32 %v3127, %v3213
          %v3321 = vmul.f32 %v3128, %v3217
          %v3322 = vmul.f32 %v3129, %v3205
          %v3323 = vmul.f32 %v3130, %v3209
          %v3324 = vmul.f32 %v3131, %v3213
          %v3325 = vmul.f32 %v3132, %v3217
          %v3326 = vmul.f32 %v3133, %v3205
          %v3327 = vmul.f32 %v3134, %v3209
          %v3328 = vmul.f32 %v3135, %v3213
          %v3329 = vmul.f32 %v3136, %v3217
          %v3330 = vmul.f32 %v3137, %v3205
          %v3331 = vmul.f32 %v3138, %v3209
          %v3332 = vmul.f32 %v3139, %v3213
          %v3333 = vmul.f32 %v3140, %v3217
          %v3334 = vmul.f32 %v3141, %v3205
          %v3335 = vmul.f32 %v3142, %v3209
          %v3336 = vmul.f32 %v3143, %v3213
          %v3337 = vmul.f32 %v3144, %v3217
          %v3338 = vmul.f32 %v3145, %v3205
          %v3339 = vmul.f32 %v3146, %v3209
          %v3340 = vmul.f32 %v3147, %v3213
          %v3341 = vmul.f32 %v3148, %v3217
          %v3342 = vmul.f32 %v3149, %v3205
          %v3343 = vmul.f32 %v3150, %v3209
          %v3344 = vmul.f32 %v3151, %v3213
          %v3345 = vmul.f32 %v3152, %v3217
          %v3346 = vmul.f32 %v3153, %v3205
          %v3347 = vmul.f32 %v3154, %v3209
          %v3348 = vmul.f32 %v3155, %v3213
          %v3349 = vmul.f32 %v3156, %v3217
          %v3350 = vmul.f32 %v3157, %v3205
          %v3351 = vmul.f32 %v3158, %v3209
          %v3352 = vmul.f32 %v3159, %v3213
          %v3353 = vmul.f32 %v3160, %v3217
          %v3354 = vmul.f32 %v3161, %v3205
          %v3355 = vmul.f32 %v3162, %v3209
          %v3356 = vmul.f32 %v3163, %v3213
          %v3357 = vmul.f32 %v3164, %v3217
          %v3358 = vmul.f32 %v3165, %v3205
          %v3359 = vmul.f32 %v3166, %v3209
          %v3360 = vmul.f32 %v3167, %v3213
          %v3361 = vmul.f32 %v3168, %v3217
          %v3362 = vmul.f32 %v3169, %v3205
          %v3363 = vmul.f32 %v3170, %v3209
          %v3364 = vmul.f32 %v3171, %v3213
          %v3365 = vmul.f32 %v3172, %v3217
          %v3366 = vmul.f32 %v3173, %v3205
          %v3367 = vmul.f32 %v3174, %v3209
          %v3368 = vmul.f32 %v3175, %v3213
          %v3369 = vmul.f32 %v3176, %v3217
          %v3370 = vmul.f32 %v3177, %v3205
          %v3371 = vmul.f32 %v3178, %v3209
          %v3372 = vmul.f32 %v3179, %v3213
          %v3373 = vmul.f32 %v3180, %v3217
          %v3375 = vlaneseq
          %v3376 = vshrl.u32 %v3375, 7
          %v3377 = vsub.s32 0, %v3376
          %v3378 = vrot.slane %v3200, %v3377
          %v3379 = vlaneseq
          %v3380 = vshrl.u32 %v3379, 7
          %v3381 = vsub.s32 1, %v3380
          %v3382 = vrot.slane %v3200, %v3381
          %v3383 = vlaneseq
          %v3384 = vshrl.u32 %v3383, 7
          %v3385 = vsub.s32 2, %v3384
          %v3386 = vrot.slane %v3200, %v3385
          %v3387 = vlaneseq
          %v3388 = vshrl.u32 %v3387, 7
          %v3389 = vsub.s32 3, %v3388
          %v3390 = vrot.slane %v3200, %v3389
          %v3395 = vadd.f32 %v3222, %v3378
          %v3396 = vadd.f32 %v3223, %v3382
          %v3397 = vadd.f32 %v3224, %v3386
          %v3398 = vadd.f32 %v3225, %v3390
          %v3399 = vadd.f32 %v3226, %v3378
          %v3400 = vadd.f32 %v3227, %v3382
          %v3401 = vadd.f32 %v3228, %v3386
          %v3402 = vadd.f32 %v3229, %v3390
          %v3403 = vadd.f32 %v3230, %v3378
          %v3404 = vadd.f32 %v3231, %v3382
          %v3405 = vadd.f32 %v3232, %v3386
          %v3406 = vadd.f32 %v3233, %v3390
          %v3407 = vadd.f32 %v3234, %v3378
          %v3408 = vadd.f32 %v3235, %v3382
          %v3409 = vadd.f32 %v3236, %v3386
          %v3410 = vadd.f32 %v3237, %v3390
          %v3411 = vadd.f32 %v3238, %v3378
          %v3412 = vadd.f32 %v3239, %v3382
          %v3413 = vadd.f32 %v3240, %v3386
          %v3414 = vadd.f32 %v3241, %v3390
          %v3415 = vadd.f32 %v3242, %v3378
          %v3416 = vadd.f32 %v3243, %v3382
          %v3417 = vadd.f32 %v3244, %v3386
          %v3418 = vadd.f32 %v3245, %v3390
          %v3419 = vadd.f32 %v3246, %v3378
          %v3420 = vadd.f32 %v3247, %v3382
          %v3421 = vadd.f32 %v3248, %v3386
          %v3422 = vadd.f32 %v3249, %v3390
          %v3423 = vadd.f32 %v3250, %v3378
          %v3424 = vadd.f32 %v3251, %v3382
          %v3425 = vadd.f32 %v3252, %v3386
          %v3426 = vadd.f32 %v3253, %v3390
          %v3427 = vadd.f32 %v3254, %v3378
          %v3428 = vadd.f32 %v3255, %v3382
          %v3429 = vadd.f32 %v3256, %v3386
          %v3430 = vadd.f32 %v3257, %v3390
          %v3431 = vadd.f32 %v3258, %v3378
          %v3432 = vadd.f32 %v3259, %v3382
          %v3433 = vadd.f32 %v3260, %v3386
          %v3434 = vadd.f32 %v3261, %v3390
          %v3435 = vadd.f32 %v3262, %v3378
          %v3436 = vadd.f32 %v3263, %v3382
          %v3437 = vadd.f32 %v3264, %v3386
          %v3438 = vadd.f32 %v3265, %v3390
          %v3439 = vadd.f32 %v3266, %v3378
          %v3440 = vadd.f32 %v3267, %v3382
          %v3441 = vadd.f32 %v3268, %v3386
          %v3442 = vadd.f32 %v3269, %v3390
          %v3443 = vadd.f32 %v3270, %v3378
          %v3444 = vadd.f32 %v3271, %v3382
          %v3445 = vadd.f32 %v3272, %v3386
          %v3446 = vadd.f32 %v3273, %v3390
          %v3447 = vadd.f32 %v3274, %v3378
          %v3448 = vadd.f32 %v3275, %v3382
          %v3449 = vadd.f32 %v3276, %v3386
          %v3450 = vadd.f32 %v3277, %v3390
          %v3451 = vadd.f32 %v3278, %v3378
          %v3452 = vadd.f32 %v3279, %v3382
          %v3453 = vadd.f32 %v3280, %v3386
          %v3454 = vadd.f32 %v3281, %v3390
          %v3455 = vadd.f32 %v3282, %v3378
          %v3456 = vadd.f32 %v3283, %v3382
          %v3457 = vadd.f32 %v3284, %v3386
          %v3458 = vadd.f32 %v3285, %v3390
          %v3459 = vadd.f32 %v3286, %v3378
          %v3460 = vadd.f32 %v3287, %v3382
          %v3461 = vadd.f32 %v3288, %v3386
          %v3462 = vadd.f32 %v3289, %v3390
          %v3463 = vadd.f32 %v3290, %v3378
          %v3464 = vadd.f32 %v3291, %v3382
          %v3465 = vadd.f32 %v3292, %v3386
          %v3466 = vadd.f32 %v3293, %v3390
          %v3467 = vadd.f32 %v3294, %v3378
          %v3468 = vadd.f32 %v3295, %v3382
          %v3469 = vadd.f32 %v3296, %v3386
          %v3470 = vadd.f32 %v3297, %v3390
          %v3471 = vadd.f32 %v3298, %v3378
          %v3472 = vadd.f32 %v3299, %v3382
          %v3473 = vadd.f32 %v3300, %v3386
          %v3474 = vadd.f32 %v3301, %v3390
          %v3475 = vadd.f32 %v3302, %v3378
          %v3476 = vadd.f32 %v3303, %v3382
          %v3477 = vadd.f32 %v3304, %v3386
          %v3478 = vadd.f32 %v3305, %v3390
          %v3479 = vadd.f32 %v3306, %v3378
          %v3480 = vadd.f32 %v3307, %v3382
          %v3481 = vadd.f32 %v3308, %v3386
          %v3482 = vadd.f32 %v3309, %v3390
          %v3483 = vadd.f32 %v3310, %v3378
          %v3484 = vadd.f32 %v3311, %v3382
          %v3485 = vadd.f32 %v3312, %v3386
          %v3486 = vadd.f32 %v3313, %v3390
          %v3487 = vadd.f32 %v3314, %v3378
          %v3488 = vadd.f32 %v3315, %v3382
          %v3489 = vadd.f32 %v3316, %v3386
          %v3490 = vadd.f32 %v3317, %v3390
          %v3491 = vadd.f32 %v3318, %v3378
          %v3492 = vadd.f32 %v3319, %v3382
          %v3493 = vadd.f32 %v3320, %v3386
          %v3494 = vadd.f32 %v3321, %v3390
          %v3495 = vadd.f32 %v3322, %v3378
          %v3496 = vadd.f32 %v3323, %v3382
          %v3497 = vadd.f32 %v3324, %v3386
          %v3498 = vadd.f32 %v3325, %v3390
          %v3499 = vadd.f32 %v3326, %v3378
          %v3500 = vadd.f32 %v3327, %v3382
          %v3501 = vadd.f32 %v3328, %v3386
          %v3502 = vadd.f32 %v3329, %v3390
          %v3503 = vadd.f32 %v3330, %v3378
          %v3504 = vadd.f32 %v3331, %v3382
          %v3505 = vadd.f32 %v3332, %v3386
          %v3506 = vadd.f32 %v3333, %v3390
          %v3507 = vadd.f32 %v3334, %v3378
          %v3508 = vadd.f32 %v3335, %v3382
          %v3509 = vadd.f32 %v3336, %v3386
          %v3510 = vadd.f32 %v3337, %v3390
          %v3511 = vadd.f32 %v3338, %v3378
          %v3512 = vadd.f32 %v3339, %v3382
          %v3513 = vadd.f32 %v3340, %v3386
          %v3514 = vadd.f32 %v3341, %v3390
          %v3515 = vadd.f32 %v3342, %v3378
          %v3516 = vadd.f32 %v3343, %v3382
          %v3517 = vadd.f32 %v3344, %v3386
          %v3518 = vadd.f32 %v3345, %v3390
          %v3519 = vadd.f32 %v3346, %v3378
          %v3520 = vadd.f32 %v3347, %v3382
          %v3521 = vadd.f32 %v3348, %v3386
          %v3522 = vadd.f32 %v3349, %v3390
          %v3523 = vadd.f32 %v3350, %v3378
          %v3524 = vadd.f32 %v3351, %v3382
          %v3525 = vadd.f32 %v3352, %v3386
          %v3526 = vadd.f32 %v3353, %v3390
          %v3527 = vadd.f32 %v3354, %v3378
          %v3528 = vadd.f32 %v3355, %v3382
          %v3529 = vadd.f32 %v3356, %v3386
          %v3530 = vadd.f32 %v3357, %v3390
          %v3531 = vadd.f32 %v3358, %v3378
          %v3532 = vadd.f32 %v3359, %v3382
          %v3533 = vadd.f32 %v3360, %v3386
          %v3534 = vadd.f32 %v3361, %v3390
          %v3535 = vadd.f32 %v3362, %v3378
          %v3536 = vadd.f32 %v3363, %v3382
          %v3537 = vadd.f32 %v3364, %v3386
          %v3538 = vadd.f32 %v3365, %v3390
          %v3539 = vadd.f32 %v3366, %v3378
          %v3540 = vadd.f32 %v3367, %v3382
          %v3541 = vadd.f32 %v3368, %v3386
          %v3542 = vadd.f32 %v3369, %v3390
          %v3543 = vadd.f32 %v3370, %v3378
          %v3544 = vadd.f32 %v3371, %v3382
          %v3545 = vadd.f32 %v3372, %v3386
          %v3546 = vadd.f32 %v3373, %v3390
          %v3547 = vmax.f32 %v3395, 0.0
          %v3548 = vmax.f32 %v3396, 0.0
          %v3549 = vmax.f32 %v3397, 0.0
          %v3550 = vmax.f32 %v3398, 0.0
          %v3551 = vmax.f32 %v3399, 0.0
          %v3552 = vmax.f32 %v3400, 0.0
          %v3553 = vmax.f32 %v3401, 0.0
          %v3554 = vmax.f32 %v3402, 0.0
          %v3555 = vmax.f32 %v3403, 0.0
          %v3556 = vmax.f32 %v3404, 0.0
          %v3557 = vmax.f32 %v3405, 0.0
          %v3558 = vmax.f32 %v3406, 0.0
          %v3559 = vmax.f32 %v3407, 0.0
          %v3560 = vmax.f32 %v3408, 0.0
          %v3561 = vmax.f32 %v3409, 0.0
          %v3562 = vmax.f32 %v3410, 0.0
          %v3563 = vmax.f32 %v3411, 0.0
          %v3564 = vmax.f32 %v3412, 0.0
          %v3565 = vmax.f32 %v3413, 0.0
          %v3566 = vmax.f32 %v3414, 0.0
          %v3567 = vmax.f32 %v3415, 0.0
          %v3568 = vmax.f32 %v3416, 0.0
          %v3569 = vmax.f32 %v3417, 0.0
          %v3570 = vmax.f32 %v3418, 0.0
          %v3571 = vmax.f32 %v3419, 0.0
          %v3572 = vmax.f32 %v3420, 0.0
          %v3573 = vmax.f32 %v3421, 0.0
          %v3574 = vmax.f32 %v3422, 0.0
          %v3575 = vmax.f32 %v3423, 0.0
          %v3576 = vmax.f32 %v3424, 0.0
          %v3577 = vmax.f32 %v3425, 0.0
          %v3578 = vmax.f32 %v3426, 0.0
          %v3579 = vmax.f32 %v3427, 0.0
          %v3580 = vmax.f32 %v3428, 0.0
          %v3581 = vmax.f32 %v3429, 0.0
          %v3582 = vmax.f32 %v3430, 0.0
          %v3583 = vmax.f32 %v3431, 0.0
          %v3584 = vmax.f32 %v3432, 0.0
          %v3585 = vmax.f32 %v3433, 0.0
          %v3586 = vmax.f32 %v3434, 0.0
          %v3587 = vmax.f32 %v3435, 0.0
          %v3588 = vmax.f32 %v3436, 0.0
          %v3589 = vmax.f32 %v3437, 0.0
          %v3590 = vmax.f32 %v3438, 0.0
          %v3591 = vmax.f32 %v3439, 0.0
          %v3592 = vmax.f32 %v3440, 0.0
          %v3593 = vmax.f32 %v3441, 0.0
          %v3594 = vmax.f32 %v3442, 0.0
          %v3595 = vmax.f32 %v3443, 0.0
          %v3596 = vmax.f32 %v3444, 0.0
          %v3597 = vmax.f32 %v3445, 0.0
          %v3598 = vmax.f32 %v3446, 0.0
          %v3599 = vmax.f32 %v3447, 0.0
          %v3600 = vmax.f32 %v3448, 0.0
          %v3601 = vmax.f32 %v3449, 0.0
          %v3602 = vmax.f32 %v3450, 0.0
          %v3603 = vmax.f32 %v3451, 0.0
          %v3604 = vmax.f32 %v3452, 0.0
          %v3605 = vmax.f32 %v3453, 0.0
          %v3606 = vmax.f32 %v3454, 0.0
          %v3607 = vmax.f32 %v3455, 0.0
          %v3608 = vmax.f32 %v3456, 0.0
          %v3609 = vmax.f32 %v3457, 0.0
          %v3610 = vmax.f32 %v3458, 0.0
          %v3611 = vmax.f32 %v3459, 0.0
          %v3612 = vmax.f32 %v3460, 0.0
          %v3613 = vmax.f32 %v3461, 0.0
          %v3614 = vmax.f32 %v3462, 0.0
          %v3615 = vmax.f32 %v3463, 0.0
          %v3616 = vmax.f32 %v3464, 0.0
          %v3617 = vmax.f32 %v3465, 0.0
          %v3618 = vmax.f32 %v3466, 0.0
          %v3619 = vmax.f32 %v3467, 0.0
          %v3620 = vmax.f32 %v3468, 0.0
          %v3621 = vmax.f32 %v3469, 0.0
          %v3622 = vmax.f32 %v3470, 0.0
          %v3623 = vmax.f32 %v3471, 0.0
          %v3624 = vmax.f32 %v3472, 0.0
          %v3625 = vmax.f32 %v3473, 0.0
          %v3626 = vmax.f32 %v3474, 0.0
          %v3627 = vmax.f32 %v3475, 0.0
          %v3628 = vmax.f32 %v3476, 0.0
          %v3629 = vmax.f32 %v3477, 0.0
          %v3630 = vmax.f32 %v3478, 0.0
          %v3631 = vmax.f32 %v3479, 0.0
          %v3632 = vmax.f32 %v3480, 0.0
          %v3633 = vmax.f32 %v3481, 0.0
          %v3634 = vmax.f32 %v3482, 0.0
          %v3635 = vmax.f32 %v3483, 0.0
          %v3636 = vmax.f32 %v3484, 0.0
          %v3637 = vmax.f32 %v3485, 0.0
          %v3638 = vmax.f32 %v3486, 0.0
          %v3639 = vmax.f32 %v3487, 0.0
          %v3640 = vmax.f32 %v3488, 0.0
          %v3641 = vmax.f32 %v3489, 0.0
          %v3642 = vmax.f32 %v3490, 0.0
          %v3643 = vmax.f32 %v3491, 0.0
          %v3644 = vmax.f32 %v3492, 0.0
          %v3645 = vmax.f32 %v3493, 0.0
          %v3646 = vmax.f32 %v3494, 0.0
          %v3647 = vmax.f32 %v3495, 0.0
          %v3648 = vmax.f32 %v3496, 0.0
          %v3649 = vmax.f32 %v3497, 0.0
          %v3650 = vmax.f32 %v3498, 0.0
          %v3651 = vmax.f32 %v3499, 0.0
          %v3652 = vmax.f32 %v3500, 0.0
          %v3653 = vmax.f32 %v3501, 0.0
          %v3654 = vmax.f32 %v3502, 0.0
          %v3655 = vmax.f32 %v3503, 0.0
          %v3656 = vmax.f32 %v3504, 0.0
          %v3657 = vmax.f32 %v3505, 0.0
          %v3658 = vmax.f32 %v3506, 0.0
          %v3659 = vmax.f32 %v3507, 0.0
          %v3660 = vmax.f32 %v3508, 0.0
          %v3661 = vmax.f32 %v3509, 0.0
          %v3662 = vmax.f32 %v3510, 0.0
          %v3663 = vmax.f32 %v3511, 0.0
          %v3664 = vmax.f32 %v3512, 0.0
          %v3665 = vmax.f32 %v3513, 0.0
          %v3666 = vmax.f32 %v3514, 0.0
          %v3667 = vmax.f32 %v3515, 0.0
          %v3668 = vmax.f32 %v3516, 0.0
          %v3669 = vmax.f32 %v3517, 0.0
          %v3670 = vmax.f32 %v3518, 0.0
          %v3671 = vmax.f32 %v3519, 0.0
          %v3672 = vmax.f32 %v3520, 0.0
          %v3673 = vmax.f32 %v3521, 0.0
          %v3674 = vmax.f32 %v3522, 0.0
          %v3675 = vmax.f32 %v3523, 0.0
          %v3676 = vmax.f32 %v3524, 0.0
          %v3677 = vmax.f32 %v3525, 0.0
          %v3678 = vmax.f32 %v3526, 0.0
          %v3679 = vmax.f32 %v3527, 0.0
          %v3680 = vmax.f32 %v3528, 0.0
          %v3681 = vmax.f32 %v3529, 0.0
          %v3682 = vmax.f32 %v3530, 0.0
          %v3683 = vmax.f32 %v3531, 0.0
          %v3684 = vmax.f32 %v3532, 0.0
          %v3685 = vmax.f32 %v3533, 0.0
          %v3686 = vmax.f32 %v3534, 0.0
          %v3687 = vmax.f32 %v3535, 0.0
          %v3688 = vmax.f32 %v3536, 0.0
          %v3689 = vmax.f32 %v3537, 0.0
          %v3690 = vmax.f32 %v3538, 0.0
          %v3691 = vmax.f32 %v3539, 0.0
          %v3692 = vmax.f32 %v3540, 0.0
          %v3693 = vmax.f32 %v3541, 0.0
          %v3694 = vmax.f32 %v3542, 0.0
          %v3695 = vmax.f32 %v3543, 0.0
          %v3696 = vmax.f32 %v3544, 0.0
          %v3697 = vmax.f32 %v3545, 0.0
          %v3698 = vmax.f32 %v3546, 0.0
          %v3699 = vpack.c.bf16 %v3551, %v3547
          %v3700 = vpack.c.bf16 %v3552, %v3548
          %v3701 = vpack.c.bf16 %v3553, %v3549
          %v3702 = vpack.c.bf16 %v3554, %v3550
          %v3703 = vpack.c.bf16 %v3559, %v3555
          %v3704 = vpack.c.bf16 %v3560, %v3556
          %v3705 = vpack.c.bf16 %v3561, %v3557
          %v3706 = vpack.c.bf16 %v3562, %v3558
          %v3707 = vpack.c.bf16 %v3567, %v3563
          %v3708 = vpack.c.bf16 %v3568, %v3564
          %v3709 = vpack.c.bf16 %v3569, %v3565
          %v3710 = vpack.c.bf16 %v3570, %v3566
          %v3711 = vpack.c.bf16 %v3575, %v3571
          %v3712 = vpack.c.bf16 %v3576, %v3572
          %v3713 = vpack.c.bf16 %v3577, %v3573
          %v3714 = vpack.c.bf16 %v3578, %v3574
          %v3715 = vpack.c.bf16 %v3583, %v3579
          %v3716 = vpack.c.bf16 %v3584, %v3580
          %v3717 = vpack.c.bf16 %v3585, %v3581
          %v3718 = vpack.c.bf16 %v3586, %v3582
          %v3719 = vpack.c.bf16 %v3591, %v3587
          %v3720 = vpack.c.bf16 %v3592, %v3588
          %v3721 = vpack.c.bf16 %v3593, %v3589
          %v3722 = vpack.c.bf16 %v3594, %v3590
          %v3723 = vpack.c.bf16 %v3599, %v3595
          %v3724 = vpack.c.bf16 %v3600, %v3596
          %v3725 = vpack.c.bf16 %v3601, %v3597
          %v3726 = vpack.c.bf16 %v3602, %v3598
          %v3727 = vpack.c.bf16 %v3607, %v3603
          %v3728 = vpack.c.bf16 %v3608, %v3604
          %v3729 = vpack.c.bf16 %v3609, %v3605
          %v3730 = vpack.c.bf16 %v3610, %v3606
          %v3731 = vpack.c.bf16 %v3615, %v3611
          %v3732 = vpack.c.bf16 %v3616, %v3612
          %v3733 = vpack.c.bf16 %v3617, %v3613
          %v3734 = vpack.c.bf16 %v3618, %v3614
          %v3735 = vpack.c.bf16 %v3623, %v3619
          %v3736 = vpack.c.bf16 %v3624, %v3620
          %v3737 = vpack.c.bf16 %v3625, %v3621
          %v3738 = vpack.c.bf16 %v3626, %v3622
          %v3739 = vpack.c.bf16 %v3631, %v3627
          %v3740 = vpack.c.bf16 %v3632, %v3628
          %v3741 = vpack.c.bf16 %v3633, %v3629
          %v3742 = vpack.c.bf16 %v3634, %v3630
          %v3743 = vpack.c.bf16 %v3639, %v3635
          %v3744 = vpack.c.bf16 %v3640, %v3636
          %v3745 = vpack.c.bf16 %v3641, %v3637
          %v3746 = vpack.c.bf16 %v3642, %v3638
          %v3747 = vpack.c.bf16 %v3647, %v3643
          %v3748 = vpack.c.bf16 %v3648, %v3644
          %v3749 = vpack.c.bf16 %v3649, %v3645
          %v3750 = vpack.c.bf16 %v3650, %v3646
          %v3751 = vpack.c.bf16 %v3655, %v3651
          %v3752 = vpack.c.bf16 %v3656, %v3652
          %v3753 = vpack.c.bf16 %v3657, %v3653
          %v3754 = vpack.c.bf16 %v3658, %v3654
          %v3755 = vpack.c.bf16 %v3663, %v3659
          %v3756 = vpack.c.bf16 %v3664, %v3660
          %v3757 = vpack.c.bf16 %v3665, %v3661
          %v3758 = vpack.c.bf16 %v3666, %v3662
          %v3759 = vpack.c.bf16 %v3671, %v3667
          %v3760 = vpack.c.bf16 %v3672, %v3668
          %v3761 = vpack.c.bf16 %v3673, %v3669
          %v3762 = vpack.c.bf16 %v3674, %v3670
          %v3763 = vpack.c.bf16 %v3679, %v3675
          %v3764 = vpack.c.bf16 %v3680, %v3676
          %v3765 = vpack.c.bf16 %v3681, %v3677
          %v3766 = vpack.c.bf16 %v3682, %v3678
          %v3767 = vpack.c.bf16 %v3687, %v3683
          %v3768 = vpack.c.bf16 %v3688, %v3684
          %v3769 = vpack.c.bf16 %v3689, %v3685
          %v3770 = vpack.c.bf16 %v3690, %v3686
          %v3771 = vpack.c.bf16 %v3695, %v3691
          %v3772 = vpack.c.bf16 %v3696, %v3692
          %v3773 = vpack.c.bf16 %v3697, %v3693
          %v3774 = vpack.c.bf16 %v3698, %v3694
          %v3775 = vld [vmem:[#allocation13] sm:$0xf]
          %v3776 = vld [vmem:[#allocation13 + $0x4] sm:$0xf]
          %v3777 = vld [vmem:[#allocation13 + $0x8] sm:$0xf]
          %v3778 = vld [vmem:[#allocation13 + $0xc] sm:$0xf]
          %v3779 = vld [vmem:[#allocation13 + $0x10] sm:$0xf]
          %v3780 = vld [vmem:[#allocation13 + $0x14] sm:$0xf]
          %v3781 = vld [vmem:[#allocation13 + $0x18] sm:$0xf]
          %v3782 = vld [vmem:[#allocation13 + $0x1c] sm:$0xf]
          %v3783 = vld [vmem:[#allocation13 + $0x20] sm:$0xf]
          %v3784 = vld [vmem:[#allocation13 + $0x24] sm:$0xf]
          %v3785 = vld [vmem:[#allocation13 + $0x28] sm:$0xf]
          %v3786 = vld [vmem:[#allocation13 + $0x2c] sm:$0xf]
          %v3787 = vld [vmem:[#allocation13 + $0x30] sm:$0xf]
          %v3788 = vld [vmem:[#allocation13 + $0x34] sm:$0xf]
          %v3789 = vld [vmem:[#allocation13 + $0x38] sm:$0xf]
          %v3790 = vld [vmem:[#allocation13 + $0x3c] sm:$0xf]
          %v3791 = vld [vmem:[#allocation13 + $0x40] sm:$0xf]
          %v3792 = vld [vmem:[#allocation13 + $0x44] sm:$0xf]
          %v3793 = vld [vmem:[#allocation13 + $0x48] sm:$0xf]
          %v3794 = vld [vmem:[#allocation13 + $0x4c] sm:$0xf]
          %v3795 = vld [vmem:[#allocation13 + $0x50] sm:$0xf]
          %v3796 = vld [vmem:[#allocation13 + $0x54] sm:$0xf]
          %v3797 = vld [vmem:[#allocation13 + $0x58] sm:$0xf]
          %v3798 = vld [vmem:[#allocation13 + $0x5c] sm:$0xf]
          %v3799 = vld [vmem:[#allocation13 + $0x60] sm:$0xf]
          %v3800 = vld [vmem:[#allocation13 + $0x64] sm:$0xf]
          %v3801 = vld [vmem:[#allocation13 + $0x68] sm:$0xf]
          %v3802 = vld [vmem:[#allocation13 + $0x6c] sm:$0xf]
          %v3803 = vld [vmem:[#allocation13 + $0x70] sm:$0xf]
          %v3804 = vld [vmem:[#allocation13 + $0x74] sm:$0xf]
          %v3805 = vld [vmem:[#allocation13 + $0x78] sm:$0xf]
          %v3806 = vld [vmem:[#allocation13 + $0x7c] sm:$0xf]
          %v3807 = vld [vmem:[#allocation13 + $0x80] sm:$0xf]
          %v3808 = vld [vmem:[#allocation13 + $0x84] sm:$0xf]
          %v3809 = vld [vmem:[#allocation13 + $0x88] sm:$0xf]
          %v3810 = vld [vmem:[#allocation13 + $0x8c] sm:$0xf]
          %v3811 = vld [vmem:[#allocation13 + $0x90] sm:$0xf]
          %v3812 = vld [vmem:[#allocation13 + $0x94] sm:$0xf]
          %v3813 = vld [vmem:[#allocation13 + $0x98] sm:$0xf]
          %v3814 = vld [vmem:[#allocation13 + $0x9c] sm:$0xf]
          %v3815 = vld [vmem:[#allocation13 + $0xa0] sm:$0xf]
          %v3816 = vld [vmem:[#allocation13 + $0xa4] sm:$0xf]
          %v3817 = vld [vmem:[#allocation13 + $0xa8] sm:$0xf]
          %v3818 = vld [vmem:[#allocation13 + $0xac] sm:$0xf]
          %v3819 = vld [vmem:[#allocation13 + $0xb0] sm:$0xf]
          %v3820 = vld [vmem:[#allocation13 + $0xb4] sm:$0xf]
          %v3821 = vld [vmem:[#allocation13 + $0xb8] sm:$0xf]
          %v3822 = vld [vmem:[#allocation13 + $0xbc] sm:$0xf]
          %v3823 = vld [vmem:[#allocation13 + $0xc0] sm:$0xf]
          %v3824 = vld [vmem:[#allocation13 + $0xc4] sm:$0xf]
          %v3825 = vld [vmem:[#allocation13 + $0xc8] sm:$0xf]
          %v3826 = vld [vmem:[#allocation13 + $0xcc] sm:$0xf]
          %v3827 = vld [vmem:[#allocation13 + $0xd0] sm:$0xf]
          %v3828 = vld [vmem:[#allocation13 + $0xd4] sm:$0xf]
          %v3829 = vld [vmem:[#allocation13 + $0xd8] sm:$0xf]
          %v3830 = vld [vmem:[#allocation13 + $0xdc] sm:$0xf]
          %v3831 = vld [vmem:[#allocation13 + $0xe0] sm:$0xf]
          %v3832 = vld [vmem:[#allocation13 + $0xe4] sm:$0xf]
          %v3833 = vld [vmem:[#allocation13 + $0xe8] sm:$0xf]
          %v3834 = vld [vmem:[#allocation13 + $0xec] sm:$0xf]
          %v3835 = vld [vmem:[#allocation13 + $0xf0] sm:$0xf]
          %v3836 = vld [vmem:[#allocation13 + $0xf4] sm:$0xf]
          %v3837 = vld [vmem:[#allocation13 + $0xf8] sm:$0xf]
          %v3838 = vld [vmem:[#allocation13 + $0xfc] sm:$0xf]
          %v3839 = vld [vmem:[%s6] sm:$0x1]
          %v3841 = vlaneseq
          %v3842 = vshrl.u32 %v3841, 7
          %v3843 = vsub.s32 0, %v3842
          %v3844 = vrot.slane %v3839, %v3843
          %v3910 = vunpack.c.l.b16 %v3775
          %v3911 = vunpack.c.l.b16 %v3776
          %v3912 = vunpack.c.l.b16 %v3777
          %v3913 = vunpack.c.l.b16 %v3778
          %v3914 = vunpack.c.l.b16 %v3779
          %v3915 = vunpack.c.l.b16 %v3780
          %v3916 = vunpack.c.l.b16 %v3781
          %v3917 = vunpack.c.l.b16 %v3782
          %v3918 = vunpack.c.l.b16 %v3783
          %v3919 = vunpack.c.l.b16 %v3784
          %v3920 = vunpack.c.l.b16 %v3785
          %v3921 = vunpack.c.l.b16 %v3786
          %v3922 = vunpack.c.l.b16 %v3787
          %v3923 = vunpack.c.l.b16 %v3788
          %v3924 = vunpack.c.l.b16 %v3789
          %v3925 = vunpack.c.l.b16 %v3790
          %v3926 = vunpack.c.l.b16 %v3791
          %v3927 = vunpack.c.l.b16 %v3792
          %v3928 = vunpack.c.l.b16 %v3793
          %v3929 = vunpack.c.l.b16 %v3794
          %v3930 = vunpack.c.l.b16 %v3795
          %v3931 = vunpack.c.l.b16 %v3796
          %v3932 = vunpack.c.l.b16 %v3797
          %v3933 = vunpack.c.l.b16 %v3798
          %v3934 = vunpack.c.l.b16 %v3799
          %v3935 = vunpack.c.l.b16 %v3800
          %v3936 = vunpack.c.l.b16 %v3801
          %v3937 = vunpack.c.l.b16 %v3802
          %v3938 = vunpack.c.l.b16 %v3803
          %v3939 = vunpack.c.l.b16 %v3804
          %v3940 = vunpack.c.l.b16 %v3805
          %v3941 = vunpack.c.l.b16 %v3806
          %v3942 = vunpack.c.l.b16 %v3807
          %v3943 = vunpack.c.l.b16 %v3808
          %v3944 = vunpack.c.l.b16 %v3809
          %v3945 = vunpack.c.l.b16 %v3810
          %v3946 = vunpack.c.l.b16 %v3811
          %v3947 = vunpack.c.l.b16 %v3812
          %v3948 = vunpack.c.l.b16 %v3813
          %v3949 = vunpack.c.l.b16 %v3814
          %v3950 = vunpack.c.l.b16 %v3815
          %v3951 = vunpack.c.l.b16 %v3816
          %v3952 = vunpack.c.l.b16 %v3817
          %v3953 = vunpack.c.l.b16 %v3818
          %v3954 = vunpack.c.l.b16 %v3819
          %v3955 = vunpack.c.l.b16 %v3820
          %v3956 = vunpack.c.l.b16 %v3821
          %v3957 = vunpack.c.l.b16 %v3822
          %v3958 = vunpack.c.l.b16 %v3823
          %v3959 = vunpack.c.l.b16 %v3824
          %v3960 = vunpack.c.l.b16 %v3825
          %v3961 = vunpack.c.l.b16 %v3826
          %v3962 = vunpack.c.l.b16 %v3827
          %v3963 = vunpack.c.l.b16 %v3828
          %v3964 = vunpack.c.l.b16 %v3829
          %v3965 = vunpack.c.l.b16 %v3830
          %v3966 = vunpack.c.l.b16 %v3831
          %v3967 = vunpack.c.l.b16 %v3832
          %v3968 = vunpack.c.l.b16 %v3833
          %v3969 = vunpack.c.l.b16 %v3834
          %v3970 = vunpack.c.l.b16 %v3835
          %v3971 = vunpack.c.l.b16 %v3836
          %v3972 = vunpack.c.l.b16 %v3837
          %v3973 = vunpack.c.l.b16 %v3838
          %v3974 = vpack.c.b16 %v3911, %v3910
          %v3975 = vpack.c.b16 %v3913, %v3912
          %v3976 = vpack.c.b16 %v3915, %v3914
          %v3977 = vpack.c.b16 %v3917, %v3916
          %v3978 = vpack.c.b16 %v3919, %v3918
          %v3979 = vpack.c.b16 %v3921, %v3920
          %v3980 = vpack.c.b16 %v3923, %v3922
          %v3981 = vpack.c.b16 %v3925, %v3924
          %v3982 = vpack.c.b16 %v3927, %v3926
          %v3983 = vpack.c.b16 %v3929, %v3928
          %v3984 = vpack.c.b16 %v3931, %v3930
          %v3985 = vpack.c.b16 %v3933, %v3932
          %v3986 = vpack.c.b16 %v3935, %v3934
          %v3987 = vpack.c.b16 %v3937, %v3936
          %v3988 = vpack.c.b16 %v3939, %v3938
          %v3989 = vpack.c.b16 %v3941, %v3940
          %v3990 = vpack.c.b16 %v3943, %v3942
          %v3991 = vpack.c.b16 %v3945, %v3944
          %v3992 = vpack.c.b16 %v3947, %v3946
          %v3993 = vpack.c.b16 %v3949, %v3948
          %v3994 = vpack.c.b16 %v3951, %v3950
          %v3995 = vpack.c.b16 %v3953, %v3952
          %v3996 = vpack.c.b16 %v3955, %v3954
          %v3997 = vpack.c.b16 %v3957, %v3956
          %v3998 = vpack.c.b16 %v3959, %v3958
          %v3999 = vpack.c.b16 %v3961, %v3960
          %v4000 = vpack.c.b16 %v3963, %v3962
          %v4001 = vpack.c.b16 %v3965, %v3964
          %v4002 = vpack.c.b16 %v3967, %v3966
          %v4003 = vpack.c.b16 %v3969, %v3968
          %v4004 = vpack.c.b16 %v3971, %v3970
          %v4005 = vpack.c.b16 %v3973, %v3972
          %4038 = vmatprep.subr.bf16.mxu0 0
          %4039 = vmatpush1.bf16.msra.mxu0 %v3981
          %4040 = vmatprep.subr.bf16.mxu0 0
          %4041 = vmatpush1.bf16.msra.mxu0 %v3980
          %4042 = vmatprep.subr.bf16.mxu0 0
          %4043 = vmatpush1.bf16.msra.mxu0 %v3979
          %4044 = vmatprep.subr.bf16.mxu0 0
          %4045 = vmatpush1.bf16.msra.mxu0 %v3978
          %4046 = vmatprep.subr.bf16.mxu0 0
          %4047 = vmatpush1.bf16.msra.mxu0 %v3977
          %4048 = vmatprep.subr.bf16.mxu0 0
          %4049 = vmatpush1.bf16.msra.mxu0 %v3976
          %4050 = vmatprep.subr.bf16.mxu0 0
          %4051 = vmatpush1.bf16.msra.mxu0 %v3975
          %4052 = vmatprep.subr.bf16.mxu0 0
          %4053 = vmatpush1.bf16.msra.mxu0 %v3974
          %4054 = vmatprep.subr.bf16.mxu0 0
          %4055 = vmatpush2.bf16.msra.mxu0 %v3989
          %4056 = vmatprep.subr.bf16.mxu0 0
          %4057 = vmatpush2.bf16.msra.mxu0 %v3988
          %4058 = vmatprep.subr.bf16.mxu0 0
          %4059 = vmatpush2.bf16.msra.mxu0 %v3987
          %4060 = vmatprep.subr.bf16.mxu0 0
          %4061 = vmatpush2.bf16.msra.mxu0 %v3986
          %4062 = vmatprep.subr.bf16.mxu0 0
          %4063 = vmatpush2.bf16.msra.mxu0 %v3985
          %4064 = vmatprep.subr.bf16.mxu0 0
          %4065 = vmatpush2.bf16.msra.mxu0 %v3984
          %4066 = vmatprep.subr.bf16.mxu0 0
          %4067 = vmatpush2.bf16.msra.mxu0 %v3983
          %4068 = vmatprep.subr.bf16.mxu0 0
          %4069 = vmatpush2.bf16.msra.mxu0 %v3982
          %4070 = vmatprep.mubr.bf16.mxu0 %v3700
          %4071 = vmatmul.mubr.bf16.gmra.mxu0 %v3699
          %v4072 = vpop.f32.mrf.mxu0
          %v4073 = vadd.f32 %v3844, %v4072
          %v4074 = vpop.f32.mrf.mxu0
          %v4075 = vpop.f32.mrf.mxu0
          %v4076 = vadd.f32 %v3844, %v4075
          %v4077 = vpop.f32.mrf.mxu0
          %4078 = vmatprep.mubr.bf16.mxu0 %v3704
          %4079 = vmatmul.mubr.bf16.gmra.mxu0 %v3703
          %v4080 = vpop.f32.mrf.mxu0
          %v4081 = vadd.f32 %v3844, %v4080
          %v4082 = vpop.f32.mrf.mxu0
          %v4083 = vpop.f32.mrf.mxu0
          %v4084 = vadd.f32 %v3844, %v4083
          %v4085 = vpop.f32.mrf.mxu0
          %4086 = vmatprep.mubr.bf16.mxu0 %v3708
          %4087 = vmatmul.mubr.bf16.gmra.mxu0 %v3707
          %v4088 = vpop.f32.mrf.mxu0
          %v4089 = vadd.f32 %v3844, %v4088
          %v4090 = vpop.f32.mrf.mxu0
          %v4091 = vpop.f32.mrf.mxu0
          %v4092 = vadd.f32 %v3844, %v4091
          %v4093 = vpop.f32.mrf.mxu0
          %4094 = vmatprep.mubr.bf16.mxu0 %v3712
          %4095 = vmatmul.mubr.bf16.gmra.mxu0 %v3711
          %v4096 = vpop.f32.mrf.mxu0
          %v4097 = vadd.f32 %v3844, %v4096
          %v4098 = vpop.f32.mrf.mxu0
          %v4099 = vpop.f32.mrf.mxu0
          %v4100 = vadd.f32 %v3844, %v4099
          %v4101 = vpop.f32.mrf.mxu0
          %4102 = vmatprep.mubr.bf16.mxu0 %v3716
          %4103 = vmatmul.mubr.bf16.gmra.mxu0 %v3715
          %v4104 = vpop.f32.mrf.mxu0
          %v4105 = vadd.f32 %v3844, %v4104
          %v4106 = vpop.f32.mrf.mxu0
          %v4107 = vpop.f32.mrf.mxu0
          %v4108 = vadd.f32 %v3844, %v4107
          %v4109 = vpop.f32.mrf.mxu0
          %4110 = vmatprep.mubr.bf16.mxu0 %v3720
          %4111 = vmatmul.mubr.bf16.gmra.mxu0 %v3719
          %v4112 = vpop.f32.mrf.mxu0
          %v4113 = vadd.f32 %v3844, %v4112
          %v4114 = vpop.f32.mrf.mxu0
          %v4115 = vpop.f32.mrf.mxu0
          %v4116 = vadd.f32 %v3844, %v4115
          %v4117 = vpop.f32.mrf.mxu0
          %4118 = vmatprep.mubr.bf16.mxu0 %v3724
          %4119 = vmatmul.mubr.bf16.gmra.mxu0 %v3723
          %v4120 = vpop.f32.mrf.mxu0
          %v4121 = vadd.f32 %v3844, %v4120
          %v4122 = vpop.f32.mrf.mxu0
          %v4123 = vpop.f32.mrf.mxu0
          %v4124 = vadd.f32 %v3844, %v4123
          %v4125 = vpop.f32.mrf.mxu0
          %4126 = vmatprep.mubr.bf16.mxu0 %v3728
          %4127 = vmatmul.mubr.bf16.gmra.mxu0 %v3727
          %v4128 = vpop.f32.mrf.mxu0
          %v4129 = vadd.f32 %v3844, %v4128
          %v4130 = vpop.f32.mrf.mxu0
          %v4131 = vpop.f32.mrf.mxu0
          %v4132 = vadd.f32 %v3844, %v4131
          %v4133 = vpop.f32.mrf.mxu0
          %4134 = vmatprep.mubr.bf16.mxu0 %v3732
          %4135 = vmatmul.mubr.bf16.gmra.mxu0 %v3731
          %v4136 = vpop.f32.mrf.mxu0
          %v4137 = vadd.f32 %v3844, %v4136
          %v4138 = vpop.f32.mrf.mxu0
          %v4139 = vpop.f32.mrf.mxu0
          %v4140 = vadd.f32 %v3844, %v4139
          %v4141 = vpop.f32.mrf.mxu0
          %4142 = vmatprep.mubr.bf16.mxu0 %v3736
          %4143 = vmatmul.mubr.bf16.gmra.mxu0 %v3735
          %v4144 = vpop.f32.mrf.mxu0
          %v4145 = vadd.f32 %v3844, %v4144
          %v4146 = vpop.f32.mrf.mxu0
          %v4147 = vpop.f32.mrf.mxu0
          %v4148 = vadd.f32 %v3844, %v4147
          %v4149 = vpop.f32.mrf.mxu0
          %4150 = vmatprep.mubr.bf16.mxu0 %v3740
          %4151 = vmatmul.mubr.bf16.gmra.mxu0 %v3739
          %v4152 = vpop.f32.mrf.mxu0
          %v4153 = vadd.f32 %v3844, %v4152
          %v4154 = vpop.f32.mrf.mxu0
          %v4155 = vpop.f32.mrf.mxu0
          %v4156 = vadd.f32 %v3844, %v4155
          %v4157 = vpop.f32.mrf.mxu0
          %4158 = vmatprep.mubr.bf16.mxu0 %v3744
          %4159 = vmatmul.mubr.bf16.gmra.mxu0 %v3743
          %v4160 = vpop.f32.mrf.mxu0
          %v4161 = vadd.f32 %v3844, %v4160
          %v4162 = vpop.f32.mrf.mxu0
          %v4163 = vpop.f32.mrf.mxu0
          %v4164 = vadd.f32 %v3844, %v4163
          %v4165 = vpop.f32.mrf.mxu0
          %4166 = vmatprep.mubr.bf16.mxu0 %v3748
          %4167 = vmatmul.mubr.bf16.gmra.mxu0 %v3747
          %v4168 = vpop.f32.mrf.mxu0
          %v4169 = vadd.f32 %v3844, %v4168
          %v4170 = vpop.f32.mrf.mxu0
          %v4171 = vpop.f32.mrf.mxu0
          %v4172 = vadd.f32 %v3844, %v4171
          %v4173 = vpop.f32.mrf.mxu0
          %4174 = vmatprep.mubr.bf16.mxu0 %v3752
          %4175 = vmatmul.mubr.bf16.gmra.mxu0 %v3751
          %v4176 = vpop.f32.mrf.mxu0
          %v4177 = vadd.f32 %v3844, %v4176
          %v4178 = vpop.f32.mrf.mxu0
          %v4179 = vpop.f32.mrf.mxu0
          %v4180 = vadd.f32 %v3844, %v4179
          %v4181 = vpop.f32.mrf.mxu0
          %4182 = vmatprep.mubr.bf16.mxu0 %v3756
          %4183 = vmatmul.mubr.bf16.gmra.mxu0 %v3755
          %v4184 = vpop.f32.mrf.mxu0
          %v4185 = vadd.f32 %v3844, %v4184
          %v4186 = vpop.f32.mrf.mxu0
          %v4187 = vpop.f32.mrf.mxu0
          %v4188 = vadd.f32 %v3844, %v4187
          %v4189 = vpop.f32.mrf.mxu0
          %4190 = vmatprep.mubr.bf16.mxu0 %v3760
          %4191 = vmatmul.mubr.bf16.gmra.mxu0 %v3759
          %v4192 = vpop.f32.mrf.mxu0
          %v4193 = vadd.f32 %v3844, %v4192
          %v4194 = vpop.f32.mrf.mxu0
          %v4195 = vpop.f32.mrf.mxu0
          %v4196 = vadd.f32 %v3844, %v4195
          %v4197 = vpop.f32.mrf.mxu0
          %4198 = vmatprep.mubr.bf16.mxu0 %v3764
          %4199 = vmatmul.mubr.bf16.gmra.mxu0 %v3763
          %v4200 = vpop.f32.mrf.mxu0
          %v4201 = vadd.f32 %v3844, %v4200
          %v4202 = vpop.f32.mrf.mxu0
          %v4203 = vpop.f32.mrf.mxu0
          %v4204 = vadd.f32 %v3844, %v4203
          %v4205 = vpop.f32.mrf.mxu0
          %4206 = vmatprep.mubr.bf16.mxu0 %v3768
          %4207 = vmatmul.mubr.bf16.gmra.mxu0 %v3767
          %v4208 = vpop.f32.mrf.mxu0
          %v4209 = vadd.f32 %v3844, %v4208
          %v4210 = vpop.f32.mrf.mxu0
          %v4211 = vpop.f32.mrf.mxu0
          %v4212 = vadd.f32 %v3844, %v4211
          %v4213 = vpop.f32.mrf.mxu0
          %4214 = vmatprep.mubr.bf16.mxu0 %v3772
          %4215 = vmatmul.mubr.bf16.gmra.mxu0 %v3771
          %v4216 = vpop.f32.mrf.mxu0
          %v4217 = vadd.f32 %v3844, %v4216
          %v4218 = vpop.f32.mrf.mxu0
          %v4219 = vpop.f32.mrf.mxu0
          %v4220 = vadd.f32 %v3844, %v4219
          %v4221 = vpop.f32.mrf.mxu0
          %4222 = vdwg.mxu0
          %4223 = vmatprep.subr.bf16.mxu0 0
          %4224 = vmatpush1.bf16.msra.mxu0 %v3997
          %4225 = vmatprep.subr.bf16.mxu0 0
          %4226 = vmatpush1.bf16.msra.mxu0 %v3996
          %4227 = vmatprep.subr.bf16.mxu0 0
          %4228 = vmatpush1.bf16.msra.mxu0 %v3995
          %4229 = vmatprep.subr.bf16.mxu0 0
          %4230 = vmatpush1.bf16.msra.mxu0 %v3994
          %4231 = vmatprep.subr.bf16.mxu0 0
          %4232 = vmatpush1.bf16.msra.mxu0 %v3993
          %4233 = vmatprep.subr.bf16.mxu0 0
          %4234 = vmatpush1.bf16.msra.mxu0 %v3992
          %4235 = vmatprep.subr.bf16.mxu0 0
          %4236 = vmatpush1.bf16.msra.mxu0 %v3991
          %4237 = vmatprep.subr.bf16.mxu0 0
          %4238 = vmatpush1.bf16.msra.mxu0 %v3990
          %4239 = vmatprep.subr.bf16.mxu0 0
          %4240 = vmatpush2.bf16.msra.mxu0 %v4005
          %4241 = vmatprep.subr.bf16.mxu0 0
          %4242 = vmatpush2.bf16.msra.mxu0 %v4004
          %4243 = vmatprep.subr.bf16.mxu0 0
          %4244 = vmatpush2.bf16.msra.mxu0 %v4003
          %4245 = vmatprep.subr.bf16.mxu0 0
          %4246 = vmatpush2.bf16.msra.mxu0 %v4002
          %4247 = vmatprep.subr.bf16.mxu0 0
          %4248 = vmatpush2.bf16.msra.mxu0 %v4001
          %4249 = vmatprep.subr.bf16.mxu0 0
          %4250 = vmatpush2.bf16.msra.mxu0 %v4000
          %4251 = vmatprep.subr.bf16.mxu0 0
          %4252 = vmatpush2.bf16.msra.mxu0 %v3999
          %4253 = vmatprep.subr.bf16.mxu0 0
          %4254 = vmatpush2.bf16.msra.mxu0 %v3998
          %4255 = vmatprep.mubr.bf16.mxu0 %v3702
          %4256 = vmatmul.mubr.bf16.gmra.mxu0 %v3701
          %v4257 = vpop.f32.mrf.mxu0
          %v4258 = vadd.f32 %v4073, %v4257
          %v4259 = vpop.f32.mrf.mxu0
          %v4260 = vpop.f32.mrf.mxu0
          %v4261 = vadd.f32 %v4076, %v4260
          %v4262 = vpop.f32.mrf.mxu0
          %4263 = vmatprep.mubr.bf16.mxu0 %v3706
          %4264 = vmatmul.mubr.bf16.gmra.mxu0 %v3705
          %v4265 = vpop.f32.mrf.mxu0
          %v4266 = vadd.f32 %v4081, %v4265
          %v4267 = vpop.f32.mrf.mxu0
          %v4268 = vpop.f32.mrf.mxu0
          %v4269 = vadd.f32 %v4084, %v4268
          %v4270 = vpop.f32.mrf.mxu0
          %4271 = vmatprep.mubr.bf16.mxu0 %v3710
          %4272 = vmatmul.mubr.bf16.gmra.mxu0 %v3709
          %v4273 = vpop.f32.mrf.mxu0
          %v4274 = vadd.f32 %v4089, %v4273
          %v4275 = vpop.f32.mrf.mxu0
          %v4276 = vpop.f32.mrf.mxu0
          %v4277 = vadd.f32 %v4092, %v4276
          %v4278 = vpop.f32.mrf.mxu0
          %4279 = vmatprep.mubr.bf16.mxu0 %v3714
          %4280 = vmatmul.mubr.bf16.gmra.mxu0 %v3713
          %v4281 = vpop.f32.mrf.mxu0
          %v4282 = vadd.f32 %v4097, %v4281
          %v4283 = vpop.f32.mrf.mxu0
          %v4284 = vpop.f32.mrf.mxu0
          %v4285 = vadd.f32 %v4100, %v4284
          %v4286 = vpop.f32.mrf.mxu0
          %4287 = vmatprep.mubr.bf16.mxu0 %v3718
          %4288 = vmatmul.mubr.bf16.gmra.mxu0 %v3717
          %v4289 = vpop.f32.mrf.mxu0
          %v4290 = vadd.f32 %v4105, %v4289
          %v4291 = vpop.f32.mrf.mxu0
          %v4292 = vpop.f32.mrf.mxu0
          %v4293 = vadd.f32 %v4108, %v4292
          %v4294 = vpop.f32.mrf.mxu0
          %4295 = vmatprep.mubr.bf16.mxu0 %v3722
          %4296 = vmatmul.mubr.bf16.gmra.mxu0 %v3721
          %v4297 = vpop.f32.mrf.mxu0
          %v4298 = vadd.f32 %v4113, %v4297
          %v4299 = vpop.f32.mrf.mxu0
          %v4300 = vpop.f32.mrf.mxu0
          %v4301 = vadd.f32 %v4116, %v4300
          %v4302 = vpop.f32.mrf.mxu0
          %4303 = vmatprep.mubr.bf16.mxu0 %v3726
          %4304 = vmatmul.mubr.bf16.gmra.mxu0 %v3725
          %v4305 = vpop.f32.mrf.mxu0
          %v4306 = vadd.f32 %v4121, %v4305
          %v4307 = vpop.f32.mrf.mxu0
          %v4308 = vpop.f32.mrf.mxu0
          %v4309 = vadd.f32 %v4124, %v4308
          %v4310 = vpop.f32.mrf.mxu0
          %4311 = vmatprep.mubr.bf16.mxu0 %v3730
          %4312 = vmatmul.mubr.bf16.gmra.mxu0 %v3729
          %v4313 = vpop.f32.mrf.mxu0
          %v4314 = vadd.f32 %v4129, %v4313
          %v4315 = vpop.f32.mrf.mxu0
          %v4316 = vpop.f32.mrf.mxu0
          %v4317 = vadd.f32 %v4132, %v4316
          %v4318 = vpop.f32.mrf.mxu0
          %4319 = vmatprep.mubr.bf16.mxu0 %v3734
          %4320 = vmatmul.mubr.bf16.gmra.mxu0 %v3733
          %v4321 = vpop.f32.mrf.mxu0
          %v4322 = vadd.f32 %v4137, %v4321
          %v4323 = vpop.f32.mrf.mxu0
          %v4324 = vpop.f32.mrf.mxu0
          %v4325 = vadd.f32 %v4140, %v4324
          %v4326 = vpop.f32.mrf.mxu0
          %4327 = vmatprep.mubr.bf16.mxu0 %v3738
          %4328 = vmatmul.mubr.bf16.gmra.mxu0 %v3737
          %v4329 = vpop.f32.mrf.mxu0
          %v4330 = vadd.f32 %v4145, %v4329
          %v4331 = vpop.f32.mrf.mxu0
          %v4332 = vpop.f32.mrf.mxu0
          %v4333 = vadd.f32 %v4148, %v4332
          %v4334 = vpop.f32.mrf.mxu0
          %4335 = vmatprep.mubr.bf16.mxu0 %v3742
          %4336 = vmatmul.mubr.bf16.gmra.mxu0 %v3741
          %v4337 = vpop.f32.mrf.mxu0
          %v4338 = vadd.f32 %v4153, %v4337
          %v4339 = vpop.f32.mrf.mxu0
          %v4340 = vpop.f32.mrf.mxu0
          %v4341 = vadd.f32 %v4156, %v4340
          %v4342 = vpop.f32.mrf.mxu0
          %4343 = vmatprep.mubr.bf16.mxu0 %v3746
          %4344 = vmatmul.mubr.bf16.gmra.mxu0 %v3745
          %v4345 = vpop.f32.mrf.mxu0
          %v4346 = vadd.f32 %v4161, %v4345
          %v4347 = vpop.f32.mrf.mxu0
          %v4348 = vpop.f32.mrf.mxu0
          %v4349 = vadd.f32 %v4164, %v4348
          %v4350 = vpop.f32.mrf.mxu0
          %4351 = vmatprep.mubr.bf16.mxu0 %v3750
          %4352 = vmatmul.mubr.bf16.gmra.mxu0 %v3749
          %v4353 = vpop.f32.mrf.mxu0
          %v4354 = vadd.f32 %v4169, %v4353
          %v4355 = vpop.f32.mrf.mxu0
          %v4356 = vpop.f32.mrf.mxu0
          %v4357 = vadd.f32 %v4172, %v4356
          %v4358 = vpop.f32.mrf.mxu0
          %4359 = vmatprep.mubr.bf16.mxu0 %v3754
          %4360 = vmatmul.mubr.bf16.gmra.mxu0 %v3753
          %v4361 = vpop.f32.mrf.mxu0
          %v4362 = vadd.f32 %v4177, %v4361
          %v4363 = vpop.f32.mrf.mxu0
          %v4364 = vpop.f32.mrf.mxu0
          %v4365 = vadd.f32 %v4180, %v4364
          %v4366 = vpop.f32.mrf.mxu0
          %4367 = vmatprep.mubr.bf16.mxu0 %v3758
          %4368 = vmatmul.mubr.bf16.gmra.mxu0 %v3757
          %v4369 = vpop.f32.mrf.mxu0
          %v4370 = vadd.f32 %v4185, %v4369
          %v4371 = vpop.f32.mrf.mxu0
          %v4372 = vpop.f32.mrf.mxu0
          %v4373 = vadd.f32 %v4188, %v4372
          %v4374 = vpop.f32.mrf.mxu0
          %4375 = vmatprep.mubr.bf16.mxu0 %v3762
          %4376 = vmatmul.mubr.bf16.gmra.mxu0 %v3761
          %v4377 = vpop.f32.mrf.mxu0
          %v4378 = vadd.f32 %v4193, %v4377
          %v4379 = vpop.f32.mrf.mxu0
          %v4380 = vpop.f32.mrf.mxu0
          %v4381 = vadd.f32 %v4196, %v4380
          %v4382 = vpop.f32.mrf.mxu0
          %4383 = vmatprep.mubr.bf16.mxu0 %v3766
          %4384 = vmatmul.mubr.bf16.gmra.mxu0 %v3765
          %v4385 = vpop.f32.mrf.mxu0
          %v4386 = vadd.f32 %v4201, %v4385
          %v4387 = vpop.f32.mrf.mxu0
          %v4388 = vpop.f32.mrf.mxu0
          %v4389 = vadd.f32 %v4204, %v4388
          %v4390 = vpop.f32.mrf.mxu0
          %4391 = vmatprep.mubr.bf16.mxu0 %v3770
          %4392 = vmatmul.mubr.bf16.gmra.mxu0 %v3769
          %v4393 = vpop.f32.mrf.mxu0
          %v4394 = vadd.f32 %v4209, %v4393
          %v4395 = vpop.f32.mrf.mxu0
          %v4396 = vpop.f32.mrf.mxu0
          %v4397 = vadd.f32 %v4212, %v4396
          %v4398 = vpop.f32.mrf.mxu0
          %4399 = vmatprep.mubr.bf16.mxu0 %v3774
          %4400 = vmatmul.mubr.bf16.gmra.mxu0 %v3773
          %v4401 = vpop.f32.mrf.mxu0
          %v4402 = vadd.f32 %v4217, %v4401
          %v4403 = vpop.f32.mrf.mxu0
          %v4404 = vpop.f32.mrf.mxu0
          %v4405 = vadd.f32 %v4220, %v4404
          %v4406 = vpop.f32.mrf.mxu0
          %4407 = vdwg.mxu0
          %4408 = vst [vmem:[%s371] sm:$0xff] %v4258
          %4409 = vst [vmem:[%s371 + $0x8] sm:$0xff] %v4261
          %4410 = vst [vmem:[%s371 + $0x10] sm:$0xff] %v4266
          %4411 = vst [vmem:[%s371 + $0x18] sm:$0xff] %v4269
          %4412 = vst [vmem:[%s371 + $0x20] sm:$0xff] %v4274
          %4413 = vst [vmem:[%s371 + $0x28] sm:$0xff] %v4277
          %4414 = vst [vmem:[%s371 + $0x30] sm:$0xff] %v4282
          %4415 = vst [vmem:[%s371 + $0x38] sm:$0xff] %v4285
          %4416 = vst [vmem:[%s371 + $0x40] sm:$0xff] %v4290
          %4417 = vst [vmem:[%s371 + $0x48] sm:$0xff] %v4293
          %4418 = vst [vmem:[%s371 + $0x50] sm:$0xff] %v4298
          %4419 = vst [vmem:[%s371 + $0x58] sm:$0xff] %v4301
          %4420 = vst [vmem:[%s371 + $0x60] sm:$0xff] %v4306
          %4421 = vst [vmem:[%s371 + $0x68] sm:$0xff] %v4309
          %4422 = vst [vmem:[%s371 + $0x70] sm:$0xff] %v4314
          %4423 = vst [vmem:[%s371 + $0x78] sm:$0xff] %v4317
          %4424 = vst [vmem:[%s371 + $0x80] sm:$0xff] %v4322
          %4425 = vst [vmem:[%s371 + $0x88] sm:$0xff] %v4325
          %4426 = vst [vmem:[%s371 + $0x90] sm:$0xff] %v4330
          %4427 = vst [vmem:[%s371 + $0x98] sm:$0xff] %v4333
          %4428 = vst [vmem:[%s371 + $0xa0] sm:$0xff] %v4338
          %4429 = vst [vmem:[%s371 + $0xa8] sm:$0xff] %v4341
          %4430 = vst [vmem:[%s371 + $0xb0] sm:$0xff] %v4346
          %4431 = vst [vmem:[%s371 + $0xb8] sm:$0xff] %v4349
          %4432 = vst [vmem:[%s371 + $0xc0] sm:$0xff] %v4354
          %4433 = vst [vmem:[%s371 + $0xc8] sm:$0xff] %v4357
          %4434 = vst [vmem:[%s371 + $0xd0] sm:$0xff] %v4362
          %4435 = vst [vmem:[%s371 + $0xd8] sm:$0xff] %v4365
          %4436 = vst [vmem:[%s371 + $0xe0] sm:$0xff] %v4370
          %4437 = vst [vmem:[%s371 + $0xe8] sm:$0xff] %v4373
          %4438 = vst [vmem:[%s371 + $0xf0] sm:$0xff] %v4378
          %4439 = vst [vmem:[%s371 + $0xf8] sm:$0xff] %v4381
          %4440 = vst [vmem:[%s371 + $0x100] sm:$0xff] %v4386
          %4441 = vst [vmem:[%s371 + $0x108] sm:$0xff] %v4389
          %4442 = vst [vmem:[%s371 + $0x110] sm:$0xff] %v4394
          %4443 = vst [vmem:[%s371 + $0x118] sm:$0xff] %v4397
          %4444 = vst [vmem:[%s371 + $0x120] sm:$0xff] %v4402
          %4445 = vst [vmem:[%s371 + $0x128] sm:$0xff] %v4405
        $region80: #{tpu_custom_call.1} parent=47 // pred_fallthru
          _
        %s4446 = sand.u32 %s204, 1
        %s4447 = scalar_lea.sflag [#allocation7], %s4446
        %s4448 = sand.u32 %s204, 1
        %s4449 = smul.addr %s4448, 304
        %s4450 = scalar_lea.vmem [#allocation14], %s4449
        // Predicated region
        $region81: #{tpu_custom_call.1} parent=47 // pred_check
          %p4451 = pneg %p214
        $region82: #{tpu_custom_call.1} parent=47 // pred_check_branch
          %4453 = sbr.rel (%p4451) target = $region84
        $region83: #{tpu_custom_call.1} parent=47 // pred_region
          %s4454 = smul.u32 %s31, %s30
          %s4455 = smul.u32 38, %s4454
          %s4457 = ssub.s32 4864, 4864
          %4458 = vsyncadd %s4447, %s4457
          %s4459 = smul.addr %s4455, 128
          %s4460 = scalar_lea.hbm %s7, %s4459
          %s4461 = sshll.u32 %s4450, 4
          %s4462 = int_to_ptr.vmem [resolvable:$true] %s4461
          %4467 = dma.vmem_to_hbm [thread:$0]  %s4462, 4864, %s4460, %s4447, 128, 128, 8
        $region84: #{tpu_custom_call.1} parent=47 // pred_fallthru
          _
      $region48: #{tpu_custom_call.1} parent=5 // pred_fallthru
        _
      %p4468 = scmp.le.s32.totalorder 2, %s21
      // Predicated region
      $region85: #{tpu_custom_call.1} parent=5 // pred_check
        %p4469 = pneg %p4468
      $region86: #{tpu_custom_call.1} parent=5 // pred_check_branch
        %4471 = sbr.rel (%p4469) target = $region88
      $region87: #{tpu_custom_call.1} parent=5 // pred_region
        %s4472 = ssub.s32 %s21, 2
        // Predicated region
        $region89: #{tpu_custom_call.1} parent=87 // pred_check
          %p4473 = pneg %p220
        $region90: #{tpu_custom_call.1} parent=87 // pred_check_branch
          %4475 = sbr.rel (%p4473) target = $region92
        $region91: #{tpu_custom_call.1} parent=87 // pred_region
          %s4476 = sand.u32 %s205, 1
          %s4477 = scalar_lea.sflag [#allocation7], %s4476
          %s4478 = sand.u32 %s205, 1
          %s4479 = smul.addr %s4478, 304
          %s4480 = scalar_lea.vmem [#allocation14], %s4479
          %4481 = dma.done %s4477, 4864
        $region92: #{tpu_custom_call.1} parent=87 // pred_fallthru
          _
      $region88: #{tpu_custom_call.1} parent=5 // pred_fallthru
        _
    $region6: #{tpu_custom_call.1} parent=1 // loop_footer
      %s25 = sadd.s32 1, %s21
    $region7: #{tpu_custom_call.1} parent=1 // loop_footer_branch
      %20 = sbr.rel target = $region3
    $region8: #{tpu_custom_call.1} parent=1 // loop_exit
      _
    %4482 = vsyncpa [#allocation6], 1
    %s4483 = scalar_lea.sflag [#allocation6], 1
    %4484 = vsyncpa %s4483, 1
    %4485 = vsyncpa [#allocation9], 1
    %4486 = vsyncpa [#allocation12], 1
    %4487 = vsyncpa [#allocation7], 1
    %s4488 = scalar_lea.sflag [#allocation7], 1
    %4489 = vsyncpa %s4488, 1

</llo_original>
